<compile_context>
chip_gen: v6e
topology: v6e:2x2x1
jax: 0.10.0
libtpu: 0.0.40
codegen_flags: <defaults>
</compile_context>

<pallas_src>
import numpy as np
import jax
import jax.numpy as jnp
from jax.experimental import pallas as pl
from jax.experimental.pallas import tpu as pltpu


def fft_conv_kernel(x_ref, wr_ref, wi_ref, fwf_ref, fhp_ref, ght_ref, ghb_ref,
                    gwr_ref, gwi_ref, out_ref):
    """y = real(ifftshift(ifft2(W * fft2(x)))) * normalizer for a block of KC images."""
    kc, h, w = x_ref.shape
    c = wr_ref.shape[0]
    k = kc // c
    f32 = jnp.float32
    mdt = fwf_ref.dtype                      # MXU operand dtype (f32 or bf16)

    # ---- S1: forward W-DFT (real input).  One matmul, M = KC*H. -----------------
    t1 = jnp.dot(x_ref[...].reshape(kc * h, w), fwf_ref[...],
                 preferred_element_type=f32)                          # (KC*H, 2W)

    # ---- T1: put the H axis on lanes (minor-dim transpose, XLU). ----------------
    t1t = jnp.swapaxes(t1.reshape(kc, h, 2 * w), 1, 2)                # (KC, 2W, H)

    # ---- S2: forward H-DFT partial products.  One matmul, M = KC*2W. ------------
    p = jnp.dot(t1t.reshape(kc * 2 * w, h).astype(mdt), fhp_ref[...],
                preferred_element_type=f32).reshape(kc, 2 * w, 2 * h)
    pa = p[:, :w, :]                         # contributions from Yr
    pb = p[:, w:, :]                         # contributions from Yi
    zr = pa[..., :h] + pb[..., h:]           # Re fft2(x), transposed layout [b, v, u]
    zi = pb[..., :h] - pa[..., h:]           # Im fft2(x), transposed layout

    # ---- Wiener filter: complex elementwise multiply (f32, VPU), broadcast over K.
    wr = wr_ref[...]
    wi = wi_ref[...]
    zr4 = zr.reshape(k, c, w, h)
    zi4 = zi.reshape(k, c, w, h)
    vr = (wr * zr4 - wi * zi4).reshape(kc * w, h)
    vi = (wr * zi4 + wi * zr4).reshape(kc * w, h)

    # ---- S3: inverse H-DFT (ifftshift on output rows folded into ght/ghb). ------
    a2 = (jnp.dot(vr.astype(mdt), ght_ref[...], preferred_element_type=f32)
          + jnp.dot(vi.astype(mdt), ghb_ref[...], preferred_element_type=f32))
    # a2: (KC*W, 2H) = [Ar | Ai], still transposed.

    # ---- T2: back to natural orientation (output H index on rows). --------------
    a3 = jnp.swapaxes(a2.reshape(kc, w, 2 * h), 1, 2)                 # (KC, 2H, W)
    ar = a3[:, :h, :].reshape(kc * h, w)
    ai = a3[:, h:, :].reshape(kc * h, w)

    # ---- S4: inverse W-DFT, real part only (ifftshift cols, 1/(H*W), normalizer). -
    out = (jnp.dot(ar.astype(mdt), gwr_ref[...], preferred_element_type=f32)
           - jnp.dot(ai.astype(mdt), gwi_ref[...], preferred_element_type=f32))
    out_ref[...] = out.reshape(kc, h, w).astype(out_ref.dtype)


def _build_dft_matrices(h, w, normalizer, mat_dtype):
    """Real, pre-split DFT block matrices.  ifftshift, the 1/(H*W) IFFT factor and the
    learnable normalizer are folded into the inverse-W matrices."""
    def _cos_sin(n):
        idx = np.arange(n, dtype=np.int64)        # host int64: no overflow for any n
        phase = (2.0 * np.pi / n) * ((idx[:, None] * idx[None, :]) % n)
        return np.cos(phase), np.sin(phase)

    ch, sh = _cos_sin(h)
    cw, sw = _cos_sin(w)

    fwf = np.concatenate([cw, -sw], axis=1)       # (W, 2W): x @ fwf = [Yr | Yi]
    fhp = np.concatenate([ch, sh], axis=1)        # (H, 2H): partial products for H-DFT
    ghr = np.roll(ch, -(h // 2), axis=1)          # inverse H-DFT with ifftshift on rows
    ghi = np.roll(sh, -(h // 2), axis=1)
    ght = np.concatenate([ghr, ghi], axis=1)      # (H, 2H): multiplies Vr
    ghb = np.concatenate([-ghi, ghr], axis=1)     # (H, 2H): multiplies Vi

    # NOTE: in bf16 mode these matrices (incl. the folded normalizer) are cast to bf16;
    # accumulation stays f32.  Validated against the jnp.fft reference in __main__.
    scale = jnp.asarray(normalizer, jnp.float32) / jnp.float32(h * w)
    gwr = jnp.asarray(np.roll(cw, -(w // 2), axis=1), jnp.float32) * scale
    gwi = jnp.asarray(np.roll(sw, -(w // 2), axis=1), jnp.float32) * scale

    as_mat = lambda m: jnp.asarray(m, jnp.float32).astype(mat_dtype)
    return (as_mat(fwf), as_mat(fhp), as_mat(ght), as_mat(ghb),
            gwr.astype(mat_dtype), gwi.astype(mat_dtype))


def _pick_batch_block(a, c, h, w, x_bytes, vmem_budget_bytes):
    """Largest batch sub-block K (divisor of A) whose per-step working set fits the VMEM
    budget; prefers leaving >= 2 grid steps so both v7x TensorCores get work."""
    const_bytes = (2 * (2 * c * w * h * 4)                    # Wiener filter (f32), x2 bufs
                   + 2 * (6 * h * h + 4 * w * w) * x_bytes)   # DFT matrices, x2 bufs

    def step_bytes(k):
        kc = k * c
        io = 2 * kc * h * w * (x_bytes + 4)                   # in + out blocks, x2 bufs
        tmp = 24 * kc * h * w * 4                             # live f32 temporaries (generous)
        return const_bytes + io + tmp

    divisors = [k for k in range(1, a + 1) if a % k == 0]
    feasible = [k for k in divisors if step_bytes(k) <= vmem_budget_bytes] or [1]
    multi_step = [k for k in feasible if a // k >= 2]
    k = max(multi_step) if multi_step else max(feasible)
    # TODO(synk): if even K=1 overflows the budget (very large H, W), add an H- or
    #             C-tiling grid axis instead of a bigger block.
    return k, step_bytes(k)


def fft_conv_forward(img, w_real, w_imag, normalizer, *, use_bf16=True,
                     vmem_budget_bytes=48 * 1024 * 1024):
    """img: (A, C, H, W) float32; Wiener filter (module __init__) split into w_real /
    w_imag, each (C, H, W).  Matches fft_conv.forward for padding_fft_x=padding_fft_y=0."""
    a, c, h, w = img.shape
    assert w_real.shape == (c, h, w) and w_imag.shape == (c, h, w)
    assert h % 8 == 0 and w % 8 == 0, "H, W must be multiples of 8 (TPU sublane tile)"
    # Best layout when H and W are multiples of 128 (lane-dense stores, tile-aligned
    # in-kernel transposes).

    mat_dtype = jnp.bfloat16 if use_bf16 else jnp.float32
    x_bytes = 2 if use_bf16 else 4

    k, est_step_bytes = _pick_batch_block(a, c, h, w, x_bytes, vmem_budget_bytes)
    kc = k * c
    grid = (a // k,)

    fwf, fhp, ght, ghb, gwr, gwi = _build_dft_matrices(h, w, normalizer, mat_dtype)

    # Natural NCHW flatten (free) in the MXU operand dtype; Wiener filter passed once,
    # transposed to the kernel's mid-pipeline (v, u) orientation, kept in f32.
    x3 = img.reshape(a * c, h, w).astype(mat_dtype)
    wr_t = jnp.swapaxes(w_real.astype(jnp.float32), 1, 2)     # (C, W, H)
    wi_t = jnp.swapaxes(w_imag.astype(jnp.float32), 1, 2)

    blk3 = lambda i: (i, 0, 0)
    fix3 = lambda i: (0, 0, 0)
    fix2 = lambda i: (0, 0)
    # NOTE: the fix3/fix2 operands are grid-invariant (no re-DMA across steps); their
    # VMEM footprint could be halved further with pipeline_mode=pl.Buffered(1).

    flops = 8 * a * c * h * w * (w + 2 * h)
    bytes_accessed = (a * c * h * w * (x_bytes + 4) + 2 * c * h * w * 4
                      + (6 * h * h + 4 * w * w) * x_bytes)
    vmem_limit = int(min(max(est_step_bytes + (1 << 20), 32 * 1024 * 1024),
                         100 * 1024 * 1024))

    out3 = pl.pallas_call(
        fft_conv_kernel,
        out_shape=jax.ShapeDtypeStruct((a * c, h, w), jnp.float32),
        grid_spec=pltpu.PrefetchScalarGridSpec(
            num_scalar_prefetch=0,
            grid=grid,
            in_specs=[
                pl.BlockSpec((kc, h, w), blk3),       # image block (K*C, H, W)
                pl.BlockSpec((c, w, h), fix3),        # Wiener filter real, transposed
                pl.BlockSpec((c, w, h), fix3),        # Wiener filter imag, transposed
                pl.BlockSpec((w, 2 * w), fix2),       # forward W-DFT  [cw | -sw]
                pl.BlockSpec((h, 2 * h), fix2),       # forward H-DFT  [ch |  sh]
                pl.BlockSpec((h, 2 * h), fix2),       # inverse H-DFT  [ghr | ghi]
                pl.BlockSpec((h, 2 * h), fix2),       # inverse H-DFT  [-ghi | ghr]
                pl.BlockSpec((w, w), fix2),           # inverse W-DFT real (scaled)
                pl.BlockSpec((w, w), fix2),           # inverse W-DFT imag (scaled)
            ],
            out_specs=pl.BlockSpec((kc, h, w), blk3),
        ),
        compiler_params=pltpu.CompilerParams(
            dimension_semantics=("parallel",),
            vmem_limit_bytes=vmem_limit),
        cost_estimate=pl.CostEstimate(flops=flops, transcendentals=0,
                                      bytes_accessed=bytes_accessed),
    )(x3, wr_t, wi_t, fwf, fhp, ght, ghb, gwr, gwi)

    out = out3.reshape(a, c, h, w)

    # Crop glue — identical to the PyTorch slice; identity for padding=0 with even H, W.
    cx, cy = h // 2, w // 2
    return out[:, :, cx - h // 2: cx + h // 2, cy - w // 2: cy + w // 2]


if __name__ == "__main__":
    key = jax.random.PRNGKey(0)
    k_psf, k_img = jax.random.split(key)

    # Shapes consistent with the module: psfs (n, h, w), img (a, b=n, h, w).
    # H = W = 128 keeps the output store lane-dense and all in-kernel transposes
    # tile-aligned.
    A, C, H, W = 2, 4, 128, 128
    gamma = 0.01
    normalizer = 1.0 / 0.0008

    # Module __init__ semantics: W = conj(fft2(psfs)) / (|fft2(psfs)|^2 + 100*gamma)
    psfs = jax.random.uniform(k_psf, (C, H, W), dtype=jnp.float32)
    Fpsfs = jnp.fft.fft2(psfs)
    Wc = jnp.conj(Fpsfs) / (jnp.abs(Fpsfs) ** 2 + 100.0 * gamma)
    Wr = jnp.real(Wc).astype(jnp.float32)
    Wi = jnp.imag(Wc).astype(jnp.float32)

    img = jax.random.normal(k_img, (A, C, H, W), dtype=jnp.float32)

    # Reference (pure JAX, mirrors the PyTorch forward).
    X = Wc[None] * jnp.fft.fft2(img.astype(jnp.complex64))
    ref = jnp.real(jnp.fft.ifftshift(jnp.fft.ifft2(X), axes=(-2, -1))) * normalizer
    cx, cy = H // 2, W // 2
    ref = ref[:, :, cx - H // 2: cx + H // 2, cy - W // 2: cy + W // 2]
    ref_max = float(jnp.max(jnp.abs(ref))) + 1e-6

    # f32 MXU-operand path (reference accuracy).
    out_f32 = jax.block_until_ready(
        fft_conv_forward(img, Wr, Wi, normalizer, use_bf16=False))
    assert out_f32.shape == (A, C, H, W), out_f32.shape
    err_f32 = float(jnp.max(jnp.abs(out_f32 - ref))) / ref_max
    assert err_f32 < 2e-4, f"f32 relative error too large: {err_f32}"

    # bf16 MXU-operand path (default; f32 accumulation, f32 Wiener multiply).
    out_bf16 = jax.block_until_ready(fft_conv_forward(img, Wr, Wi, normalizer))
    err_bf16 = float(jnp.max(jnp.abs(out_bf16 - ref))) / ref_max
    assert err_bf16 < 5e-2, f"bf16 relative error too large: {err_bf16}"

    print("KERNEL_OK")
</pallas_src>

<mosaic_0001>
module attributes {stable_mosaic.version = 11 : i64} {
  func.func @fft_conv_kernel(%arg0: i32, %arg1: memref<4x128x128xf32, #tpu.memory_space<vmem>>, %arg2: memref<4x128x128xf32, #tpu.memory_space<vmem>>, %arg3: memref<4x128x128xf32, #tpu.memory_space<vmem>>, %arg4: memref<128x256xf32, #tpu.memory_space<vmem>>, %arg5: memref<128x256xf32, #tpu.memory_space<vmem>>, %arg6: memref<128x256xf32, #tpu.memory_space<vmem>>, %arg7: memref<128x256xf32, #tpu.memory_space<vmem>>, %arg8: memref<128x128xf32, #tpu.memory_space<vmem>>, %arg9: memref<128x128xf32, #tpu.memory_space<vmem>>, %arg10: memref<4x128x128xf32, #tpu.memory_space<vmem>>) attributes {dimension_semantics = [#tpu.dimension_semantics<parallel>], iteration_bounds = array<i64: 2>, scalar_prefetch = 0 : i64, scratch_operands = 0 : i64, tpu.core_type = #tpu.core_type<tc>, window_params = [{transform_indices = @transform_0, window_bounds = array<i64: 4, 128, 128>}, {pipeline_mode = #tpu.pipeline_mode<synchronous>, transform_indices = @transform_1, window_bounds = array<i64: 4, 128, 128>}, {pipeline_mode = #tpu.pipeline_mode<synchronous>, transform_indices = @transform_2, window_bounds = array<i64: 4, 128, 128>}, {pipeline_mode = #tpu.pipeline_mode<synchronous>, transform_indices = @transform_3, window_bounds = array<i64: 128, 256>}, {pipeline_mode = #tpu.pipeline_mode<synchronous>, transform_indices = @transform_4, window_bounds = array<i64: 128, 256>}, {pipeline_mode = #tpu.pipeline_mode<synchronous>, transform_indices = @transform_5, window_bounds = array<i64: 128, 256>}, {pipeline_mode = #tpu.pipeline_mode<synchronous>, transform_indices = @transform_6, window_bounds = array<i64: 128, 256>}, {pipeline_mode = #tpu.pipeline_mode<synchronous>, transform_indices = @transform_7, window_bounds = array<i64: 128, 128>}, {pipeline_mode = #tpu.pipeline_mode<synchronous>, transform_indices = @transform_8, window_bounds = array<i64: 128, 128>}, {transform_indices = @transform_9, window_bounds = array<i64: 4, 128, 128>}]} {
    %c0 = arith.constant 0 : index
    %c0_0 = arith.constant 0 : index
    %c0_1 = arith.constant 0 : index
    %0 = vector.load %arg1[%c0, %c0_0, %c0_1] : memref<4x128x128xf32, #tpu.memory_space<vmem>>, vector<4x128x128xf32>
    %1 = vector.shape_cast %0 : vector<4x128x128xf32> to vector<512x128xf32>
    %c0_2 = arith.constant 0 : index
    %c0_3 = arith.constant 0 : index
    %2 = vector.load %arg4[%c0_2, %c0_3] : memref<128x256xf32, #tpu.memory_space<vmem>>, vector<128x256xf32>
    %cst = arith.constant dense<0.000000e+00> : vector<512x256xf32>
    %3 = tpu.matmul %1, %2, %cst {dimension_numbers = #tpu.dot_dimension_numbers<[1], [0], [0], [1], [0, 0, 1, 1], [], []>} : vector<512x128xf32>, vector<128x256xf32>, vector<512x256xf32> -> vector<512x256xf32>
    %4 = vector.shape_cast %3 : vector<512x256xf32> to vector<4x128x256xf32>
    %5 = tpu.transpose %4, [0, 2, 1] : vector<4x128x256xf32> -> vector<4x256x128xf32>
    %6 = vector.shape_cast %5 : vector<4x256x128xf32> to vector<1024x128xf32>
    %c0_4 = arith.constant 0 : index
    %c0_5 = arith.constant 0 : index
    %7 = vector.load %arg5[%c0_4, %c0_5] : memref<128x256xf32, #tpu.memory_space<vmem>>, vector<128x256xf32>
    %cst_6 = arith.constant dense<0.000000e+00> : vector<1024x256xf32>
    %8 = tpu.matmul %6, %7, %cst_6 {dimension_numbers = #tpu.dot_dimension_numbers<[1], [0], [0], [1], [0, 0, 1, 1], [], []>} : vector<1024x128xf32>, vector<128x256xf32>, vector<1024x256xf32> -> vector<1024x256xf32>
    %9 = vector.shape_cast %8 : vector<1024x256xf32> to vector<4x256x256xf32>
    %10 = vector.extract_strided_slice %9 {offsets = [0, 0, 0], sizes = [4, 128, 256], strides = [1, 1, 1]} : vector<4x256x256xf32> to vector<4x128x256xf32>
    %11 = vector.extract_strided_slice %9 {offsets = [0, 128, 0], sizes = [4, 128, 256], strides = [1, 1, 1]} : vector<4x256x256xf32> to vector<4x128x256xf32>
    %12 = vector.extract_strided_slice %10 {offsets = [0, 0, 0], sizes = [4, 128, 128], strides = [1, 1, 1]} : vector<4x128x256xf32> to vector<4x128x128xf32>
    %13 = vector.extract_strided_slice %11 {offsets = [0, 0, 128], sizes = [4, 128, 128], strides = [1, 1, 1]} : vector<4x128x256xf32> to vector<4x128x128xf32>
    %14 = arith.addf %12, %13 : vector<4x128x128xf32>
    %15 = vector.extract_strided_slice %11 {offsets = [0, 0, 0], sizes = [4, 128, 128], strides = [1, 1, 1]} : vector<4x128x256xf32> to vector<4x128x128xf32>
    %16 = vector.extract_strided_slice %10 {offsets = [0, 0, 128], sizes = [4, 128, 128], strides = [1, 1, 1]} : vector<4x128x256xf32> to vector<4x128x128xf32>
    %17 = arith.subf %15, %16 : vector<4x128x128xf32>
    %c0_7 = arith.constant 0 : index
    %c0_8 = arith.constant 0 : index
    %c0_9 = arith.constant 0 : index
    %18 = vector.load %arg2[%c0_7, %c0_8, %c0_9] : memref<4x128x128xf32, #tpu.memory_space<vmem>>, vector<4x128x128xf32>
    %c0_10 = arith.constant 0 : index
    %c0_11 = arith.constant 0 : index
    %c0_12 = arith.constant 0 : index
    %19 = vector.load %arg3[%c0_10, %c0_11, %c0_12] : memref<4x128x128xf32, #tpu.memory_space<vmem>>, vector<4x128x128xf32>
    %20 = vector.shape_cast %14 : vector<4x128x128xf32> to vector<1x4x128x128xf32>
    %21 = vector.shape_cast %17 : vector<4x128x128xf32> to vector<1x4x128x128xf32>
    %22 = vector.shape_cast %18 : vector<4x128x128xf32> to vector<1x4x128x128xf32>
    %23 = arith.mulf %22, %20 : vector<1x4x128x128xf32>
    %24 = vector.shape_cast %19 : vector<4x128x128xf32> to vector<1x4x128x128xf32>
    %25 = arith.mulf %24, %21 : vector<1x4x128x128xf32>
    %26 = arith.subf %23, %25 : vector<1x4x128x128xf32>
    %27 = vector.shape_cast %26 : vector<1x4x128x128xf32> to vector<512x128xf32>
    %28 = vector.shape_cast %18 : vector<4x128x128xf32> to vector<1x4x128x128xf32>
    %29 = arith.mulf %28, %21 : vector<1x4x128x128xf32>
    %30 = vector.shape_cast %19 : vector<4x128x128xf32> to vector<1x4x128x128xf32>
    %31 = arith.mulf %30, %20 : vector<1x4x128x128xf32>
    %32 = arith.addf %29, %31 : vector<1x4x128x128xf32>
    %33 = vector.shape_cast %32 : vector<1x4x128x128xf32> to vector<512x128xf32>
    %c0_13 = arith.constant 0 : index
    %c0_14 = arith.constant 0 : index
    %34 = vector.load %arg6[%c0_13, %c0_14] : memref<128x256xf32, #tpu.memory_space<vmem>>, vector<128x256xf32>
    %cst_15 = arith.constant dense<0.000000e+00> : vector<512x256xf32>
    %35 = tpu.matmul %27, %34, %cst_15 {dimension_numbers = #tpu.dot_dimension_numbers<[1], [0], [0], [1], [0, 0, 1, 1], [], []>} : vector<512x128xf32>, vector<128x256xf32>, vector<512x256xf32> -> vector<512x256xf32>
    %c0_16 = arith.constant 0 : index
    %c0_17 = arith.constant 0 : index
    %36 = vector.load %arg7[%c0_16, %c0_17] : memref<128x256xf32, #tpu.memory_space<vmem>>, vector<128x256xf32>
    %cst_18 = arith.constant dense<0.000000e+00> : vector<512x256xf32>
    %37 = tpu.matmul %33, %36, %cst_18 {dimension_numbers = #tpu.dot_dimension_numbers<[1], [0], [0], [1], [0, 0, 1, 1], [], []>} : vector<512x128xf32>, vector<128x256xf32>, vector<512x256xf32> -> vector<512x256xf32>
    %38 = arith.addf %35, %37 : vector<512x256xf32>
    %39 = vector.shape_cast %38 : vector<512x256xf32> to vector<4x128x256xf32>
    %40 = tpu.transpose %39, [0, 2, 1] : vector<4x128x256xf32> -> vector<4x256x128xf32>
    %41 = vector.extract_strided_slice %40 {offsets = [0, 0, 0], sizes = [4, 128, 128], strides = [1, 1, 1]} : vector<4x256x128xf32> to vector<4x128x128xf32>
    %42 = vector.shape_cast %41 : vector<4x128x128xf32> to vector<512x128xf32>
    %43 = vector.extract_strided_slice %40 {offsets = [0, 128, 0], sizes = [4, 128, 128], strides = [1, 1, 1]} : vector<4x256x128xf32> to vector<4x128x128xf32>
    %44 = vector.shape_cast %43 : vector<4x128x128xf32> to vector<512x128xf32>
    %c0_19 = arith.constant 0 : index
    %c0_20 = arith.constant 0 : index
    %45 = vector.load %arg8[%c0_19, %c0_20] : memref<128x128xf32, #tpu.memory_space<vmem>>, vector<128x128xf32>
    %cst_21 = arith.constant dense<0.000000e+00> : vector<512x128xf32>
    %46 = tpu.matmul %42, %45, %cst_21 {dimension_numbers = #tpu.dot_dimension_numbers<[1], [0], [0], [1], [0, 0, 1, 1], [], []>} : vector<512x128xf32>, vector<128x128xf32>, vector<512x128xf32> -> vector<512x128xf32>
    %c0_22 = arith.constant 0 : index
    %c0_23 = arith.constant 0 : index
    %47 = vector.load %arg9[%c0_22, %c0_23] : memref<128x128xf32, #tpu.memory_space<vmem>>, vector<128x128xf32>
    %cst_24 = arith.constant dense<0.000000e+00> : vector<512x128xf32>
    %48 = tpu.matmul %44, %47, %cst_24 {dimension_numbers = #tpu.dot_dimension_numbers<[1], [0], [0], [1], [0, 0, 1, 1], [], []>} : vector<512x128xf32>, vector<128x128xf32>, vector<512x128xf32> -> vector<512x128xf32>
    %49 = arith.subf %46, %48 : vector<512x128xf32>
    %50 = vector.shape_cast %49 : vector<512x128xf32> to vector<4x128x128xf32>
    %c0_25 = arith.constant 0 : index
    %c0_26 = arith.constant 0 : index
    %c0_27 = arith.constant 0 : index
    %51 = vector.load %arg10[%c0_25, %c0_26, %c0_27] : memref<4x128x128xf32, #tpu.memory_space<vmem>>, vector<4x128x128xf32>
    tpu.vector_store %arg10[%c0_25, %c0_26, %c0_27], %50 {strides = array<i32>} : memref<4x128x128xf32, #tpu.memory_space<vmem>>, vector<4x128x128xf32>,
    return
  }
  func.func @transform_0(%arg0: i32) -> (i32, i32, i32) {
    %c0_i32 = arith.constant 0 : i32
    %c0_i32_0 = arith.constant 0 : i32
    %c0_i32_1 = arith.constant 0 : i32
    return %arg0, %c0_i32, %c0_i32_0 : i32, i32, i32
  }
  func.func @transform_1(%arg0: i32) -> (i32, i32, i32) {
    %c0_i32 = arith.constant 0 : i32
    %c0_i32_0 = arith.constant 0 : i32
    %c0_i32_1 = arith.constant 0 : i32
    %c0_i32_2 = arith.constant 0 : i32
    return %c0_i32, %c0_i32_0, %c0_i32_1 : i32, i32, i32
  }
  func.func @transform_2(%arg0: i32) -> (i32, i32, i32) {
    %c0_i32 = arith.constant 0 : i32
    %c0_i32_0 = arith.constant 0 : i32
    %c0_i32_1 = arith.constant 0 : i32
    %c0_i32_2 = arith.constant 0 : i32
    return %c0_i32, %c0_i32_0, %c0_i32_1 : i32, i32, i32
  }
  func.func @transform_3(%arg0: i32) -> (i32, i32) {
    %c0_i32 = arith.constant 0 : i32
    %c0_i32_0 = arith.constant 0 : i32
    %c0_i32_1 = arith.constant 0 : i32
    return %c0_i32, %c0_i32_0 : i32, i32
  }
  func.func @transform_4(%arg0: i32) -> (i32, i32) {
    %c0_i32 = arith.constant 0 : i32
    %c0_i32_0 = arith.constant 0 : i32
    %c0_i32_1 = arith.constant 0 : i32
    return %c0_i32, %c0_i32_0 : i32, i32
  }
  func.func @transform_5(%arg0: i32) -> (i32, i32) {
    %c0_i32 = arith.constant 0 : i32
    %c0_i32_0 = arith.constant 0 : i32
    %c0_i32_1 = arith.constant 0 : i32
    return %c0_i32, %c0_i32_0 : i32, i32
  }
  func.func @transform_6(%arg0: i32) -> (i32, i32) {
    %c0_i32 = arith.constant 0 : i32
    %c0_i32_0 = arith.constant 0 : i32
    %c0_i32_1 = arith.constant 0 : i32
    return %c0_i32, %c0_i32_0 : i32, i32
  }
  func.func @transform_7(%arg0: i32) -> (i32, i32) {
    %c0_i32 = arith.constant 0 : i32
    %c0_i32_0 = arith.constant 0 : i32
    %c0_i32_1 = arith.constant 0 : i32
    return %c0_i32, %c0_i32_0 : i32, i32
  }
  func.func @transform_8(%arg0: i32) -> (i32, i32) {
    %c0_i32 = arith.constant 0 : i32
    %c0_i32_0 = arith.constant 0 : i32
    %c0_i32_1 = arith.constant 0 : i32
    return %c0_i32, %c0_i32_0 : i32, i32
  }
  func.func @transform_9(%arg0: i32) -> (i32, i32, i32) {
    %c0_i32 = arith.constant 0 : i32
    %c0_i32_0 = arith.constant 0 : i32
    %c0_i32_1 = arith.constant 0 : i32
    return %arg0, %c0_i32, %c0_i32_0 : i32, i32, i32
  }
}

</mosaic_0001>

<llo_original>
// kernel: tpu_custom_call.1
$region0: #{tpu_custom_call.1}
  #allocation0 [shape = 'u32[]', space=smem, size = 0x4, offset = 0x4, fixed_abs, tag = 'smem constant byte address 0x4 - core index']
  #allocation1 [shape = 'u32[144,128]{1,0:T(1,128)}', space=vmem, size = 0x12000, scoped, tag = 'internal scratch']
  %s0 = inlined_call_operand.hbm [shape: f32[8,128,128], index: 0, kind: input, shape index: {}]
  %s1 = inlined_call_operand.hbm [shape: f32[4,128,128], index: 1, kind: input, shape index: {}]
  %s2 = inlined_call_operand.hbm [shape: f32[4,128,128], index: 2, kind: input, shape index: {}]
  %s3 = inlined_call_operand.hbm [shape: f32[128,256], index: 3, kind: input, shape index: {}]
  %s4 = inlined_call_operand.hbm [shape: f32[128,256], index: 4, kind: input, shape index: {}]
  %s5 = inlined_call_operand.hbm [shape: f32[128,256], index: 5, kind: input, shape index: {}]
  %s6 = inlined_call_operand.hbm [shape: f32[128,256], index: 6, kind: input, shape index: {}]
  %s7 = inlined_call_operand.hbm [shape: f32[128,128], index: 7, kind: input, shape index: {}]
  %s8 = inlined_call_operand.hbm [shape: f32[128,128], index: 8, kind: input, shape index: {}]
  %s9 = inlined_call_operand.hbm [shape: f32[8,128,128], index: 9, kind: output, shape index: {}]
  %s10 = sld [smem:[#allocation0]]
  $region105: #{tpu_custom_call.1} parent=0
    _
  %s12 = ssub.s32 1, %s10
  %s13 = scalar_select 0, %s12, %s10
  $region1: #{tpu_custom_call.1} parent=0
    #allocation2 [shape = 'u8[524288]{0}', space=vmem, size = 0x80000, scoped, tag = 'input window, operand 0']
    #allocation3 [shape = 's32[2]{0}', space=sflag, size = 0x8, scoped, tag = 'scoped memory for tpu_custom_call.1']
    #allocation4 [shape = 's32[2]{0}', space=sflag, size = 0x8, scoped, tag = 'scoped memory for tpu_custom_call.1']
    #allocation5 [shape = 'u8[262144]{0}', space=vmem, size = 0x40000, scoped, tag = 'input window, operand 1, single buffered']
    #allocation6 [shape = 's32[1]{0}', space=sflag, size = 0x4, scoped, tag = 'scoped memory for tpu_custom_call.1']
    #allocation7 [shape = 'u8[262144]{0}', space=vmem, size = 0x40000, scoped, tag = 'input window, operand 2, single buffered']
    #allocation8 [shape = 'u8[131072]{0}', space=vmem, size = 0x20000, scoped, tag = 'input window, operand 3, single buffered']
    #allocation9 [shape = 's32[1]{0}', space=sflag, size = 0x4, scoped, tag = 'scoped memory for tpu_custom_call.1']
    #allocation10 [shape = 'u8[131072]{0}', space=vmem, size = 0x20000, scoped, tag = 'input window, operand 4, single buffered']
    #allocation11 [shape = 'u8[131072]{0}', space=vmem, size = 0x20000, scoped, tag = 'input window, operand 5, single buffered']
    #allocation12 [shape = 's32[1]{0}', space=sflag, size = 0x4, scoped, tag = 'scoped memory for tpu_custom_call.1']
    #allocation13 [shape = 'u8[131072]{0}', space=vmem, size = 0x20000, scoped, tag = 'input window, operand 6, single buffered']
    #allocation14 [shape = 'u8[65536]{0}', space=vmem, size = 0x10000, scoped, tag = 'input window, operand 7, single buffered']
    #allocation15 [shape = 's32[1]{0}', space=sflag, size = 0x4, scoped, tag = 'scoped memory for tpu_custom_call.1']
    #allocation16 [shape = 'u8[65536]{0}', space=vmem, size = 0x10000, scoped, tag = 'input window, operand 8, single buffered']
    #allocation17 [shape = 'u8[524288]{0}', space=vmem, size = 0x80000, scoped, tag = 'output window, operand 0']
    %14 = vsyncpa [#allocation3], 0
    %s15 = scalar_lea.sflag [#allocation3], 1
    %16 = vsyncpa %s15, 0
    %17 = vsyncpa [#allocation6], 0
    %18 = vsyncpa [#allocation9], 0
    %19 = vsyncpa [#allocation12], 0
    %20 = vsyncpa [#allocation15], 0
    %21 = vsyncpa [#allocation4], 0
    %s22 = scalar_lea.sflag [#allocation4], 1
    %23 = vsyncpa %s22, 0
    loop: start=0, step=1, limit=4
    $region2: #{tpu_custom_call.1} parent=1 // loop_pre_header
      _
    $region3: #{tpu_custom_call.1} parent=1 // loop_header
      %s25 = sphi 0, %s29
      %p26 = scmp.ge.s32.totalorder %s25, 4
      %s35 = sphi 0, %s37
      %s38 = sphi 0, %s35
      %s39 = sphi 0, %s38
      %s55 = sphi 0, %s39
      %s59 = sphi 0, %s59
      %s61 = sphi 0, %s59
      %s62 = sphi 0, %s61
      %s76 = sphi 0, %s62
      %s80 = sphi 0, %s80
      %s82 = sphi 0, %s80
      %s83 = sphi 0, %s82
      %s97 = sphi 0, %s83
      %s101 = sphi 0, %s101
      %s103 = sphi 0, %s101
      %s104 = sphi 0, %s103
      %s118 = sphi 0, %s104
      %s122 = sphi 0, %s122
      %s124 = sphi 0, %s122
      %s125 = sphi 0, %s124
      %s139 = sphi 0, %s125
      %s143 = sphi 0, %s143
      %s145 = sphi 0, %s143
      %s146 = sphi 0, %s145
      %s160 = sphi 0, %s146
      %s164 = sphi 0, %s164
      %s166 = sphi 0, %s164
      %s167 = sphi 0, %s166
      %s181 = sphi 0, %s167
      %s185 = sphi 0, %s185
      %s187 = sphi 0, %s185
      %s188 = sphi 0, %s187
      %s202 = sphi 0, %s188
      %s206 = sphi 0, %s206
      %s208 = sphi 0, %s206
      %s209 = sphi 0, %s208
      %s223 = sphi 0, %s209
      %s229 = sphi 0, %s231
      %s232 = sphi 0, %s229
      %s233 = sphi 0, %s232
      %s249 = sphi 0, %s233
    $region4: #{tpu_custom_call.1} parent=1 // loop_header_branch
      %28 = sbr.rel (%p26) target = $region8
    $region5: #{tpu_custom_call.1} parent=1 // loop_body
      %s30 = ssub.s32 %s25, 1
      %s31 = ssub.s32 %s25, 2
      %s32 = sadd.s32 %s25, 1
      %s33 = ssub.s32 %s25, %s32
      %p34 = scmp.eq.s32.totalorder %s33, 0
      %s36 = sadd.s32 %s35, 1
      %s37 = scalar_select %p34, %s35, %s36
      %p40 = pneg %p34
      %p41 = scmp.eq.s32.totalorder %s25, 1
      %p42 = por %p40, %p41
      %p43 = scmp.ne.s32.totalorder %s35, %s38
      %p44 = scmp.eq.s32.totalorder %s25, 0
      %p45 = por %p43, %p44
      %p46 = scmp.ne.s32.totalorder %s35, %s38
      %p47 = scmp.eq.s32.totalorder %s30, 1
      %p48 = por %p46, %p47
      %p49 = scmp.ne.s32.totalorder %s38, %s39
      %p50 = scmp.eq.s32.totalorder %s30, 0
      %p51 = por %p49, %p50
      %p52 = scmp.ne.s32.totalorder %s38, %s39
      %p53 = scmp.eq.s32.totalorder %s31, 1
      %p54 = por %p52, %p53
      %p56 = scmp.ne.s32.totalorder %s39, %s55
      %p57 = scmp.eq.s32.totalorder %s31, 0
      %p58 = por %p56, %p57
      %s60 = sadd.s32 %s59, 1
      %p63 = scmp.eq.s32.totalorder %s25, 1
      %p64 = scmp.ne.s32.totalorder %s59, %s61
      %p65 = scmp.eq.s32.totalorder %s25, 0
      %p66 = por %p64, %p65
      %p67 = scmp.ne.s32.totalorder %s59, %s61
      %p68 = scmp.eq.s32.totalorder %s30, 1
      %p69 = por %p67, %p68
      %p70 = scmp.ne.s32.totalorder %s61, %s62
      %p71 = scmp.eq.s32.totalorder %s30, 0
      %p72 = por %p70, %p71
      %p73 = scmp.ne.s32.totalorder %s61, %s62
      %p74 = scmp.eq.s32.totalorder %s31, 1
      %p75 = por %p73, %p74
      %p77 = scmp.ne.s32.totalorder %s62, %s76
      %p78 = scmp.eq.s32.totalorder %s31, 0
      %p79 = por %p77, %p78
      %s81 = sadd.s32 %s80, 1
      %p84 = scmp.eq.s32.totalorder %s25, 1
      %p85 = scmp.ne.s32.totalorder %s80, %s82
      %p86 = scmp.eq.s32.totalorder %s25, 0
      %p87 = por %p85, %p86
      %p88 = scmp.ne.s32.totalorder %s80, %s82
      %p89 = scmp.eq.s32.totalorder %s30, 1
      %p90 = por %p88, %p89
      %p91 = scmp.ne.s32.totalorder %s82, %s83
      %p92 = scmp.eq.s32.totalorder %s30, 0
      %p93 = por %p91, %p92
      %p94 = scmp.ne.s32.totalorder %s82, %s83
      %p95 = scmp.eq.s32.totalorder %s31, 1
      %p96 = por %p94, %p95
      %p98 = scmp.ne.s32.totalorder %s83, %s97
      %p99 = scmp.eq.s32.totalorder %s31, 0
      %p100 = por %p98, %p99
      %s102 = sadd.s32 %s101, 1
      %p105 = scmp.eq.s32.totalorder %s25, 1
      %p106 = scmp.ne.s32.totalorder %s101, %s103
      %p107 = scmp.eq.s32.totalorder %s25, 0
      %p108 = por %p106, %p107
      %p109 = scmp.ne.s32.totalorder %s101, %s103
      %p110 = scmp.eq.s32.totalorder %s30, 1
      %p111 = por %p109, %p110
      %p112 = scmp.ne.s32.totalorder %s103, %s104
      %p113 = scmp.eq.s32.totalorder %s30, 0
      %p114 = por %p112, %p113
      %p115 = scmp.ne.s32.totalorder %s103, %s104
      %p116 = scmp.eq.s32.totalorder %s31, 1
      %p117 = por %p115, %p116
      %p119 = scmp.ne.s32.totalorder %s104, %s118
      %p120 = scmp.eq.s32.totalorder %s31, 0
      %p121 = por %p119, %p120
      %s123 = sadd.s32 %s122, 1
      %p126 = scmp.eq.s32.totalorder %s25, 1
      %p127 = scmp.ne.s32.totalorder %s122, %s124
      %p128 = scmp.eq.s32.totalorder %s25, 0
      %p129 = por %p127, %p128
      %p130 = scmp.ne.s32.totalorder %s122, %s124
      %p131 = scmp.eq.s32.totalorder %s30, 1
      %p132 = por %p130, %p131
      %p133 = scmp.ne.s32.totalorder %s124, %s125
      %p134 = scmp.eq.s32.totalorder %s30, 0
      %p135 = por %p133, %p134
      %p136 = scmp.ne.s32.totalorder %s124, %s125
      %p137 = scmp.eq.s32.totalorder %s31, 1
      %p138 = por %p136, %p137
      %p140 = scmp.ne.s32.totalorder %s125, %s139
      %p141 = scmp.eq.s32.totalorder %s31, 0
      %p142 = por %p140, %p141
      %s144 = sadd.s32 %s143, 1
      %p147 = scmp.eq.s32.totalorder %s25, 1
      %p148 = scmp.ne.s32.totalorder %s143, %s145
      %p149 = scmp.eq.s32.totalorder %s25, 0
      %p150 = por %p148, %p149
      %p151 = scmp.ne.s32.totalorder %s143, %s145
      %p152 = scmp.eq.s32.totalorder %s30, 1
      %p153 = por %p151, %p152
      %p154 = scmp.ne.s32.totalorder %s145, %s146
      %p155 = scmp.eq.s32.totalorder %s30, 0
      %p156 = por %p154, %p155
      %p157 = scmp.ne.s32.totalorder %s145, %s146
      %p158 = scmp.eq.s32.totalorder %s31, 1
      %p159 = por %p157, %p158
      %p161 = scmp.ne.s32.totalorder %s146, %s160
      %p162 = scmp.eq.s32.totalorder %s31, 0
      %p163 = por %p161, %p162
      %s165 = sadd.s32 %s164, 1
      %p168 = scmp.eq.s32.totalorder %s25, 1
      %p169 = scmp.ne.s32.totalorder %s164, %s166
      %p170 = scmp.eq.s32.totalorder %s25, 0
      %p171 = por %p169, %p170
      %p172 = scmp.ne.s32.totalorder %s164, %s166
      %p173 = scmp.eq.s32.totalorder %s30, 1
      %p174 = por %p172, %p173
      %p175 = scmp.ne.s32.totalorder %s166, %s167
      %p176 = scmp.eq.s32.totalorder %s30, 0
      %p177 = por %p175, %p176
      %p178 = scmp.ne.s32.totalorder %s166, %s167
      %p179 = scmp.eq.s32.totalorder %s31, 1
      %p180 = por %p178, %p179
      %p182 = scmp.ne.s32.totalorder %s167, %s181
      %p183 = scmp.eq.s32.totalorder %s31, 0
      %p184 = por %p182, %p183
      %s186 = sadd.s32 %s185, 1
      %p189 = scmp.eq.s32.totalorder %s25, 1
      %p190 = scmp.ne.s32.totalorder %s185, %s187
      %p191 = scmp.eq.s32.totalorder %s25, 0
      %p192 = por %p190, %p191
      %p193 = scmp.ne.s32.totalorder %s185, %s187
      %p194 = scmp.eq.s32.totalorder %s30, 1
      %p195 = por %p193, %p194
      %p196 = scmp.ne.s32.totalorder %s187, %s188
      %p197 = scmp.eq.s32.totalorder %s30, 0
      %p198 = por %p196, %p197
      %p199 = scmp.ne.s32.totalorder %s187, %s188
      %p200 = scmp.eq.s32.totalorder %s31, 1
      %p201 = por %p199, %p200
      %p203 = scmp.ne.s32.totalorder %s188, %s202
      %p204 = scmp.eq.s32.totalorder %s31, 0
      %p205 = por %p203, %p204
      %s207 = sadd.s32 %s206, 1
      %p210 = scmp.eq.s32.totalorder %s25, 1
      %p211 = scmp.ne.s32.totalorder %s206, %s208
      %p212 = scmp.eq.s32.totalorder %s25, 0
      %p213 = por %p211, %p212
      %p214 = scmp.ne.s32.totalorder %s206, %s208
      %p215 = scmp.eq.s32.totalorder %s30, 1
      %p216 = por %p214, %p215
      %p217 = scmp.ne.s32.totalorder %s208, %s209
      %p218 = scmp.eq.s32.totalorder %s30, 0
      %p219 = por %p217, %p218
      %p220 = scmp.ne.s32.totalorder %s208, %s209
      %p221 = scmp.eq.s32.totalorder %s31, 1
      %p222 = por %p220, %p221
      %p224 = scmp.ne.s32.totalorder %s209, %s223
      %p225 = scmp.eq.s32.totalorder %s31, 0
      %p226 = por %p224, %p225
      %s227 = ssub.s32 %s25, %s32
      %p228 = scmp.eq.s32.totalorder %s227, 0
      %s230 = sadd.s32 %s229, 1
      %s231 = scalar_select %p228, %s229, %s230
      %p234 = pneg %p228
      %p235 = scmp.eq.s32.totalorder %s25, 1
      %p236 = por %p234, %p235
      %p237 = scmp.ne.s32.totalorder %s229, %s232
      %p238 = scmp.eq.s32.totalorder %s25, 0
      %p239 = por %p237, %p238
      %p240 = scmp.ne.s32.totalorder %s229, %s232
      %p241 = scmp.eq.s32.totalorder %s30, 1
      %p242 = por %p240, %p241
      %p243 = scmp.ne.s32.totalorder %s232, %s233
      %p244 = scmp.eq.s32.totalorder %s30, 0
      %p245 = por %p243, %p244
      %p246 = scmp.ne.s32.totalorder %s232, %s233
      %p247 = scmp.eq.s32.totalorder %s31, 1
      %p248 = por %p246, %p247
      %p250 = scmp.ne.s32.totalorder %s233, %s249
      %p251 = scmp.eq.s32.totalorder %s31, 0
      %p252 = por %p250, %p251
      %p253 = scmp.le.s32.totalorder 1, %s25
      %p254 = scmp.lt.s32.totalorder %s25, 3
      %p255 = pnand %p253, %p254
      %p256 = pneg %p255
      // Predicated region
      $region9: #{tpu_custom_call.1} parent=5 // pred_check
        _
      $region10: #{tpu_custom_call.1} parent=5 // pred_check_branch
        %258 = sbr.rel (%p255) target = $region12
      $region11: #{tpu_custom_call.1} parent=5 // pred_region
        %s259 = ssub.s32 %s25, 1
        // Predicated region
        $region13: #{tpu_custom_call.1} parent=11 // pred_check
          %p260 = pneg %p72
        $region14: #{tpu_custom_call.1} parent=11 // pred_check_branch
          %262 = sbr.rel (%p260) target = $region16
        $region15: #{tpu_custom_call.1} parent=11 // pred_region
          %s264 = ssub.s32 8192, 8192
          %265 = vsyncadd [#allocation6], %s264
          %s266 = sshll.u32 [#allocation5], 4
          %s267 = int_to_ptr.vmem [resolvable:$true] %s266
          %272 = dma.hbm_to_vmem [thread:$0]  %s1, 8192, %s267, [#allocation6], 128, 128, 8
        $region16: #{tpu_custom_call.1} parent=11 // pred_fallthru
          _
        // Predicated region
        $region17: #{tpu_custom_call.1} parent=11 // pred_check
          %p273 = pneg %p93
        $region18: #{tpu_custom_call.1} parent=11 // pred_check_branch
          %275 = sbr.rel (%p273) target = $region20
        $region19: #{tpu_custom_call.1} parent=11 // pred_region
          %s277 = ssub.s32 8192, 8192
          %278 = vsyncadd [#allocation6], %s277
          %s279 = sshll.u32 [#allocation7], 4
          %s280 = int_to_ptr.vmem [resolvable:$true] %s279
          %285 = dma.hbm_to_vmem [thread:$0]  %s2, 8192, %s280, [#allocation6], 128, 128, 8
        $region20: #{tpu_custom_call.1} parent=11 // pred_fallthru
          _
        // Predicated region
        $region21: #{tpu_custom_call.1} parent=11 // pred_check
          %p286 = pneg %p114
        $region22: #{tpu_custom_call.1} parent=11 // pred_check_branch
          %288 = sbr.rel (%p286) target = $region24
        $region23: #{tpu_custom_call.1} parent=11 // pred_region
          %s290 = ssub.s32 4096, 4096
          %291 = vsyncadd [#allocation9], %s290
          %s292 = sshll.u32 [#allocation8], 4
          %s293 = int_to_ptr.vmem [resolvable:$true] %s292
          %298 = dma.hbm_to_vmem [thread:$0]  %s3, 4096, %s293, [#allocation9], 256, 256, 16
        $region24: #{tpu_custom_call.1} parent=11 // pred_fallthru
          _
        // Predicated region
        $region25: #{tpu_custom_call.1} parent=11 // pred_check
          %p299 = pneg %p135
        $region26: #{tpu_custom_call.1} parent=11 // pred_check_branch
          %301 = sbr.rel (%p299) target = $region28
        $region27: #{tpu_custom_call.1} parent=11 // pred_region
          %s303 = ssub.s32 4096, 4096
          %304 = vsyncadd [#allocation9], %s303
          %s305 = sshll.u32 [#allocation10], 4
          %s306 = int_to_ptr.vmem [resolvable:$true] %s305
          %311 = dma.hbm_to_vmem [thread:$0]  %s4, 4096, %s306, [#allocation9], 256, 256, 16
        $region28: #{tpu_custom_call.1} parent=11 // pred_fallthru
          _
        // Predicated region
        $region29: #{tpu_custom_call.1} parent=11 // pred_check
          %p312 = pneg %p156
        $region30: #{tpu_custom_call.1} parent=11 // pred_check_branch
          %314 = sbr.rel (%p312) target = $region32
        $region31: #{tpu_custom_call.1} parent=11 // pred_region
          %s316 = ssub.s32 4096, 4096
          %317 = vsyncadd [#allocation12], %s316
          %s318 = sshll.u32 [#allocation11], 4
          %s319 = int_to_ptr.vmem [resolvable:$true] %s318
          %324 = dma.hbm_to_vmem [thread:$0]  %s5, 4096, %s319, [#allocation12], 256, 256, 16
        $region32: #{tpu_custom_call.1} parent=11 // pred_fallthru
          _
        // Predicated region
        $region33: #{tpu_custom_call.1} parent=11 // pred_check
          %p325 = pneg %p177
        $region34: #{tpu_custom_call.1} parent=11 // pred_check_branch
          %327 = sbr.rel (%p325) target = $region36
        $region35: #{tpu_custom_call.1} parent=11 // pred_region
          %s329 = ssub.s32 4096, 4096
          %330 = vsyncadd [#allocation12], %s329
          %s331 = sshll.u32 [#allocation13], 4
          %s332 = int_to_ptr.vmem [resolvable:$true] %s331
          %337 = dma.hbm_to_vmem [thread:$0]  %s6, 4096, %s332, [#allocation12], 256, 256, 16
        $region36: #{tpu_custom_call.1} parent=11 // pred_fallthru
          _
        // Predicated region
        $region37: #{tpu_custom_call.1} parent=11 // pred_check
          %p338 = pneg %p198
        $region38: #{tpu_custom_call.1} parent=11 // pred_check_branch
          %340 = sbr.rel (%p338) target = $region40
        $region39: #{tpu_custom_call.1} parent=11 // pred_region
          %s342 = ssub.s32 2048, 2048
          %343 = vsyncadd [#allocation15], %s342
          %s344 = sshll.u32 [#allocation14], 4
          %s345 = int_to_ptr.vmem [resolvable:$true] %s344
          %350 = dma.hbm_to_vmem [thread:$0]  %s7, 2048, %s345, [#allocation15], 128, 128, 8
        $region40: #{tpu_custom_call.1} parent=11 // pred_fallthru
          _
        // Predicated region
        $region41: #{tpu_custom_call.1} parent=11 // pred_check
          %p351 = pneg %p219
        $region42: #{tpu_custom_call.1} parent=11 // pred_check_branch
          %353 = sbr.rel (%p351) target = $region44
        $region43: #{tpu_custom_call.1} parent=11 // pred_region
          %s355 = ssub.s32 2048, 2048
          %356 = vsyncadd [#allocation15], %s355
          %s357 = sshll.u32 [#allocation16], 4
          %s358 = int_to_ptr.vmem [resolvable:$true] %s357
          %363 = dma.hbm_to_vmem [thread:$0]  %s8, 2048, %s358, [#allocation15], 128, 128, 8
        $region44: #{tpu_custom_call.1} parent=11 // pred_fallthru
          _
      $region12: #{tpu_custom_call.1} parent=5 // pred_fallthru
        _
      %p364 = scmp.lt.s32.totalorder %s25, 2
      // Predicated region
      $region45: #{tpu_custom_call.1} parent=5 // pred_check
        %p365 = pneg %p364
      $region46: #{tpu_custom_call.1} parent=5 // pred_check_branch
        %367 = sbr.rel (%p365) target = $region48
      $region47: #{tpu_custom_call.1} parent=5 // pred_region
        // Predicated region
        $region49: #{tpu_custom_call.1} parent=47 // pred_check
          %p368 = pneg %p45
        $region50: #{tpu_custom_call.1} parent=47 // pred_check_branch
          %370 = sbr.rel (%p368) target = $region52
        $region51: #{tpu_custom_call.1} parent=47 // pred_region
          %s371 = sand.u32 %s35, 1
          %s372 = scalar_lea.sflag [#allocation3], %s371
          %s373 = sand.u32 %s35, 1
          %s374 = smul.addr %s373, 512
          %s375 = scalar_lea.vmem [#allocation2], %s374
          %s376 = smul.u32 4, %s25
          %s378 = ssub.s32 8192, 8192
          %379 = vsyncadd %s372, %s378
          %s380 = smul.addr %s376, 16
          %s381 = smul.addr %s380, 128
          %s382 = scalar_lea.hbm %s0, %s381
          %s383 = sshll.u32 %s375, 4
          %s384 = int_to_ptr.vmem [resolvable:$true] %s383
          %389 = dma.hbm_to_vmem [thread:$0]  %s382, 8192, %s384, %s372, 128, 128, 8
        $region52: #{tpu_custom_call.1} parent=47 // pred_fallthru
          _
      $region48: #{tpu_custom_call.1} parent=5 // pred_fallthru
        _
      %p390 = scmp.le.s32.totalorder 1, %s25
      %p391 = scmp.lt.s32.totalorder %s25, 3
      %p392 = pnand %p390, %p391
      %p393 = pneg %p392
      // Predicated region
      $region53: #{tpu_custom_call.1} parent=5 // pred_check
        _
      $region54: #{tpu_custom_call.1} parent=5 // pred_check_branch
        %395 = sbr.rel (%p392) target = $region56
      $region55: #{tpu_custom_call.1} parent=5 // pred_region
        %s396 = ssub.s32 %s25, 1
        %s397 = sand.u32 %s38, 1
        %s398 = scalar_lea.sflag [#allocation3], %s397
        %s399 = sand.u32 %s38, 1
        %s400 = smul.addr %s399, 512
        %s401 = scalar_lea.vmem [#allocation2], %s400
        // Predicated region
        $region57: #{tpu_custom_call.1} parent=55 // pred_check
          %p402 = pneg %p51
        $region58: #{tpu_custom_call.1} parent=55 // pred_check_branch
          %404 = sbr.rel (%p402) target = $region60
        $region59: #{tpu_custom_call.1} parent=55 // pred_region
          %405 = dma.done %s398, 8192
        $region60: #{tpu_custom_call.1} parent=55 // pred_fallthru
          _
        // Predicated region
        $region61: #{tpu_custom_call.1} parent=55 // pred_check
          %p406 = pneg %p72
        $region62: #{tpu_custom_call.1} parent=55 // pred_check_branch
          %408 = sbr.rel (%p406) target = $region64
        $region63: #{tpu_custom_call.1} parent=55 // pred_region
          %409 = dma.done [#allocation6], 8192
        $region64: #{tpu_custom_call.1} parent=55 // pred_fallthru
          _
        // Predicated region
        $region65: #{tpu_custom_call.1} parent=55 // pred_check
          %p410 = pneg %p93
        $region66: #{tpu_custom_call.1} parent=55 // pred_check_branch
          %412 = sbr.rel (%p410) target = $region68
        $region67: #{tpu_custom_call.1} parent=55 // pred_region
          %413 = dma.done [#allocation6], 8192
        $region68: #{tpu_custom_call.1} parent=55 // pred_fallthru
          _
        // Predicated region
        $region69: #{tpu_custom_call.1} parent=55 // pred_check
          %p414 = pneg %p114
        $region70: #{tpu_custom_call.1} parent=55 // pred_check_branch
          %416 = sbr.rel (%p414) target = $region72
        $region71: #{tpu_custom_call.1} parent=55 // pred_region
          %417 = dma.done [#allocation9], 4096
        $region72: #{tpu_custom_call.1} parent=55 // pred_fallthru
          _
        // Predicated region
        $region73: #{tpu_custom_call.1} parent=55 // pred_check
          %p418 = pneg %p135
        $region74: #{tpu_custom_call.1} parent=55 // pred_check_branch
          %420 = sbr.rel (%p418) target = $region76
        $region75: #{tpu_custom_call.1} parent=55 // pred_region
          %421 = dma.done [#allocation9], 4096
        $region76: #{tpu_custom_call.1} parent=55 // pred_fallthru
          _
        // Predicated region
        $region77: #{tpu_custom_call.1} parent=55 // pred_check
          %p422 = pneg %p156
        $region78: #{tpu_custom_call.1} parent=55 // pred_check_branch
          %424 = sbr.rel (%p422) target = $region80
        $region79: #{tpu_custom_call.1} parent=55 // pred_region
          %425 = dma.done [#allocation12], 4096
        $region80: #{tpu_custom_call.1} parent=55 // pred_fallthru
          _
        // Predicated region
        $region81: #{tpu_custom_call.1} parent=55 // pred_check
          %p426 = pneg %p177
        $region82: #{tpu_custom_call.1} parent=55 // pred_check_branch
          %428 = sbr.rel (%p426) target = $region84
        $region83: #{tpu_custom_call.1} parent=55 // pred_region
          %429 = dma.done [#allocation12], 4096
        $region84: #{tpu_custom_call.1} parent=55 // pred_fallthru
          _
        // Predicated region
        $region85: #{tpu_custom_call.1} parent=55 // pred_check
          %p430 = pneg %p198
        $region86: #{tpu_custom_call.1} parent=55 // pred_check_branch
          %432 = sbr.rel (%p430) target = $region88
        $region87: #{tpu_custom_call.1} parent=55 // pred_region
          %433 = dma.done [#allocation15], 2048
        $region88: #{tpu_custom_call.1} parent=55 // pred_fallthru
          _
        // Predicated region
        $region89: #{tpu_custom_call.1} parent=55 // pred_check
          %p434 = pneg %p219
        $region90: #{tpu_custom_call.1} parent=55 // pred_check_branch
          %436 = sbr.rel (%p434) target = $region92
        $region91: #{tpu_custom_call.1} parent=55 // pred_region
          %437 = dma.done [#allocation15], 2048
        $region92: #{tpu_custom_call.1} parent=55 // pred_fallthru
          _
        %s438 = sand.u32 %s38, 1
        %s439 = scalar_lea.sflag [#allocation3], %s438
        %s440 = sand.u32 %s38, 1
        %s441 = smul.addr %s440, 512
        %s442 = scalar_lea.vmem [#allocation2], %s441
        %p443 = pneg %p51
        %p444 = pneg %p48
        %p445 = pneg %p72
        %p446 = pneg %p69
        %p447 = pneg %p93
        %p448 = pneg %p90
        %p449 = pneg %p114
        %p450 = pneg %p111
        %p451 = pneg %p135
        %p452 = pneg %p132
        %p453 = pneg %p156
        %p454 = pneg %p153
        %p455 = pneg %p177
        %p456 = pneg %p174
        %p457 = pneg %p198
        %p458 = pneg %p195
        %p459 = pneg %p219
        %p460 = pneg %p216
        %p461 = pneg %p245
        %p462 = pneg %p242
        %s463 = sand.u32 %s232, 1
        %s464 = scalar_lea.sflag [#allocation4], %s463
        %s465 = sand.u32 %s232, 1
        %s466 = smul.addr %s465, 512
        %s467 = scalar_lea.vmem [#allocation17], %s466
        %s468 = smul.u32 4, %s30
        %s469 = smul.u32 4, %s30
        %v470 = vld [vmem:[%s401] sm:$0xff]
        %v471 = vld [vmem:[%s401 + $0x8] sm:$0xff]
        %v472 = vld [vmem:[%s401 + $0x10] sm:$0xff]
        %v473 = vld [vmem:[%s401 + $0x18] sm:$0xff]
        %v474 = vld [vmem:[%s401 + $0x20] sm:$0xff]
        %v475 = vld [vmem:[%s401 + $0x28] sm:$0xff]
        %v476 = vld [vmem:[%s401 + $0x30] sm:$0xff]
        %v477 = vld [vmem:[%s401 + $0x38] sm:$0xff]
        %v478 = vld [vmem:[%s401 + $0x40] sm:$0xff]
        %v479 = vld [vmem:[%s401 + $0x48] sm:$0xff]
        %v480 = vld [vmem:[%s401 + $0x50] sm:$0xff]
        %v481 = vld [vmem:[%s401 + $0x58] sm:$0xff]
        %v482 = vld [vmem:[%s401 + $0x60] sm:$0xff]
        %v483 = vld [vmem:[%s401 + $0x68] sm:$0xff]
        %v484 = vld [vmem:[%s401 + $0x70] sm:$0xff]
        %v485 = vld [vmem:[%s401 + $0x78] sm:$0xff]
        %v486 = vld [vmem:[%s401 + $0x80] sm:$0xff]
        %v487 = vld [vmem:[%s401 + $0x88] sm:$0xff]
        %v488 = vld [vmem:[%s401 + $0x90] sm:$0xff]
        %v489 = vld [vmem:[%s401 + $0x98] sm:$0xff]
        %v490 = vld [vmem:[%s401 + $0xa0] sm:$0xff]
        %v491 = vld [vmem:[%s401 + $0xa8] sm:$0xff]
        %v492 = vld [vmem:[%s401 + $0xb0] sm:$0xff]
        %v493 = vld [vmem:[%s401 + $0xb8] sm:$0xff]
        %v494 = vld [vmem:[%s401 + $0xc0] sm:$0xff]
        %v495 = vld [vmem:[%s401 + $0xc8] sm:$0xff]
        %v496 = vld [vmem:[%s401 + $0xd0] sm:$0xff]
        %v497 = vld [vmem:[%s401 + $0xd8] sm:$0xff]
        %v498 = vld [vmem:[%s401 + $0xe0] sm:$0xff]
        %v499 = vld [vmem:[%s401 + $0xe8] sm:$0xff]
        %v500 = vld [vmem:[%s401 + $0xf0] sm:$0xff]
        %v501 = vld [vmem:[%s401 + $0xf8] sm:$0xff]
        %v502 = vld [vmem:[%s401 + $0x100] sm:$0xff]
        %v503 = vld [vmem:[%s401 + $0x108] sm:$0xff]
        %v504 = vld [vmem:[%s401 + $0x110] sm:$0xff]
        %v505 = vld [vmem:[%s401 + $0x118] sm:$0xff]
        %v506 = vld [vmem:[%s401 + $0x120] sm:$0xff]
        %v507 = vld [vmem:[%s401 + $0x128] sm:$0xff]
        %v508 = vld [vmem:[%s401 + $0x130] sm:$0xff]
        %v509 = vld [vmem:[%s401 + $0x138] sm:$0xff]
        %v510 = vld [vmem:[%s401 + $0x140] sm:$0xff]
        %v511 = vld [vmem:[%s401 + $0x148] sm:$0xff]
        %v512 = vld [vmem:[%s401 + $0x150] sm:$0xff]
        %v513 = vld [vmem:[%s401 + $0x158] sm:$0xff]
        %v514 = vld [vmem:[%s401 + $0x160] sm:$0xff]
        %v515 = vld [vmem:[%s401 + $0x168] sm:$0xff]
        %v516 = vld [vmem:[%s401 + $0x170] sm:$0xff]
        %v517 = vld [vmem:[%s401 + $0x178] sm:$0xff]
        %v518 = vld [vmem:[%s401 + $0x180] sm:$0xff]
        %v519 = vld [vmem:[%s401 + $0x188] sm:$0xff]
        %v520 = vld [vmem:[%s401 + $0x190] sm:$0xff]
        %v521 = vld [vmem:[%s401 + $0x198] sm:$0xff]
        %v522 = vld [vmem:[%s401 + $0x1a0] sm:$0xff]
        %v523 = vld [vmem:[%s401 + $0x1a8] sm:$0xff]
        %v524 = vld [vmem:[%s401 + $0x1b0] sm:$0xff]
        %v525 = vld [vmem:[%s401 + $0x1b8] sm:$0xff]
        %v526 = vld [vmem:[%s401 + $0x1c0] sm:$0xff]
        %v527 = vld [vmem:[%s401 + $0x1c8] sm:$0xff]
        %v528 = vld [vmem:[%s401 + $0x1d0] sm:$0xff]
        %v529 = vld [vmem:[%s401 + $0x1d8] sm:$0xff]
        %v530 = vld [vmem:[%s401 + $0x1e0] sm:$0xff]
        %v531 = vld [vmem:[%s401 + $0x1e8] sm:$0xff]
        %v532 = vld [vmem:[%s401 + $0x1f0] sm:$0xff]
        %v533 = vld [vmem:[%s401 + $0x1f8] sm:$0xff]
        %v534 = vld [vmem:[#allocation8] sm:$0xff]
        %v535 = vld [vmem:[#allocation8 + $0x8] sm:$0xff]
        %v536 = vld [vmem:[#allocation8 + $0x10] sm:$0xff]
        %v537 = vld [vmem:[#allocation8 + $0x18] sm:$0xff]
        %v538 = vld [vmem:[#allocation8 + $0x20] sm:$0xff]
        %v539 = vld [vmem:[#allocation8 + $0x28] sm:$0xff]
        %v540 = vld [vmem:[#allocation8 + $0x30] sm:$0xff]
        %v541 = vld [vmem:[#allocation8 + $0x38] sm:$0xff]
        %v542 = vld [vmem:[#allocation8 + $0x40] sm:$0xff]
        %v543 = vld [vmem:[#allocation8 + $0x48] sm:$0xff]
        %v544 = vld [vmem:[#allocation8 + $0x50] sm:$0xff]
        %v545 = vld [vmem:[#allocation8 + $0x58] sm:$0xff]
        %v546 = vld [vmem:[#allocation8 + $0x60] sm:$0xff]
        %v547 = vld [vmem:[#allocation8 + $0x68] sm:$0xff]
        %v548 = vld [vmem:[#allocation8 + $0x70] sm:$0xff]
        %v549 = vld [vmem:[#allocation8 + $0x78] sm:$0xff]
        %v550 = vld [vmem:[#allocation8 + $0x80] sm:$0xff]
        %v551 = vld [vmem:[#allocation8 + $0x88] sm:$0xff]
        %v552 = vld [vmem:[#allocation8 + $0x90] sm:$0xff]
        %v553 = vld [vmem:[#allocation8 + $0x98] sm:$0xff]
        %v554 = vld [vmem:[#allocation8 + $0xa0] sm:$0xff]
        %v555 = vld [vmem:[#allocation8 + $0xa8] sm:$0xff]
        %v556 = vld [vmem:[#allocation8 + $0xb0] sm:$0xff]
        %v557 = vld [vmem:[#allocation8 + $0xb8] sm:$0xff]
        %v558 = vld [vmem:[#allocation8 + $0xc0] sm:$0xff]
        %v559 = vld [vmem:[#allocation8 + $0xc8] sm:$0xff]
        %v560 = vld [vmem:[#allocation8 + $0xd0] sm:$0xff]
        %v561 = vld [vmem:[#allocation8 + $0xd8] sm:$0xff]
        %v562 = vld [vmem:[#allocation8 + $0xe0] sm:$0xff]
        %v563 = vld [vmem:[#allocation8 + $0xe8] sm:$0xff]
        %v564 = vld [vmem:[#allocation8 + $0xf0] sm:$0xff]
        %v565 = vld [vmem:[#allocation8 + $0xf8] sm:$0xff]
        %566 = vmatprep.subr.mxu0 %v565
        %567 = vmatpush1.msra.mxu0 %v564
        %568 = vmatprep.subr.mxu0 %v563
        %569 = vmatpush1.msra.mxu0 %v562
        %570 = vmatprep.subr.mxu0 %v561
        %571 = vmatpush1.msra.mxu0 %v560
        %572 = vmatprep.subr.mxu0 %v559
        %573 = vmatpush1.msra.mxu0 %v558
        %574 = vmatprep.subr.mxu0 %v557
        %575 = vmatpush1.msra.mxu0 %v556
        %576 = vmatprep.subr.mxu0 %v555
        %577 = vmatpush1.msra.mxu0 %v554
        %578 = vmatprep.subr.mxu0 %v553
        %579 = vmatpush1.msra.mxu0 %v552
        %580 = vmatprep.subr.mxu0 %v551
        %581 = vmatpush1.msra.mxu0 %v550
        %582 = vmatprep.subr.mxu0 %v549
        %583 = vmatpush1.msra.mxu0 %v548
        %584 = vmatprep.subr.mxu0 %v547
        %585 = vmatpush1.msra.mxu0 %v546
        %586 = vmatprep.subr.mxu0 %v545
        %587 = vmatpush1.msra.mxu0 %v544
        %588 = vmatprep.subr.mxu0 %v543
        %589 = vmatpush1.msra.mxu0 %v542
        %590 = vmatprep.subr.mxu0 %v541
        %591 = vmatpush1.msra.mxu0 %v540
        %592 = vmatprep.subr.mxu0 %v539
        %593 = vmatpush1.msra.mxu0 %v538
        %594 = vmatprep.subr.mxu0 %v537
        %595 = vmatpush1.msra.mxu0 %v536
        %596 = vmatprep.subr.mxu0 %v535
        %597 = vmatpush1.msra.mxu0 %v534
        %598 = vmatprep.subr.mxu0 0.0
        %599 = vmatpush2.msra.mxu0 0.0
        %600 = vmatprep.subr.mxu0 0.0
        %601 = vmatpush2.msra.mxu0 0.0
        %602 = vmatprep.subr.mxu0 0.0
        %603 = vmatpush2.msra.mxu0 0.0
        %604 = vmatprep.subr.mxu0 0.0
        %605 = vmatpush2.msra.mxu0 0.0
        %606 = vmatprep.subr.mxu0 0.0
        %607 = vmatpush2.msra.mxu0 0.0
        %608 = vmatprep.subr.mxu0 0.0
        %609 = vmatpush2.msra.mxu0 0.0
        %610 = vmatprep.subr.mxu0 0.0
        %611 = vmatpush2.msra.mxu0 0.0
        %612 = vmatprep.subr.mxu0 0.0
        %613 = vmatpush2.msra.mxu0 0.0
        %614 = vmatprep.subr.mxu0 0.0
        %615 = vmatpush2.msra.mxu0 0.0
        %616 = vmatprep.subr.mxu0 0.0
        %617 = vmatpush2.msra.mxu0 0.0
        %618 = vmatprep.subr.mxu0 0.0
        %619 = vmatpush2.msra.mxu0 0.0
        %620 = vmatprep.subr.mxu0 0.0
        %621 = vmatpush2.msra.mxu0 0.0
        %622 = vmatprep.subr.mxu0 0.0
        %623 = vmatpush2.msra.mxu0 0.0
        %624 = vmatprep.subr.mxu0 0.0
        %625 = vmatpush2.msra.mxu0 0.0
        %626 = vmatprep.subr.mxu0 0.0
        %627 = vmatpush2.msra.mxu0 0.0
        %628 = vmatprep.subr.mxu0 0.0
        %629 = vmatpush2.msra.mxu0 0.0
        %630 = vmatprep.mubr.f32.mxu0 0.0
        %631 = vmatmul.mubr.f32.gmra.mxu0 %v470
        %v632 = vpop.f32.mrf.mxu0
        %v633 = vadd.f32 0.0, %v632
        %v634 = vpop.f32.mrf.mxu0
        %v635 = vadd.f32 0.0, %v634
        %636 = vmatprep.mubr.f32.mxu0 0.0
        %637 = vmatmul.mubr.f32.gmra.mxu0 %v471
        %v638 = vpop.f32.mrf.mxu0
        %v639 = vadd.f32 0.0, %v638
        %v640 = vpop.f32.mrf.mxu0
        %v641 = vadd.f32 0.0, %v640
        %642 = vmatprep.mubr.f32.mxu0 0.0
        %643 = vmatmul.mubr.f32.gmra.mxu0 %v472
        %v644 = vpop.f32.mrf.mxu0
        %v645 = vadd.f32 0.0, %v644
        %v646 = vpop.f32.mrf.mxu0
        %v647 = vadd.f32 0.0, %v646
        %648 = vmatprep.mubr.f32.mxu0 0.0
        %649 = vmatmul.mubr.f32.gmra.mxu0 %v473
        %v650 = vpop.f32.mrf.mxu0
        %v651 = vadd.f32 0.0, %v650
        %v652 = vpop.f32.mrf.mxu0
        %v653 = vadd.f32 0.0, %v652
        %654 = vmatprep.mubr.f32.mxu0 0.0
        %655 = vmatmul.mubr.f32.gmra.mxu0 %v474
        %v656 = vpop.f32.mrf.mxu0
        %v657 = vadd.f32 0.0, %v656
        %v658 = vpop.f32.mrf.mxu0
        %v659 = vadd.f32 0.0, %v658
        %660 = vmatprep.mubr.f32.mxu0 0.0
        %661 = vmatmul.mubr.f32.gmra.mxu0 %v475
        %v662 = vpop.f32.mrf.mxu0
        %v663 = vadd.f32 0.0, %v662
        %v664 = vpop.f32.mrf.mxu0
        %v665 = vadd.f32 0.0, %v664
        %666 = vmatprep.mubr.f32.mxu0 0.0
        %667 = vmatmul.mubr.f32.gmra.mxu0 %v476
        %v668 = vpop.f32.mrf.mxu0
        %v669 = vadd.f32 0.0, %v668
        %v670 = vpop.f32.mrf.mxu0
        %v671 = vadd.f32 0.0, %v670
        %672 = vmatprep.mubr.f32.mxu0 0.0
        %673 = vmatmul.mubr.f32.gmra.mxu0 %v477
        %v674 = vpop.f32.mrf.mxu0
        %v675 = vadd.f32 0.0, %v674
        %v676 = vpop.f32.mrf.mxu0
        %v677 = vadd.f32 0.0, %v676
        %678 = vmatprep.mubr.f32.mxu0 0.0
        %679 = vmatmul.mubr.f32.gmra.mxu0 %v478
        %v680 = vpop.f32.mrf.mxu0
        %v681 = vadd.f32 0.0, %v680
        %v682 = vpop.f32.mrf.mxu0
        %v683 = vadd.f32 0.0, %v682
        %684 = vmatprep.mubr.f32.mxu0 0.0
        %685 = vmatmul.mubr.f32.gmra.mxu0 %v479
        %v686 = vpop.f32.mrf.mxu0
        %v687 = vadd.f32 0.0, %v686
        %v688 = vpop.f32.mrf.mxu0
        %v689 = vadd.f32 0.0, %v688
        %690 = vmatprep.mubr.f32.mxu0 0.0
        %691 = vmatmul.mubr.f32.gmra.mxu0 %v480
        %v692 = vpop.f32.mrf.mxu0
        %v693 = vadd.f32 0.0, %v692
        %v694 = vpop.f32.mrf.mxu0
        %v695 = vadd.f32 0.0, %v694
        %696 = vmatprep.mubr.f32.mxu0 0.0
        %697 = vmatmul.mubr.f32.gmra.mxu0 %v481
        %v698 = vpop.f32.mrf.mxu0
        %v699 = vadd.f32 0.0, %v698
        %v700 = vpop.f32.mrf.mxu0
        %v701 = vadd.f32 0.0, %v700
        %702 = vmatprep.mubr.f32.mxu0 0.0
        %703 = vmatmul.mubr.f32.gmra.mxu0 %v482
        %v704 = vpop.f32.mrf.mxu0
        %v705 = vadd.f32 0.0, %v704
        %v706 = vpop.f32.mrf.mxu0
        %v707 = vadd.f32 0.0, %v706
        %708 = vmatprep.mubr.f32.mxu0 0.0
        %709 = vmatmul.mubr.f32.gmra.mxu0 %v483
        %v710 = vpop.f32.mrf.mxu0
        %v711 = vadd.f32 0.0, %v710
        %v712 = vpop.f32.mrf.mxu0
        %v713 = vadd.f32 0.0, %v712
        %714 = vmatprep.mubr.f32.mxu0 0.0
        %715 = vmatmul.mubr.f32.gmra.mxu0 %v484
        %v716 = vpop.f32.mrf.mxu0
        %v717 = vadd.f32 0.0, %v716
        %v718 = vpop.f32.mrf.mxu0
        %v719 = vadd.f32 0.0, %v718
        %720 = vmatprep.mubr.f32.mxu0 0.0
        %721 = vmatmul.mubr.f32.gmra.mxu0 %v485
        %v722 = vpop.f32.mrf.mxu0
        %v723 = vadd.f32 0.0, %v722
        %v724 = vpop.f32.mrf.mxu0
        %v725 = vadd.f32 0.0, %v724
        %726 = vmatprep.mubr.f32.mxu0 0.0
        %727 = vmatmul.mubr.f32.gmra.mxu0 %v486
        %v728 = vpop.f32.mrf.mxu0
        %v729 = vadd.f32 0.0, %v728
        %v730 = vpop.f32.mrf.mxu0
        %v731 = vadd.f32 0.0, %v730
        %732 = vmatprep.mubr.f32.mxu0 0.0
        %733 = vmatmul.mubr.f32.gmra.mxu0 %v487
        %v734 = vpop.f32.mrf.mxu0
        %v735 = vadd.f32 0.0, %v734
        %v736 = vpop.f32.mrf.mxu0
        %v737 = vadd.f32 0.0, %v736
        %738 = vmatprep.mubr.f32.mxu0 0.0
        %739 = vmatmul.mubr.f32.gmra.mxu0 %v488
        %v740 = vpop.f32.mrf.mxu0
        %v741 = vadd.f32 0.0, %v740
        %v742 = vpop.f32.mrf.mxu0
        %v743 = vadd.f32 0.0, %v742
        %744 = vmatprep.mubr.f32.mxu0 0.0
        %745 = vmatmul.mubr.f32.gmra.mxu0 %v489
        %v746 = vpop.f32.mrf.mxu0
        %v747 = vadd.f32 0.0, %v746
        %v748 = vpop.f32.mrf.mxu0
        %v749 = vadd.f32 0.0, %v748
        %750 = vmatprep.mubr.f32.mxu0 0.0
        %751 = vmatmul.mubr.f32.gmra.mxu0 %v490
        %v752 = vpop.f32.mrf.mxu0
        %v753 = vadd.f32 0.0, %v752
        %v754 = vpop.f32.mrf.mxu0
        %v755 = vadd.f32 0.0, %v754
        %756 = vmatprep.mubr.f32.mxu0 0.0
        %757 = vmatmul.mubr.f32.gmra.mxu0 %v491
        %v758 = vpop.f32.mrf.mxu0
        %v759 = vadd.f32 0.0, %v758
        %v760 = vpop.f32.mrf.mxu0
        %v761 = vadd.f32 0.0, %v760
        %762 = vmatprep.mubr.f32.mxu0 0.0
        %763 = vmatmul.mubr.f32.gmra.mxu0 %v492
        %v764 = vpop.f32.mrf.mxu0
        %v765 = vadd.f32 0.0, %v764
        %v766 = vpop.f32.mrf.mxu0
        %v767 = vadd.f32 0.0, %v766
        %768 = vmatprep.mubr.f32.mxu0 0.0
        %769 = vmatmul.mubr.f32.gmra.mxu0 %v493
        %v770 = vpop.f32.mrf.mxu0
        %v771 = vadd.f32 0.0, %v770
        %v772 = vpop.f32.mrf.mxu0
        %v773 = vadd.f32 0.0, %v772
        %774 = vmatprep.mubr.f32.mxu0 0.0
        %775 = vmatmul.mubr.f32.gmra.mxu0 %v494
        %v776 = vpop.f32.mrf.mxu0
        %v777 = vadd.f32 0.0, %v776
        %v778 = vpop.f32.mrf.mxu0
        %v779 = vadd.f32 0.0, %v778
        %780 = vmatprep.mubr.f32.mxu0 0.0
        %781 = vmatmul.mubr.f32.gmra.mxu0 %v495
        %v782 = vpop.f32.mrf.mxu0
        %v783 = vadd.f32 0.0, %v782
        %v784 = vpop.f32.mrf.mxu0
        %v785 = vadd.f32 0.0, %v784
        %786 = vmatprep.mubr.f32.mxu0 0.0
        %787 = vmatmul.mubr.f32.gmra.mxu0 %v496
        %v788 = vpop.f32.mrf.mxu0
        %v789 = vadd.f32 0.0, %v788
        %v790 = vpop.f32.mrf.mxu0
        %v791 = vadd.f32 0.0, %v790
        %792 = vmatprep.mubr.f32.mxu0 0.0
        %793 = vmatmul.mubr.f32.gmra.mxu0 %v497
        %v794 = vpop.f32.mrf.mxu0
        %v795 = vadd.f32 0.0, %v794
        %v796 = vpop.f32.mrf.mxu0
        %v797 = vadd.f32 0.0, %v796
        %798 = vmatprep.mubr.f32.mxu0 0.0
        %799 = vmatmul.mubr.f32.gmra.mxu0 %v498
        %v800 = vpop.f32.mrf.mxu0
        %v801 = vadd.f32 0.0, %v800
        %v802 = vpop.f32.mrf.mxu0
        %v803 = vadd.f32 0.0, %v802
        %804 = vmatprep.mubr.f32.mxu0 0.0
        %805 = vmatmul.mubr.f32.gmra.mxu0 %v499
        %v806 = vpop.f32.mrf.mxu0
        %v807 = vadd.f32 0.0, %v806
        %v808 = vpop.f32.mrf.mxu0
        %v809 = vadd.f32 0.0, %v808
        %810 = vmatprep.mubr.f32.mxu0 0.0
        %811 = vmatmul.mubr.f32.gmra.mxu0 %v500
        %v812 = vpop.f32.mrf.mxu0
        %v813 = vadd.f32 0.0, %v812
        %v814 = vpop.f32.mrf.mxu0
        %v815 = vadd.f32 0.0, %v814
        %816 = vmatprep.mubr.f32.mxu0 0.0
        %817 = vmatmul.mubr.f32.gmra.mxu0 %v501
        %v818 = vpop.f32.mrf.mxu0
        %v819 = vadd.f32 0.0, %v818
        %v820 = vpop.f32.mrf.mxu0
        %v821 = vadd.f32 0.0, %v820
        %822 = vmatprep.mubr.f32.mxu0 0.0
        %823 = vmatmul.mubr.f32.gmra.mxu0 %v502
        %v824 = vpop.f32.mrf.mxu0
        %v825 = vadd.f32 0.0, %v824
        %v826 = vpop.f32.mrf.mxu0
        %v827 = vadd.f32 0.0, %v826
        %828 = vmatprep.mubr.f32.mxu0 0.0
        %829 = vmatmul.mubr.f32.gmra.mxu0 %v503
        %v830 = vpop.f32.mrf.mxu0
        %v831 = vadd.f32 0.0, %v830
        %v832 = vpop.f32.mrf.mxu0
        %v833 = vadd.f32 0.0, %v832
        %834 = vmatprep.mubr.f32.mxu0 0.0
        %835 = vmatmul.mubr.f32.gmra.mxu0 %v504
        %v836 = vpop.f32.mrf.mxu0
        %v837 = vadd.f32 0.0, %v836
        %v838 = vpop.f32.mrf.mxu0
        %v839 = vadd.f32 0.0, %v838
        %840 = vmatprep.mubr.f32.mxu0 0.0
        %841 = vmatmul.mubr.f32.gmra.mxu0 %v505
        %v842 = vpop.f32.mrf.mxu0
        %v843 = vadd.f32 0.0, %v842
        %v844 = vpop.f32.mrf.mxu0
        %v845 = vadd.f32 0.0, %v844
        %846 = vmatprep.mubr.f32.mxu0 0.0
        %847 = vmatmul.mubr.f32.gmra.mxu0 %v506
        %v848 = vpop.f32.mrf.mxu0
        %v849 = vadd.f32 0.0, %v848
        %v850 = vpop.f32.mrf.mxu0
        %v851 = vadd.f32 0.0, %v850
        %852 = vmatprep.mubr.f32.mxu0 0.0
        %853 = vmatmul.mubr.f32.gmra.mxu0 %v507
        %v854 = vpop.f32.mrf.mxu0
        %v855 = vadd.f32 0.0, %v854
        %v856 = vpop.f32.mrf.mxu0
        %v857 = vadd.f32 0.0, %v856
        %858 = vmatprep.mubr.f32.mxu0 0.0
        %859 = vmatmul.mubr.f32.gmra.mxu0 %v508
        %v860 = vpop.f32.mrf.mxu0
        %v861 = vadd.f32 0.0, %v860
        %v862 = vpop.f32.mrf.mxu0
        %v863 = vadd.f32 0.0, %v862
        %864 = vmatprep.mubr.f32.mxu0 0.0
        %865 = vmatmul.mubr.f32.gmra.mxu0 %v509
        %v866 = vpop.f32.mrf.mxu0
        %v867 = vadd.f32 0.0, %v866
        %v868 = vpop.f32.mrf.mxu0
        %v869 = vadd.f32 0.0, %v868
        %870 = vmatprep.mubr.f32.mxu0 0.0
        %871 = vmatmul.mubr.f32.gmra.mxu0 %v510
        %v872 = vpop.f32.mrf.mxu0
        %v873 = vadd.f32 0.0, %v872
        %v874 = vpop.f32.mrf.mxu0
        %v875 = vadd.f32 0.0, %v874
        %876 = vmatprep.mubr.f32.mxu0 0.0
        %877 = vmatmul.mubr.f32.gmra.mxu0 %v511
        %v878 = vpop.f32.mrf.mxu0
        %v879 = vadd.f32 0.0, %v878
        %v880 = vpop.f32.mrf.mxu0
        %v881 = vadd.f32 0.0, %v880
        %882 = vmatprep.mubr.f32.mxu0 0.0
        %883 = vmatmul.mubr.f32.gmra.mxu0 %v512
        %v884 = vpop.f32.mrf.mxu0
        %v885 = vadd.f32 0.0, %v884
        %v886 = vpop.f32.mrf.mxu0
        %v887 = vadd.f32 0.0, %v886
        %888 = vmatprep.mubr.f32.mxu0 0.0
        %889 = vmatmul.mubr.f32.gmra.mxu0 %v513
        %v890 = vpop.f32.mrf.mxu0
        %v891 = vadd.f32 0.0, %v890
        %v892 = vpop.f32.mrf.mxu0
        %v893 = vadd.f32 0.0, %v892
        %894 = vmatprep.mubr.f32.mxu0 0.0
        %895 = vmatmul.mubr.f32.gmra.mxu0 %v514
        %v896 = vpop.f32.mrf.mxu0
        %v897 = vadd.f32 0.0, %v896
        %v898 = vpop.f32.mrf.mxu0
        %v899 = vadd.f32 0.0, %v898
        %900 = vmatprep.mubr.f32.mxu0 0.0
        %901 = vmatmul.mubr.f32.gmra.mxu0 %v515
        %v902 = vpop.f32.mrf.mxu0
        %v903 = vadd.f32 0.0, %v902
        %v904 = vpop.f32.mrf.mxu0
        %v905 = vadd.f32 0.0, %v904
        %906 = vmatprep.mubr.f32.mxu0 0.0
        %907 = vmatmul.mubr.f32.gmra.mxu0 %v516
        %v908 = vpop.f32.mrf.mxu0
        %v909 = vadd.f32 0.0, %v908
        %v910 = vpop.f32.mrf.mxu0
        %v911 = vadd.f32 0.0, %v910
        %912 = vmatprep.mubr.f32.mxu0 0.0
        %913 = vmatmul.mubr.f32.gmra.mxu0 %v517
        %v914 = vpop.f32.mrf.mxu0
        %v915 = vadd.f32 0.0, %v914
        %v916 = vpop.f32.mrf.mxu0
        %v917 = vadd.f32 0.0, %v916
        %918 = vmatprep.mubr.f32.mxu0 0.0
        %919 = vmatmul.mubr.f32.gmra.mxu0 %v518
        %v920 = vpop.f32.mrf.mxu0
        %v921 = vadd.f32 0.0, %v920
        %v922 = vpop.f32.mrf.mxu0
        %v923 = vadd.f32 0.0, %v922
        %924 = vmatprep.mubr.f32.mxu0 0.0
        %925 = vmatmul.mubr.f32.gmra.mxu0 %v519
        %v926 = vpop.f32.mrf.mxu0
        %v927 = vadd.f32 0.0, %v926
        %v928 = vpop.f32.mrf.mxu0
        %v929 = vadd.f32 0.0, %v928
        %930 = vmatprep.mubr.f32.mxu0 0.0
        %931 = vmatmul.mubr.f32.gmra.mxu0 %v520
        %v932 = vpop.f32.mrf.mxu0
        %v933 = vadd.f32 0.0, %v932
        %v934 = vpop.f32.mrf.mxu0
        %v935 = vadd.f32 0.0, %v934
        %936 = vmatprep.mubr.f32.mxu0 0.0
        %937 = vmatmul.mubr.f32.gmra.mxu0 %v521
        %v938 = vpop.f32.mrf.mxu0
        %v939 = vadd.f32 0.0, %v938
        %v940 = vpop.f32.mrf.mxu0
        %v941 = vadd.f32 0.0, %v940
        %942 = vmatprep.mubr.f32.mxu0 0.0
        %943 = vmatmul.mubr.f32.gmra.mxu0 %v522
        %v944 = vpop.f32.mrf.mxu0
        %v945 = vadd.f32 0.0, %v944
        %v946 = vpop.f32.mrf.mxu0
        %v947 = vadd.f32 0.0, %v946
        %948 = vmatprep.mubr.f32.mxu0 0.0
        %949 = vmatmul.mubr.f32.gmra.mxu0 %v523
        %v950 = vpop.f32.mrf.mxu0
        %v951 = vadd.f32 0.0, %v950
        %v952 = vpop.f32.mrf.mxu0
        %v953 = vadd.f32 0.0, %v952
        %954 = vmatprep.mubr.f32.mxu0 0.0
        %955 = vmatmul.mubr.f32.gmra.mxu0 %v524
        %v956 = vpop.f32.mrf.mxu0
        %v957 = vadd.f32 0.0, %v956
        %v958 = vpop.f32.mrf.mxu0
        %v959 = vadd.f32 0.0, %v958
        %960 = vmatprep.mubr.f32.mxu0 0.0
        %961 = vmatmul.mubr.f32.gmra.mxu0 %v525
        %v962 = vpop.f32.mrf.mxu0
        %v963 = vadd.f32 0.0, %v962
        %v964 = vpop.f32.mrf.mxu0
        %v965 = vadd.f32 0.0, %v964
        %966 = vmatprep.mubr.f32.mxu0 0.0
        %967 = vmatmul.mubr.f32.gmra.mxu0 %v526
        %v968 = vpop.f32.mrf.mxu0
        %v969 = vadd.f32 0.0, %v968
        %v970 = vpop.f32.mrf.mxu0
        %v971 = vadd.f32 0.0, %v970
        %972 = vmatprep.mubr.f32.mxu0 0.0
        %973 = vmatmul.mubr.f32.gmra.mxu0 %v527
        %v974 = vpop.f32.mrf.mxu0
        %v975 = vadd.f32 0.0, %v974
        %v976 = vpop.f32.mrf.mxu0
        %v977 = vadd.f32 0.0, %v976
        %978 = vmatprep.mubr.f32.mxu0 0.0
        %979 = vmatmul.mubr.f32.gmra.mxu0 %v528
        %v980 = vpop.f32.mrf.mxu0
        %v981 = vadd.f32 0.0, %v980
        %v982 = vpop.f32.mrf.mxu0
        %v983 = vadd.f32 0.0, %v982
        %984 = vmatprep.mubr.f32.mxu0 0.0
        %985 = vmatmul.mubr.f32.gmra.mxu0 %v529
        %v986 = vpop.f32.mrf.mxu0
        %v987 = vadd.f32 0.0, %v986
        %v988 = vpop.f32.mrf.mxu0
        %v989 = vadd.f32 0.0, %v988
        %990 = vmatprep.mubr.f32.mxu0 0.0
        %991 = vmatmul.mubr.f32.gmra.mxu0 %v530
        %v992 = vpop.f32.mrf.mxu0
        %v993 = vadd.f32 0.0, %v992
        %v994 = vpop.f32.mrf.mxu0
        %v995 = vadd.f32 0.0, %v994
        %996 = vmatprep.mubr.f32.mxu0 0.0
        %997 = vmatmul.mubr.f32.gmra.mxu0 %v531
        %v998 = vpop.f32.mrf.mxu0
        %v999 = vadd.f32 0.0, %v998
        %v1000 = vpop.f32.mrf.mxu0
        %v1001 = vadd.f32 0.0, %v1000
        %1002 = vmatprep.mubr.f32.mxu0 0.0
        %1003 = vmatmul.mubr.f32.gmra.mxu0 %v532
        %v1004 = vpop.f32.mrf.mxu0
        %v1005 = vadd.f32 0.0, %v1004
        %v1006 = vpop.f32.mrf.mxu0
        %v1007 = vadd.f32 0.0, %v1006
        %1008 = vmatprep.mubr.f32.mxu0 0.0
        %1009 = vmatmul.mubr.f32.gmra.mxu0 %v533
        %v1010 = vpop.f32.mrf.mxu0
        %v1011 = vadd.f32 0.0, %v1010
        %v1012 = vpop.f32.mrf.mxu0
        %v1013 = vadd.f32 0.0, %v1012
        %1014 = vdwg.mxu0
        %1015 = vxpose.xlu0.b32.start [1/16] %v633, 128
        %1016 = vxpose.xlu0.b32.cont [2/16] %v639, 128
        %1017 = vxpose.xlu0.b32.cont [3/16] %v645, 128
        %1018 = vxpose.xlu0.b32.cont [4/16] %v651, 128
        %1019 = vxpose.xlu0.b32.cont [5/16] %v657, 128
        %1020 = vxpose.xlu0.b32.cont [6/16] %v663, 128
        %1021 = vxpose.xlu0.b32.cont [7/16] %v669, 128
        %1022 = vxpose.xlu0.b32.cont [8/16] %v675, 128
        %1023 = vxpose.xlu0.b32.cont [9/16] %v681, 128
        %1024 = vxpose.xlu0.b32.cont [10/16] %v687, 128
        %1025 = vxpose.xlu0.b32.cont [11/16] %v693, 128
        %1026 = vxpose.xlu0.b32.cont [12/16] %v699, 128
        %1027 = vxpose.xlu0.b32.cont [13/16] %v705, 128
        %1028 = vxpose.xlu0.b32.cont [14/16] %v711, 128
        %1029 = vxpose.xlu0.b32.cont [15/16] %v717, 128
        %1030 = vxpose.xlu0.b32.end [16/16] %v723, 128
        %v1031 = vpop.trf.xlu0
        %v1032 = vpop.trf.xlu0
        %v1033 = vpop.trf.xlu0
        %v1034 = vpop.trf.xlu0
        %v1035 = vpop.trf.xlu0
        %v1036 = vpop.trf.xlu0
        %v1037 = vpop.trf.xlu0
        %v1038 = vpop.trf.xlu0
        %v1039 = vpop.trf.xlu0
        %v1040 = vpop.trf.xlu0
        %v1041 = vpop.trf.xlu0
        %v1042 = vpop.trf.xlu0
        %v1043 = vpop.trf.xlu0
        %v1044 = vpop.trf.xlu0
        %v1045 = vpop.trf.xlu0
        %v1046 = vpop.trf.xlu0
        %1047 = vxpose.xlu0.b32.start [1/16] %v635, 128
        %1048 = vxpose.xlu0.b32.cont [2/16] %v641, 128
        %1049 = vxpose.xlu0.b32.cont [3/16] %v647, 128
        %1050 = vxpose.xlu0.b32.cont [4/16] %v653, 128
        %1051 = vxpose.xlu0.b32.cont [5/16] %v659, 128
        %1052 = vxpose.xlu0.b32.cont [6/16] %v665, 128
        %1053 = vxpose.xlu0.b32.cont [7/16] %v671, 128
        %1054 = vxpose.xlu0.b32.cont [8/16] %v677, 128
        %1055 = vxpose.xlu0.b32.cont [9/16] %v683, 128
        %1056 = vxpose.xlu0.b32.cont [10/16] %v689, 128
        %1057 = vxpose.xlu0.b32.cont [11/16] %v695, 128
        %1058 = vxpose.xlu0.b32.cont [12/16] %v701, 128
        %1059 = vxpose.xlu0.b32.cont [13/16] %v707, 128
        %1060 = vxpose.xlu0.b32.cont [14/16] %v713, 128
        %1061 = vxpose.xlu0.b32.cont [15/16] %v719, 128
        %1062 = vxpose.xlu0.b32.end [16/16] %v725, 128
        %v1063 = vpop.trf.xlu0
        %v1064 = vpop.trf.xlu0
        %v1065 = vpop.trf.xlu0
        %v1066 = vpop.trf.xlu0
        %v1067 = vpop.trf.xlu0
        %v1068 = vpop.trf.xlu0
        %v1069 = vpop.trf.xlu0
        %v1070 = vpop.trf.xlu0
        %v1071 = vpop.trf.xlu0
        %v1072 = vpop.trf.xlu0
        %v1073 = vpop.trf.xlu0
        %v1074 = vpop.trf.xlu0
        %v1075 = vpop.trf.xlu0
        %v1076 = vpop.trf.xlu0
        %v1077 = vpop.trf.xlu0
        %v1078 = vpop.trf.xlu0
        %1079 = vxpose.xlu0.b32.start [1/16] %v729, 128
        %1080 = vxpose.xlu0.b32.cont [2/16] %v735, 128
        %1081 = vxpose.xlu0.b32.cont [3/16] %v741, 128
        %1082 = vxpose.xlu0.b32.cont [4/16] %v747, 128
        %1083 = vxpose.xlu0.b32.cont [5/16] %v753, 128
        %1084 = vxpose.xlu0.b32.cont [6/16] %v759, 128
        %1085 = vxpose.xlu0.b32.cont [7/16] %v765, 128
        %1086 = vxpose.xlu0.b32.cont [8/16] %v771, 128
        %1087 = vxpose.xlu0.b32.cont [9/16] %v777, 128
        %1088 = vxpose.xlu0.b32.cont [10/16] %v783, 128
        %1089 = vxpose.xlu0.b32.cont [11/16] %v789, 128
        %1090 = vxpose.xlu0.b32.cont [12/16] %v795, 128
        %1091 = vxpose.xlu0.b32.cont [13/16] %v801, 128
        %1092 = vxpose.xlu0.b32.cont [14/16] %v807, 128
        %1093 = vxpose.xlu0.b32.cont [15/16] %v813, 128
        %1094 = vxpose.xlu0.b32.end [16/16] %v819, 128
        %v1095 = vpop.trf.xlu0
        %v1096 = vpop.trf.xlu0
        %v1097 = vpop.trf.xlu0
        %v1098 = vpop.trf.xlu0
        %v1099 = vpop.trf.xlu0
        %v1100 = vpop.trf.xlu0
        %v1101 = vpop.trf.xlu0
        %v1102 = vpop.trf.xlu0
        %v1103 = vpop.trf.xlu0
        %v1104 = vpop.trf.xlu0
        %v1105 = vpop.trf.xlu0
        %v1106 = vpop.trf.xlu0
        %v1107 = vpop.trf.xlu0
        %v1108 = vpop.trf.xlu0
        %v1109 = vpop.trf.xlu0
        %v1110 = vpop.trf.xlu0
        %1111 = vxpose.xlu0.b32.start [1/16] %v731, 128
        %1112 = vxpose.xlu0.b32.cont [2/16] %v737, 128
        %1113 = vxpose.xlu0.b32.cont [3/16] %v743, 128
        %1114 = vxpose.xlu0.b32.cont [4/16] %v749, 128
        %1115 = vxpose.xlu0.b32.cont [5/16] %v755, 128
        %1116 = vxpose.xlu0.b32.cont [6/16] %v761, 128
        %1117 = vxpose.xlu0.b32.cont [7/16] %v767, 128
        %1118 = vxpose.xlu0.b32.cont [8/16] %v773, 128
        %1119 = vxpose.xlu0.b32.cont [9/16] %v779, 128
        %1120 = vxpose.xlu0.b32.cont [10/16] %v785, 128
        %1121 = vxpose.xlu0.b32.cont [11/16] %v791, 128
        %1122 = vxpose.xlu0.b32.cont [12/16] %v797, 128
        %1123 = vxpose.xlu0.b32.cont [13/16] %v803, 128
        %1124 = vxpose.xlu0.b32.cont [14/16] %v809, 128
        %1125 = vxpose.xlu0.b32.cont [15/16] %v815, 128
        %1126 = vxpose.xlu0.b32.end [16/16] %v821, 128
        %v1127 = vpop.trf.xlu0
        %v1128 = vpop.trf.xlu0
        %v1129 = vpop.trf.xlu0
        %v1130 = vpop.trf.xlu0
        %v1131 = vpop.trf.xlu0
        %v1132 = vpop.trf.xlu0
        %v1133 = vpop.trf.xlu0
        %v1134 = vpop.trf.xlu0
        %v1135 = vpop.trf.xlu0
        %v1136 = vpop.trf.xlu0
        %v1137 = vpop.trf.xlu0
        %v1138 = vpop.trf.xlu0
        %v1139 = vpop.trf.xlu0
        %v1140 = vpop.trf.xlu0
        %v1141 = vpop.trf.xlu0
        %v1142 = vpop.trf.xlu0
        %1143 = vxpose.xlu0.b32.start [1/16] %v825, 128
        %1144 = vxpose.xlu0.b32.cont [2/16] %v831, 128
        %1145 = vxpose.xlu0.b32.cont [3/16] %v837, 128
        %1146 = vxpose.xlu0.b32.cont [4/16] %v843, 128
        %1147 = vxpose.xlu0.b32.cont [5/16] %v849, 128
        %1148 = vxpose.xlu0.b32.cont [6/16] %v855, 128
        %1149 = vxpose.xlu0.b32.cont [7/16] %v861, 128
        %1150 = vxpose.xlu0.b32.cont [8/16] %v867, 128
        %1151 = vxpose.xlu0.b32.cont [9/16] %v873, 128
        %1152 = vxpose.xlu0.b32.cont [10/16] %v879, 128
        %1153 = vxpose.xlu0.b32.cont [11/16] %v885, 128
        %1154 = vxpose.xlu0.b32.cont [12/16] %v891, 128
        %1155 = vxpose.xlu0.b32.cont [13/16] %v897, 128
        %1156 = vxpose.xlu0.b32.cont [14/16] %v903, 128
        %1157 = vxpose.xlu0.b32.cont [15/16] %v909, 128
        %1158 = vxpose.xlu0.b32.end [16/16] %v915, 128
        %v1159 = vpop.trf.xlu0
        %v1160 = vpop.trf.xlu0
        %v1161 = vpop.trf.xlu0
        %v1162 = vpop.trf.xlu0
        %v1163 = vpop.trf.xlu0
        %v1164 = vpop.trf.xlu0
        %v1165 = vpop.trf.xlu0
        %v1166 = vpop.trf.xlu0
        %v1167 = vpop.trf.xlu0
        %v1168 = vpop.trf.xlu0
        %v1169 = vpop.trf.xlu0
        %v1170 = vpop.trf.xlu0
        %v1171 = vpop.trf.xlu0
        %v1172 = vpop.trf.xlu0
        %v1173 = vpop.trf.xlu0
        %v1174 = vpop.trf.xlu0
        %1175 = vxpose.xlu0.b32.start [1/16] %v827, 128
        %1176 = vxpose.xlu0.b32.cont [2/16] %v833, 128
        %1177 = vxpose.xlu0.b32.cont [3/16] %v839, 128
        %1178 = vxpose.xlu0.b32.cont [4/16] %v845, 128
        %1179 = vxpose.xlu0.b32.cont [5/16] %v851, 128
        %1180 = vxpose.xlu0.b32.cont [6/16] %v857, 128
        %1181 = vxpose.xlu0.b32.cont [7/16] %v863, 128
        %1182 = vxpose.xlu0.b32.cont [8/16] %v869, 128
        %1183 = vxpose.xlu0.b32.cont [9/16] %v875, 128
        %1184 = vxpose.xlu0.b32.cont [10/16] %v881, 128
        %1185 = vxpose.xlu0.b32.cont [11/16] %v887, 128
        %1186 = vxpose.xlu0.b32.cont [12/16] %v893, 128
        %1187 = vxpose.xlu0.b32.cont [13/16] %v899, 128
        %1188 = vxpose.xlu0.b32.cont [14/16] %v905, 128
        %1189 = vxpose.xlu0.b32.cont [15/16] %v911, 128
        %1190 = vxpose.xlu0.b32.end [16/16] %v917, 128
        %v1191 = vpop.trf.xlu0
        %v1192 = vpop.trf.xlu0
        %v1193 = vpop.trf.xlu0
        %v1194 = vpop.trf.xlu0
        %v1195 = vpop.trf.xlu0
        %v1196 = vpop.trf.xlu0
        %v1197 = vpop.trf.xlu0
        %v1198 = vpop.trf.xlu0
        %v1199 = vpop.trf.xlu0
        %v1200 = vpop.trf.xlu0
        %v1201 = vpop.trf.xlu0
        %v1202 = vpop.trf.xlu0
        %v1203 = vpop.trf.xlu0
        %v1204 = vpop.trf.xlu0
        %v1205 = vpop.trf.xlu0
        %v1206 = vpop.trf.xlu0
        %1207 = vxpose.xlu0.b32.start [1/16] %v921, 128
        %1208 = vxpose.xlu0.b32.cont [2/16] %v927, 128
        %1209 = vxpose.xlu0.b32.cont [3/16] %v933, 128
        %1210 = vxpose.xlu0.b32.cont [4/16] %v939, 128
        %1211 = vxpose.xlu0.b32.cont [5/16] %v945, 128
        %1212 = vxpose.xlu0.b32.cont [6/16] %v951, 128
        %1213 = vxpose.xlu0.b32.cont [7/16] %v957, 128
        %1214 = vxpose.xlu0.b32.cont [8/16] %v963, 128
        %1215 = vxpose.xlu0.b32.cont [9/16] %v969, 128
        %1216 = vxpose.xlu0.b32.cont [10/16] %v975, 128
        %1217 = vxpose.xlu0.b32.cont [11/16] %v981, 128
        %1218 = vxpose.xlu0.b32.cont [12/16] %v987, 128
        %1219 = vxpose.xlu0.b32.cont [13/16] %v993, 128
        %1220 = vxpose.xlu0.b32.cont [14/16] %v999, 128
        %1221 = vxpose.xlu0.b32.cont [15/16] %v1005, 128
        %1222 = vxpose.xlu0.b32.end [16/16] %v1011, 128
        %v1223 = vpop.trf.xlu0
        %v1224 = vpop.trf.xlu0
        %v1225 = vpop.trf.xlu0
        %v1226 = vpop.trf.xlu0
        %v1227 = vpop.trf.xlu0
        %v1228 = vpop.trf.xlu0
        %v1229 = vpop.trf.xlu0
        %v1230 = vpop.trf.xlu0
        %v1231 = vpop.trf.xlu0
        %v1232 = vpop.trf.xlu0
        %v1233 = vpop.trf.xlu0
        %v1234 = vpop.trf.xlu0
        %v1235 = vpop.trf.xlu0
        %v1236 = vpop.trf.xlu0
        %v1237 = vpop.trf.xlu0
        %v1238 = vpop.trf.xlu0
        %1239 = vxpose.xlu0.b32.start [1/16] %v923, 128
        %1240 = vxpose.xlu0.b32.cont [2/16] %v929, 128
        %1241 = vxpose.xlu0.b32.cont [3/16] %v935, 128
        %1242 = vxpose.xlu0.b32.cont [4/16] %v941, 128
        %1243 = vxpose.xlu0.b32.cont [5/16] %v947, 128
        %1244 = vxpose.xlu0.b32.cont [6/16] %v953, 128
        %1245 = vxpose.xlu0.b32.cont [7/16] %v959, 128
        %1246 = vxpose.xlu0.b32.cont [8/16] %v965, 128
        %1247 = vxpose.xlu0.b32.cont [9/16] %v971, 128
        %1248 = vxpose.xlu0.b32.cont [10/16] %v977, 128
        %1249 = vxpose.xlu0.b32.cont [11/16] %v983, 128
        %1250 = vxpose.xlu0.b32.cont [12/16] %v989, 128
        %1251 = vxpose.xlu0.b32.cont [13/16] %v995, 128
        %1252 = vxpose.xlu0.b32.cont [14/16] %v1001, 128
        %1253 = vxpose.xlu0.b32.cont [15/16] %v1007, 128
        %1254 = vxpose.xlu0.b32.end [16/16] %v1013, 128
        %v1255 = vpop.trf.xlu0
        %v1256 = vpop.trf.xlu0
        %v1257 = vpop.trf.xlu0
        %v1258 = vpop.trf.xlu0
        %v1259 = vpop.trf.xlu0
        %v1260 = vpop.trf.xlu0
        %v1261 = vpop.trf.xlu0
        %v1262 = vpop.trf.xlu0
        %v1263 = vpop.trf.xlu0
        %v1264 = vpop.trf.xlu0
        %v1265 = vpop.trf.xlu0
        %v1266 = vpop.trf.xlu0
        %v1267 = vpop.trf.xlu0
        %v1268 = vpop.trf.xlu0
        %v1269 = vpop.trf.xlu0
        %v1270 = vpop.trf.xlu0
        %v1271 = vld [vmem:[#allocation10] sm:$0xff]
        %v1272 = vld [vmem:[#allocation10 + $0x8] sm:$0xff]
        %v1273 = vld [vmem:[#allocation10 + $0x10] sm:$0xff]
        %v1274 = vld [vmem:[#allocation10 + $0x18] sm:$0xff]
        %v1275 = vld [vmem:[#allocation10 + $0x20] sm:$0xff]
        %v1276 = vld [vmem:[#allocation10 + $0x28] sm:$0xff]
        %v1277 = vld [vmem:[#allocation10 + $0x30] sm:$0xff]
        %v1278 = vld [vmem:[#allocation10 + $0x38] sm:$0xff]
        %v1279 = vld [vmem:[#allocation10 + $0x40] sm:$0xff]
        %v1280 = vld [vmem:[#allocation10 + $0x48] sm:$0xff]
        %v1281 = vld [vmem:[#allocation10 + $0x50] sm:$0xff]
        %v1282 = vld [vmem:[#allocation10 + $0x58] sm:$0xff]
        %v1283 = vld [vmem:[#allocation10 + $0x60] sm:$0xff]
        %v1284 = vld [vmem:[#allocation10 + $0x68] sm:$0xff]
        %v1285 = vld [vmem:[#allocation10 + $0x70] sm:$0xff]
        %v1286 = vld [vmem:[#allocation10 + $0x78] sm:$0xff]
        %v1287 = vld [vmem:[#allocation10 + $0x80] sm:$0xff]
        %v1288 = vld [vmem:[#allocation10 + $0x88] sm:$0xff]
        %v1289 = vld [vmem:[#allocation10 + $0x90] sm:$0xff]
        %v1290 = vld [vmem:[#allocation10 + $0x98] sm:$0xff]
        %v1291 = vld [vmem:[#allocation10 + $0xa0] sm:$0xff]
        %v1292 = vld [vmem:[#allocation10 + $0xa8] sm:$0xff]
        %v1293 = vld [vmem:[#allocation10 + $0xb0] sm:$0xff]
        %v1294 = vld [vmem:[#allocation10 + $0xb8] sm:$0xff]
        %v1295 = vld [vmem:[#allocation10 + $0xc0] sm:$0xff]
        %v1296 = vld [vmem:[#allocation10 + $0xc8] sm:$0xff]
        %v1297 = vld [vmem:[#allocation10 + $0xd0] sm:$0xff]
        %v1298 = vld [vmem:[#allocation10 + $0xd8] sm:$0xff]
        %v1299 = vld [vmem:[#allocation10 + $0xe0] sm:$0xff]
        %v1300 = vld [vmem:[#allocation10 + $0xe8] sm:$0xff]
        %v1301 = vld [vmem:[#allocation10 + $0xf0] sm:$0xff]
        %v1302 = vld [vmem:[#allocation10 + $0xf8] sm:$0xff]
        %1303 = vmatprep.subr.mxu0 %v1302
        %1304 = vmatpush1.msra.mxu0 %v1301
        %1305 = vmatprep.subr.mxu0 %v1300
        %1306 = vmatpush1.msra.mxu0 %v1299
        %1307 = vmatprep.subr.mxu0 %v1298
        %1308 = vmatpush1.msra.mxu0 %v1297
        %1309 = vmatprep.subr.mxu0 %v1296
        %1310 = vmatpush1.msra.mxu0 %v1295
        %1311 = vmatprep.subr.mxu0 %v1294
        %1312 = vmatpush1.msra.mxu0 %v1293
        %1313 = vmatprep.subr.mxu0 %v1292
        %1314 = vmatpush1.msra.mxu0 %v1291
        %1315 = vmatprep.subr.mxu0 %v1290
        %1316 = vmatpush1.msra.mxu0 %v1289
        %1317 = vmatprep.subr.mxu0 %v1288
        %1318 = vmatpush1.msra.mxu0 %v1287
        %1319 = vmatprep.subr.mxu0 %v1286
        %1320 = vmatpush1.msra.mxu0 %v1285
        %1321 = vmatprep.subr.mxu0 %v1284
        %1322 = vmatpush1.msra.mxu0 %v1283
        %1323 = vmatprep.subr.mxu0 %v1282
        %1324 = vmatpush1.msra.mxu0 %v1281
        %1325 = vmatprep.subr.mxu0 %v1280
        %1326 = vmatpush1.msra.mxu0 %v1279
        %1327 = vmatprep.subr.mxu0 %v1278
        %1328 = vmatpush1.msra.mxu0 %v1277
        %1329 = vmatprep.subr.mxu0 %v1276
        %1330 = vmatpush1.msra.mxu0 %v1275
        %1331 = vmatprep.subr.mxu0 %v1274
        %1332 = vmatpush1.msra.mxu0 %v1273
        %1333 = vmatprep.subr.mxu0 %v1272
        %1334 = vmatpush1.msra.mxu0 %v1271
        %1335 = vmatprep.subr.mxu0 0.0
        %1336 = vmatpush2.msra.mxu0 0.0
        %1337 = vmatprep.subr.mxu0 0.0
        %1338 = vmatpush2.msra.mxu0 0.0
        %1339 = vmatprep.subr.mxu0 0.0
        %1340 = vmatpush2.msra.mxu0 0.0
        %1341 = vmatprep.subr.mxu0 0.0
        %1342 = vmatpush2.msra.mxu0 0.0
        %1343 = vmatprep.subr.mxu0 0.0
        %1344 = vmatpush2.msra.mxu0 0.0
        %1345 = vmatprep.subr.mxu0 0.0
        %1346 = vmatpush2.msra.mxu0 0.0
        %1347 = vmatprep.subr.mxu0 0.0
        %1348 = vmatpush2.msra.mxu0 0.0
        %1349 = vmatprep.subr.mxu0 0.0
        %1350 = vmatpush2.msra.mxu0 0.0
        %1351 = vmatprep.subr.mxu0 0.0
        %1352 = vmatpush2.msra.mxu0 0.0
        %1353 = vmatprep.subr.mxu0 0.0
        %1354 = vmatpush2.msra.mxu0 0.0
        %1355 = vmatprep.subr.mxu0 0.0
        %1356 = vmatpush2.msra.mxu0 0.0
        %1357 = vmatprep.subr.mxu0 0.0
        %1358 = vmatpush2.msra.mxu0 0.0
        %1359 = vmatprep.subr.mxu0 0.0
        %1360 = vmatpush2.msra.mxu0 0.0
        %1361 = vmatprep.subr.mxu0 0.0
        %1362 = vmatpush2.msra.mxu0 0.0
        %1363 = vmatprep.subr.mxu0 0.0
        %1364 = vmatpush2.msra.mxu0 0.0
        %1365 = vmatprep.subr.mxu0 0.0
        %1366 = vmatpush2.msra.mxu0 0.0
        %1367 = vmatprep.mubr.f32.mxu0 0.0
        %1368 = vmatmul.mubr.f32.gmra.mxu0 %v1031
        %v1369 = vpop.f32.mrf.mxu0
        %v1370 = vadd.f32 0.0, %v1369
        %v1371 = vpop.f32.mrf.mxu0
        %v1372 = vadd.f32 0.0, %v1371
        %1373 = vmatprep.mubr.f32.mxu0 0.0
        %1374 = vmatmul.mubr.f32.gmra.mxu0 %v1032
        %v1375 = vpop.f32.mrf.mxu0
        %v1376 = vadd.f32 0.0, %v1375
        %v1377 = vpop.f32.mrf.mxu0
        %v1378 = vadd.f32 0.0, %v1377
        %1379 = vmatprep.mubr.f32.mxu0 0.0
        %1380 = vmatmul.mubr.f32.gmra.mxu0 %v1033
        %v1381 = vpop.f32.mrf.mxu0
        %v1382 = vadd.f32 0.0, %v1381
        %v1383 = vpop.f32.mrf.mxu0
        %v1384 = vadd.f32 0.0, %v1383
        %1385 = vmatprep.mubr.f32.mxu0 0.0
        %1386 = vmatmul.mubr.f32.gmra.mxu0 %v1034
        %v1387 = vpop.f32.mrf.mxu0
        %v1388 = vadd.f32 0.0, %v1387
        %v1389 = vpop.f32.mrf.mxu0
        %v1390 = vadd.f32 0.0, %v1389
        %1391 = vmatprep.mubr.f32.mxu0 0.0
        %1392 = vmatmul.mubr.f32.gmra.mxu0 %v1035
        %v1393 = vpop.f32.mrf.mxu0
        %v1394 = vadd.f32 0.0, %v1393
        %v1395 = vpop.f32.mrf.mxu0
        %v1396 = vadd.f32 0.0, %v1395
        %1397 = vmatprep.mubr.f32.mxu0 0.0
        %1398 = vmatmul.mubr.f32.gmra.mxu0 %v1036
        %v1399 = vpop.f32.mrf.mxu0
        %v1400 = vadd.f32 0.0, %v1399
        %v1401 = vpop.f32.mrf.mxu0
        %v1402 = vadd.f32 0.0, %v1401
        %1403 = vmatprep.mubr.f32.mxu0 0.0
        %1404 = vmatmul.mubr.f32.gmra.mxu0 %v1037
        %v1405 = vpop.f32.mrf.mxu0
        %v1406 = vadd.f32 0.0, %v1405
        %v1407 = vpop.f32.mrf.mxu0
        %v1408 = vadd.f32 0.0, %v1407
        %1409 = vmatprep.mubr.f32.mxu0 0.0
        %1410 = vmatmul.mubr.f32.gmra.mxu0 %v1038
        %v1411 = vpop.f32.mrf.mxu0
        %v1412 = vadd.f32 0.0, %v1411
        %v1413 = vpop.f32.mrf.mxu0
        %v1414 = vadd.f32 0.0, %v1413
        %1415 = vmatprep.mubr.f32.mxu0 0.0
        %1416 = vmatmul.mubr.f32.gmra.mxu0 %v1039
        %v1417 = vpop.f32.mrf.mxu0
        %v1418 = vadd.f32 0.0, %v1417
        %v1419 = vpop.f32.mrf.mxu0
        %v1420 = vadd.f32 0.0, %v1419
        %1421 = vmatprep.mubr.f32.mxu0 0.0
        %1422 = vmatmul.mubr.f32.gmra.mxu0 %v1040
        %v1423 = vpop.f32.mrf.mxu0
        %v1424 = vadd.f32 0.0, %v1423
        %v1425 = vpop.f32.mrf.mxu0
        %v1426 = vadd.f32 0.0, %v1425
        %1427 = vmatprep.mubr.f32.mxu0 0.0
        %1428 = vmatmul.mubr.f32.gmra.mxu0 %v1041
        %v1429 = vpop.f32.mrf.mxu0
        %v1430 = vadd.f32 0.0, %v1429
        %v1431 = vpop.f32.mrf.mxu0
        %v1432 = vadd.f32 0.0, %v1431
        %1433 = vmatprep.mubr.f32.mxu0 0.0
        %1434 = vmatmul.mubr.f32.gmra.mxu0 %v1042
        %v1435 = vpop.f32.mrf.mxu0
        %v1436 = vadd.f32 0.0, %v1435
        %v1437 = vpop.f32.mrf.mxu0
        %v1438 = vadd.f32 0.0, %v1437
        %1439 = vmatprep.mubr.f32.mxu0 0.0
        %1440 = vmatmul.mubr.f32.gmra.mxu0 %v1043
        %v1441 = vpop.f32.mrf.mxu0
        %v1442 = vadd.f32 0.0, %v1441
        %v1443 = vpop.f32.mrf.mxu0
        %v1444 = vadd.f32 0.0, %v1443
        %1445 = vmatprep.mubr.f32.mxu0 0.0
        %1446 = vmatmul.mubr.f32.gmra.mxu0 %v1044
        %v1447 = vpop.f32.mrf.mxu0
        %v1448 = vadd.f32 0.0, %v1447
        %v1449 = vpop.f32.mrf.mxu0
        %v1450 = vadd.f32 0.0, %v1449
        %1451 = vmatprep.mubr.f32.mxu0 0.0
        %1452 = vmatmul.mubr.f32.gmra.mxu0 %v1045
        %v1453 = vpop.f32.mrf.mxu0
        %v1454 = vadd.f32 0.0, %v1453
        %v1455 = vpop.f32.mrf.mxu0
        %v1456 = vadd.f32 0.0, %v1455
        %1457 = vmatprep.mubr.f32.mxu0 0.0
        %1458 = vmatmul.mubr.f32.gmra.mxu0 %v1046
        %v1459 = vpop.f32.mrf.mxu0
        %v1460 = vadd.f32 0.0, %v1459
        %v1461 = vpop.f32.mrf.mxu0
        %v1462 = vadd.f32 0.0, %v1461
        %1463 = vmatprep.mubr.f32.mxu0 0.0
        %1464 = vmatmul.mubr.f32.gmra.mxu0 %v1063
        %v1465 = vpop.f32.mrf.mxu0
        %v1466 = vadd.f32 0.0, %v1465
        %v1467 = vpop.f32.mrf.mxu0
        %v1468 = vadd.f32 0.0, %v1467
        %1469 = vmatprep.mubr.f32.mxu0 0.0
        %1470 = vmatmul.mubr.f32.gmra.mxu0 %v1064
        %v1471 = vpop.f32.mrf.mxu0
        %v1472 = vadd.f32 0.0, %v1471
        %v1473 = vpop.f32.mrf.mxu0
        %v1474 = vadd.f32 0.0, %v1473
        %1475 = vmatprep.mubr.f32.mxu0 0.0
        %1476 = vmatmul.mubr.f32.gmra.mxu0 %v1065
        %v1477 = vpop.f32.mrf.mxu0
        %v1478 = vadd.f32 0.0, %v1477
        %v1479 = vpop.f32.mrf.mxu0
        %v1480 = vadd.f32 0.0, %v1479
        %1481 = vmatprep.mubr.f32.mxu0 0.0
        %1482 = vmatmul.mubr.f32.gmra.mxu0 %v1066
        %v1483 = vpop.f32.mrf.mxu0
        %v1484 = vadd.f32 0.0, %v1483
        %v1485 = vpop.f32.mrf.mxu0
        %v1486 = vadd.f32 0.0, %v1485
        %1487 = vmatprep.mubr.f32.mxu0 0.0
        %1488 = vmatmul.mubr.f32.gmra.mxu0 %v1067
        %v1489 = vpop.f32.mrf.mxu0
        %v1490 = vadd.f32 0.0, %v1489
        %v1491 = vpop.f32.mrf.mxu0
        %v1492 = vadd.f32 0.0, %v1491
        %1493 = vmatprep.mubr.f32.mxu0 0.0
        %1494 = vmatmul.mubr.f32.gmra.mxu0 %v1068
        %v1495 = vpop.f32.mrf.mxu0
        %v1496 = vadd.f32 0.0, %v1495
        %v1497 = vpop.f32.mrf.mxu0
        %v1498 = vadd.f32 0.0, %v1497
        %1499 = vmatprep.mubr.f32.mxu0 0.0
        %1500 = vmatmul.mubr.f32.gmra.mxu0 %v1069
        %v1501 = vpop.f32.mrf.mxu0
        %v1502 = vadd.f32 0.0, %v1501
        %v1503 = vpop.f32.mrf.mxu0
        %v1504 = vadd.f32 0.0, %v1503
        %1505 = vmatprep.mubr.f32.mxu0 0.0
        %1506 = vmatmul.mubr.f32.gmra.mxu0 %v1070
        %v1507 = vpop.f32.mrf.mxu0
        %v1508 = vadd.f32 0.0, %v1507
        %v1509 = vpop.f32.mrf.mxu0
        %v1510 = vadd.f32 0.0, %v1509
        %1511 = vmatprep.mubr.f32.mxu0 0.0
        %1512 = vmatmul.mubr.f32.gmra.mxu0 %v1071
        %v1513 = vpop.f32.mrf.mxu0
        %v1514 = vadd.f32 0.0, %v1513
        %v1515 = vpop.f32.mrf.mxu0
        %v1516 = vadd.f32 0.0, %v1515
        %1517 = vmatprep.mubr.f32.mxu0 0.0
        %1518 = vmatmul.mubr.f32.gmra.mxu0 %v1072
        %v1519 = vpop.f32.mrf.mxu0
        %v1520 = vadd.f32 0.0, %v1519
        %v1521 = vpop.f32.mrf.mxu0
        %v1522 = vadd.f32 0.0, %v1521
        %1523 = vmatprep.mubr.f32.mxu0 0.0
        %1524 = vmatmul.mubr.f32.gmra.mxu0 %v1073
        %v1525 = vpop.f32.mrf.mxu0
        %v1526 = vadd.f32 0.0, %v1525
        %v1527 = vpop.f32.mrf.mxu0
        %v1528 = vadd.f32 0.0, %v1527
        %1529 = vmatprep.mubr.f32.mxu0 0.0
        %1530 = vmatmul.mubr.f32.gmra.mxu0 %v1074
        %v1531 = vpop.f32.mrf.mxu0
        %v1532 = vadd.f32 0.0, %v1531
        %v1533 = vpop.f32.mrf.mxu0
        %v1534 = vadd.f32 0.0, %v1533
        %1535 = vmatprep.mubr.f32.mxu0 0.0
        %1536 = vmatmul.mubr.f32.gmra.mxu0 %v1075
        %v1537 = vpop.f32.mrf.mxu0
        %v1538 = vadd.f32 0.0, %v1537
        %v1539 = vpop.f32.mrf.mxu0
        %v1540 = vadd.f32 0.0, %v1539
        %1541 = vmatprep.mubr.f32.mxu0 0.0
        %1542 = vmatmul.mubr.f32.gmra.mxu0 %v1076
        %v1543 = vpop.f32.mrf.mxu0
        %v1544 = vadd.f32 0.0, %v1543
        %v1545 = vpop.f32.mrf.mxu0
        %v1546 = vadd.f32 0.0, %v1545
        %1547 = vmatprep.mubr.f32.mxu0 0.0
        %1548 = vmatmul.mubr.f32.gmra.mxu0 %v1077
        %v1549 = vpop.f32.mrf.mxu0
        %v1550 = vadd.f32 0.0, %v1549
        %v1551 = vpop.f32.mrf.mxu0
        %v1552 = vadd.f32 0.0, %v1551
        %1553 = vmatprep.mubr.f32.mxu0 0.0
        %1554 = vmatmul.mubr.f32.gmra.mxu0 %v1078
        %v1555 = vpop.f32.mrf.mxu0
        %v1556 = vadd.f32 0.0, %v1555
        %v1557 = vpop.f32.mrf.mxu0
        %v1558 = vadd.f32 0.0, %v1557
        %1559 = vmatprep.mubr.f32.mxu0 0.0
        %1560 = vmatmul.mubr.f32.gmra.mxu0 %v1095
        %v1561 = vpop.f32.mrf.mxu0
        %v1562 = vadd.f32 0.0, %v1561
        %v1563 = vpop.f32.mrf.mxu0
        %v1564 = vadd.f32 0.0, %v1563
        %1565 = vmatprep.mubr.f32.mxu0 0.0
        %1566 = vmatmul.mubr.f32.gmra.mxu0 %v1096
        %v1567 = vpop.f32.mrf.mxu0
        %v1568 = vadd.f32 0.0, %v1567
        %v1569 = vpop.f32.mrf.mxu0
        %v1570 = vadd.f32 0.0, %v1569
        %1571 = vmatprep.mubr.f32.mxu0 0.0
        %1572 = vmatmul.mubr.f32.gmra.mxu0 %v1097
        %v1573 = vpop.f32.mrf.mxu0
        %v1574 = vadd.f32 0.0, %v1573
        %v1575 = vpop.f32.mrf.mxu0
        %v1576 = vadd.f32 0.0, %v1575
        %1577 = vmatprep.mubr.f32.mxu0 0.0
        %1578 = vmatmul.mubr.f32.gmra.mxu0 %v1098
        %v1579 = vpop.f32.mrf.mxu0
        %v1580 = vadd.f32 0.0, %v1579
        %v1581 = vpop.f32.mrf.mxu0
        %v1582 = vadd.f32 0.0, %v1581
        %1583 = vmatprep.mubr.f32.mxu0 0.0
        %1584 = vmatmul.mubr.f32.gmra.mxu0 %v1099
        %v1585 = vpop.f32.mrf.mxu0
        %v1586 = vadd.f32 0.0, %v1585
        %v1587 = vpop.f32.mrf.mxu0
        %v1588 = vadd.f32 0.0, %v1587
        %1589 = vmatprep.mubr.f32.mxu0 0.0
        %1590 = vmatmul.mubr.f32.gmra.mxu0 %v1100
        %v1591 = vpop.f32.mrf.mxu0
        %v1592 = vadd.f32 0.0, %v1591
        %v1593 = vpop.f32.mrf.mxu0
        %v1594 = vadd.f32 0.0, %v1593
        %1595 = vmatprep.mubr.f32.mxu0 0.0
        %1596 = vmatmul.mubr.f32.gmra.mxu0 %v1101
        %v1597 = vpop.f32.mrf.mxu0
        %v1598 = vadd.f32 0.0, %v1597
        %v1599 = vpop.f32.mrf.mxu0
        %v1600 = vadd.f32 0.0, %v1599
        %1601 = vmatprep.mubr.f32.mxu0 0.0
        %1602 = vmatmul.mubr.f32.gmra.mxu0 %v1102
        %v1603 = vpop.f32.mrf.mxu0
        %v1604 = vadd.f32 0.0, %v1603
        %v1605 = vpop.f32.mrf.mxu0
        %v1606 = vadd.f32 0.0, %v1605
        %1607 = vmatprep.mubr.f32.mxu0 0.0
        %1608 = vmatmul.mubr.f32.gmra.mxu0 %v1103
        %v1609 = vpop.f32.mrf.mxu0
        %v1610 = vadd.f32 0.0, %v1609
        %v1611 = vpop.f32.mrf.mxu0
        %v1612 = vadd.f32 0.0, %v1611
        %1613 = vmatprep.mubr.f32.mxu0 0.0
        %1614 = vmatmul.mubr.f32.gmra.mxu0 %v1104
        %v1615 = vpop.f32.mrf.mxu0
        %v1616 = vadd.f32 0.0, %v1615
        %v1617 = vpop.f32.mrf.mxu0
        %v1618 = vadd.f32 0.0, %v1617
        %1619 = vmatprep.mubr.f32.mxu0 0.0
        %1620 = vmatmul.mubr.f32.gmra.mxu0 %v1105
        %v1621 = vpop.f32.mrf.mxu0
        %v1622 = vadd.f32 0.0, %v1621
        %v1623 = vpop.f32.mrf.mxu0
        %v1624 = vadd.f32 0.0, %v1623
        %1625 = vmatprep.mubr.f32.mxu0 0.0
        %1626 = vmatmul.mubr.f32.gmra.mxu0 %v1106
        %v1627 = vpop.f32.mrf.mxu0
        %v1628 = vadd.f32 0.0, %v1627
        %v1629 = vpop.f32.mrf.mxu0
        %v1630 = vadd.f32 0.0, %v1629
        %1631 = vmatprep.mubr.f32.mxu0 0.0
        %1632 = vmatmul.mubr.f32.gmra.mxu0 %v1107
        %v1633 = vpop.f32.mrf.mxu0
        %v1634 = vadd.f32 0.0, %v1633
        %v1635 = vpop.f32.mrf.mxu0
        %v1636 = vadd.f32 0.0, %v1635
        %1637 = vmatprep.mubr.f32.mxu0 0.0
        %1638 = vmatmul.mubr.f32.gmra.mxu0 %v1108
        %v1639 = vpop.f32.mrf.mxu0
        %v1640 = vadd.f32 0.0, %v1639
        %v1641 = vpop.f32.mrf.mxu0
        %v1642 = vadd.f32 0.0, %v1641
        %1643 = vmatprep.mubr.f32.mxu0 0.0
        %1644 = vmatmul.mubr.f32.gmra.mxu0 %v1109
        %v1645 = vpop.f32.mrf.mxu0
        %v1646 = vadd.f32 0.0, %v1645
        %v1647 = vpop.f32.mrf.mxu0
        %v1648 = vadd.f32 0.0, %v1647
        %1649 = vmatprep.mubr.f32.mxu0 0.0
        %1650 = vmatmul.mubr.f32.gmra.mxu0 %v1110
        %v1651 = vpop.f32.mrf.mxu0
        %v1652 = vadd.f32 0.0, %v1651
        %v1653 = vpop.f32.mrf.mxu0
        %v1654 = vadd.f32 0.0, %v1653
        %1655 = vmatprep.mubr.f32.mxu0 0.0
        %1656 = vmatmul.mubr.f32.gmra.mxu0 %v1127
        %v1657 = vpop.f32.mrf.mxu0
        %v1658 = vadd.f32 0.0, %v1657
        %v1659 = vpop.f32.mrf.mxu0
        %v1660 = vadd.f32 0.0, %v1659
        %1661 = vmatprep.mubr.f32.mxu0 0.0
        %1662 = vmatmul.mubr.f32.gmra.mxu0 %v1128
        %v1663 = vpop.f32.mrf.mxu0
        %v1664 = vadd.f32 0.0, %v1663
        %v1665 = vpop.f32.mrf.mxu0
        %v1666 = vadd.f32 0.0, %v1665
        %1667 = vmatprep.mubr.f32.mxu0 0.0
        %1668 = vmatmul.mubr.f32.gmra.mxu0 %v1129
        %v1669 = vpop.f32.mrf.mxu0
        %v1670 = vadd.f32 0.0, %v1669
        %v1671 = vpop.f32.mrf.mxu0
        %v1672 = vadd.f32 0.0, %v1671
        %1673 = vmatprep.mubr.f32.mxu0 0.0
        %1674 = vmatmul.mubr.f32.gmra.mxu0 %v1130
        %v1675 = vpop.f32.mrf.mxu0
        %v1676 = vadd.f32 0.0, %v1675
        %v1677 = vpop.f32.mrf.mxu0
        %v1678 = vadd.f32 0.0, %v1677
        %1679 = vmatprep.mubr.f32.mxu0 0.0
        %1680 = vmatmul.mubr.f32.gmra.mxu0 %v1131
        %v1681 = vpop.f32.mrf.mxu0
        %v1682 = vadd.f32 0.0, %v1681
        %v1683 = vpop.f32.mrf.mxu0
        %v1684 = vadd.f32 0.0, %v1683
        %1685 = vmatprep.mubr.f32.mxu0 0.0
        %1686 = vmatmul.mubr.f32.gmra.mxu0 %v1132
        %v1687 = vpop.f32.mrf.mxu0
        %v1688 = vadd.f32 0.0, %v1687
        %v1689 = vpop.f32.mrf.mxu0
        %v1690 = vadd.f32 0.0, %v1689
        %1691 = vmatprep.mubr.f32.mxu0 0.0
        %1692 = vmatmul.mubr.f32.gmra.mxu0 %v1133
        %v1693 = vpop.f32.mrf.mxu0
        %v1694 = vadd.f32 0.0, %v1693
        %v1695 = vpop.f32.mrf.mxu0
        %v1696 = vadd.f32 0.0, %v1695
        %1697 = vmatprep.mubr.f32.mxu0 0.0
        %1698 = vmatmul.mubr.f32.gmra.mxu0 %v1134
        %v1699 = vpop.f32.mrf.mxu0
        %v1700 = vadd.f32 0.0, %v1699
        %v1701 = vpop.f32.mrf.mxu0
        %v1702 = vadd.f32 0.0, %v1701
        %1703 = vmatprep.mubr.f32.mxu0 0.0
        %1704 = vmatmul.mubr.f32.gmra.mxu0 %v1135
        %v1705 = vpop.f32.mrf.mxu0
        %v1706 = vadd.f32 0.0, %v1705
        %v1707 = vpop.f32.mrf.mxu0
        %v1708 = vadd.f32 0.0, %v1707
        %1709 = vmatprep.mubr.f32.mxu0 0.0
        %1710 = vmatmul.mubr.f32.gmra.mxu0 %v1136
        %v1711 = vpop.f32.mrf.mxu0
        %v1712 = vadd.f32 0.0, %v1711
        %v1713 = vpop.f32.mrf.mxu0
        %v1714 = vadd.f32 0.0, %v1713
        %1715 = vmatprep.mubr.f32.mxu0 0.0
        %1716 = vmatmul.mubr.f32.gmra.mxu0 %v1137
        %v1717 = vpop.f32.mrf.mxu0
        %v1718 = vadd.f32 0.0, %v1717
        %v1719 = vpop.f32.mrf.mxu0
        %v1720 = vadd.f32 0.0, %v1719
        %1721 = vmatprep.mubr.f32.mxu0 0.0
        %1722 = vmatmul.mubr.f32.gmra.mxu0 %v1138
        %v1723 = vpop.f32.mrf.mxu0
        %v1724 = vadd.f32 0.0, %v1723
        %v1725 = vpop.f32.mrf.mxu0
        %v1726 = vadd.f32 0.0, %v1725
        %1727 = vmatprep.mubr.f32.mxu0 0.0
        %1728 = vmatmul.mubr.f32.gmra.mxu0 %v1139
        %v1729 = vpop.f32.mrf.mxu0
        %v1730 = vadd.f32 0.0, %v1729
        %v1731 = vpop.f32.mrf.mxu0
        %v1732 = vadd.f32 0.0, %v1731
        %1733 = vmatprep.mubr.f32.mxu0 0.0
        %1734 = vmatmul.mubr.f32.gmra.mxu0 %v1140
        %v1735 = vpop.f32.mrf.mxu0
        %v1736 = vadd.f32 0.0, %v1735
        %v1737 = vpop.f32.mrf.mxu0
        %v1738 = vadd.f32 0.0, %v1737
        %1739 = vmatprep.mubr.f32.mxu0 0.0
        %1740 = vmatmul.mubr.f32.gmra.mxu0 %v1141
        %v1741 = vpop.f32.mrf.mxu0
        %v1742 = vadd.f32 0.0, %v1741
        %v1743 = vpop.f32.mrf.mxu0
        %v1744 = vadd.f32 0.0, %v1743
        %1745 = vmatprep.mubr.f32.mxu0 0.0
        %1746 = vmatmul.mubr.f32.gmra.mxu0 %v1142
        %v1747 = vpop.f32.mrf.mxu0
        %v1748 = vadd.f32 0.0, %v1747
        %v1749 = vpop.f32.mrf.mxu0
        %v1750 = vadd.f32 0.0, %v1749
        %1751 = vmatprep.mubr.f32.mxu0 0.0
        %1752 = vmatmul.mubr.f32.gmra.mxu0 %v1159
        %v1753 = vpop.f32.mrf.mxu0
        %v1754 = vadd.f32 0.0, %v1753
        %v1755 = vpop.f32.mrf.mxu0
        %v1756 = vadd.f32 0.0, %v1755
        %1757 = vmatprep.mubr.f32.mxu0 0.0
        %1758 = vmatmul.mubr.f32.gmra.mxu0 %v1160
        %v1759 = vpop.f32.mrf.mxu0
        %v1760 = vadd.f32 0.0, %v1759
        %v1761 = vpop.f32.mrf.mxu0
        %v1762 = vadd.f32 0.0, %v1761
        %1763 = vmatprep.mubr.f32.mxu0 0.0
        %1764 = vmatmul.mubr.f32.gmra.mxu0 %v1161
        %v1765 = vpop.f32.mrf.mxu0
        %v1766 = vadd.f32 0.0, %v1765
        %v1767 = vpop.f32.mrf.mxu0
        %v1768 = vadd.f32 0.0, %v1767
        %1769 = vmatprep.mubr.f32.mxu0 0.0
        %1770 = vmatmul.mubr.f32.gmra.mxu0 %v1162
        %v1771 = vpop.f32.mrf.mxu0
        %v1772 = vadd.f32 0.0, %v1771
        %v1773 = vpop.f32.mrf.mxu0
        %v1774 = vadd.f32 0.0, %v1773
        %1775 = vmatprep.mubr.f32.mxu0 0.0
        %1776 = vmatmul.mubr.f32.gmra.mxu0 %v1163
        %v1777 = vpop.f32.mrf.mxu0
        %v1778 = vadd.f32 0.0, %v1777
        %v1779 = vpop.f32.mrf.mxu0
        %v1780 = vadd.f32 0.0, %v1779
        %1781 = vmatprep.mubr.f32.mxu0 0.0
        %1782 = vmatmul.mubr.f32.gmra.mxu0 %v1164
        %v1783 = vpop.f32.mrf.mxu0
        %v1784 = vadd.f32 0.0, %v1783
        %v1785 = vpop.f32.mrf.mxu0
        %v1786 = vadd.f32 0.0, %v1785
        %1787 = vmatprep.mubr.f32.mxu0 0.0
        %1788 = vmatmul.mubr.f32.gmra.mxu0 %v1165
        %v1789 = vpop.f32.mrf.mxu0
        %v1790 = vadd.f32 0.0, %v1789
        %v1791 = vpop.f32.mrf.mxu0
        %v1792 = vadd.f32 0.0, %v1791
        %1793 = vmatprep.mubr.f32.mxu0 0.0
        %1794 = vmatmul.mubr.f32.gmra.mxu0 %v1166
        %v1795 = vpop.f32.mrf.mxu0
        %v1796 = vadd.f32 0.0, %v1795
        %v1797 = vpop.f32.mrf.mxu0
        %v1798 = vadd.f32 0.0, %v1797
        %1799 = vmatprep.mubr.f32.mxu0 0.0
        %1800 = vmatmul.mubr.f32.gmra.mxu0 %v1167
        %v1801 = vpop.f32.mrf.mxu0
        %v1802 = vadd.f32 0.0, %v1801
        %v1803 = vpop.f32.mrf.mxu0
        %v1804 = vadd.f32 0.0, %v1803
        %1805 = vmatprep.mubr.f32.mxu0 0.0
        %1806 = vmatmul.mubr.f32.gmra.mxu0 %v1168
        %v1807 = vpop.f32.mrf.mxu0
        %v1808 = vadd.f32 0.0, %v1807
        %v1809 = vpop.f32.mrf.mxu0
        %v1810 = vadd.f32 0.0, %v1809
        %1811 = vmatprep.mubr.f32.mxu0 0.0
        %1812 = vmatmul.mubr.f32.gmra.mxu0 %v1169
        %v1813 = vpop.f32.mrf.mxu0
        %v1814 = vadd.f32 0.0, %v1813
        %v1815 = vpop.f32.mrf.mxu0
        %v1816 = vadd.f32 0.0, %v1815
        %1817 = vmatprep.mubr.f32.mxu0 0.0
        %1818 = vmatmul.mubr.f32.gmra.mxu0 %v1170
        %v1819 = vpop.f32.mrf.mxu0
        %v1820 = vadd.f32 0.0, %v1819
        %v1821 = vpop.f32.mrf.mxu0
        %v1822 = vadd.f32 0.0, %v1821
        %1823 = vmatprep.mubr.f32.mxu0 0.0
        %1824 = vmatmul.mubr.f32.gmra.mxu0 %v1171
        %v1825 = vpop.f32.mrf.mxu0
        %v1826 = vadd.f32 0.0, %v1825
        %v1827 = vpop.f32.mrf.mxu0
        %v1828 = vadd.f32 0.0, %v1827
        %1829 = vmatprep.mubr.f32.mxu0 0.0
        %1830 = vmatmul.mubr.f32.gmra.mxu0 %v1172
        %v1831 = vpop.f32.mrf.mxu0
        %v1832 = vadd.f32 0.0, %v1831
        %v1833 = vpop.f32.mrf.mxu0
        %v1834 = vadd.f32 0.0, %v1833
        %1835 = vmatprep.mubr.f32.mxu0 0.0
        %1836 = vmatmul.mubr.f32.gmra.mxu0 %v1173
        %v1837 = vpop.f32.mrf.mxu0
        %v1838 = vadd.f32 0.0, %v1837
        %v1839 = vpop.f32.mrf.mxu0
        %v1840 = vadd.f32 0.0, %v1839
        %1841 = vmatprep.mubr.f32.mxu0 0.0
        %1842 = vmatmul.mubr.f32.gmra.mxu0 %v1174
        %v1843 = vpop.f32.mrf.mxu0
        %v1844 = vadd.f32 0.0, %v1843
        %v1845 = vpop.f32.mrf.mxu0
        %v1846 = vadd.f32 0.0, %v1845
        %1847 = vmatprep.mubr.f32.mxu0 0.0
        %1848 = vmatmul.mubr.f32.gmra.mxu0 %v1191
        %v1849 = vpop.f32.mrf.mxu0
        %v1850 = vadd.f32 0.0, %v1849
        %v1851 = vpop.f32.mrf.mxu0
        %v1852 = vadd.f32 0.0, %v1851
        %1853 = vmatprep.mubr.f32.mxu0 0.0
        %1854 = vmatmul.mubr.f32.gmra.mxu0 %v1192
        %v1855 = vpop.f32.mrf.mxu0
        %v1856 = vadd.f32 0.0, %v1855
        %v1857 = vpop.f32.mrf.mxu0
        %v1858 = vadd.f32 0.0, %v1857
        %1859 = vmatprep.mubr.f32.mxu0 0.0
        %1860 = vmatmul.mubr.f32.gmra.mxu0 %v1193
        %v1861 = vpop.f32.mrf.mxu0
        %v1862 = vadd.f32 0.0, %v1861
        %v1863 = vpop.f32.mrf.mxu0
        %v1864 = vadd.f32 0.0, %v1863
        %1865 = vmatprep.mubr.f32.mxu0 0.0
        %1866 = vmatmul.mubr.f32.gmra.mxu0 %v1194
        %v1867 = vpop.f32.mrf.mxu0
        %v1868 = vadd.f32 0.0, %v1867
        %v1869 = vpop.f32.mrf.mxu0
        %v1870 = vadd.f32 0.0, %v1869
        %1871 = vmatprep.mubr.f32.mxu0 0.0
        %1872 = vmatmul.mubr.f32.gmra.mxu0 %v1195
        %v1873 = vpop.f32.mrf.mxu0
        %v1874 = vadd.f32 0.0, %v1873
        %v1875 = vpop.f32.mrf.mxu0
        %v1876 = vadd.f32 0.0, %v1875
        %1877 = vmatprep.mubr.f32.mxu0 0.0
        %1878 = vmatmul.mubr.f32.gmra.mxu0 %v1196
        %v1879 = vpop.f32.mrf.mxu0
        %v1880 = vadd.f32 0.0, %v1879
        %v1881 = vpop.f32.mrf.mxu0
        %v1882 = vadd.f32 0.0, %v1881
        %1883 = vmatprep.mubr.f32.mxu0 0.0
        %1884 = vmatmul.mubr.f32.gmra.mxu0 %v1197
        %v1885 = vpop.f32.mrf.mxu0
        %v1886 = vadd.f32 0.0, %v1885
        %v1887 = vpop.f32.mrf.mxu0
        %v1888 = vadd.f32 0.0, %v1887
        %1889 = vmatprep.mubr.f32.mxu0 0.0
        %1890 = vmatmul.mubr.f32.gmra.mxu0 %v1198
        %v1891 = vpop.f32.mrf.mxu0
        %v1892 = vadd.f32 0.0, %v1891
        %v1893 = vpop.f32.mrf.mxu0
        %v1894 = vadd.f32 0.0, %v1893
        %1895 = vmatprep.mubr.f32.mxu0 0.0
        %1896 = vmatmul.mubr.f32.gmra.mxu0 %v1199
        %v1897 = vpop.f32.mrf.mxu0
        %v1898 = vadd.f32 0.0, %v1897
        %v1899 = vpop.f32.mrf.mxu0
        %v1900 = vadd.f32 0.0, %v1899
        %1901 = vmatprep.mubr.f32.mxu0 0.0
        %1902 = vmatmul.mubr.f32.gmra.mxu0 %v1200
        %v1903 = vpop.f32.mrf.mxu0
        %v1904 = vadd.f32 0.0, %v1903
        %v1905 = vpop.f32.mrf.mxu0
        %v1906 = vadd.f32 0.0, %v1905
        %1907 = vmatprep.mubr.f32.mxu0 0.0
        %1908 = vmatmul.mubr.f32.gmra.mxu0 %v1201
        %v1909 = vpop.f32.mrf.mxu0
        %v1910 = vadd.f32 0.0, %v1909
        %v1911 = vpop.f32.mrf.mxu0
        %v1912 = vadd.f32 0.0, %v1911
        %1913 = vmatprep.mubr.f32.mxu0 0.0
        %1914 = vmatmul.mubr.f32.gmra.mxu0 %v1202
        %v1915 = vpop.f32.mrf.mxu0
        %v1916 = vadd.f32 0.0, %v1915
        %v1917 = vpop.f32.mrf.mxu0
        %v1918 = vadd.f32 0.0, %v1917
        %1919 = vmatprep.mubr.f32.mxu0 0.0
        %1920 = vmatmul.mubr.f32.gmra.mxu0 %v1203
        %v1921 = vpop.f32.mrf.mxu0
        %v1922 = vadd.f32 0.0, %v1921
        %v1923 = vpop.f32.mrf.mxu0
        %v1924 = vadd.f32 0.0, %v1923
        %1925 = vmatprep.mubr.f32.mxu0 0.0
        %1926 = vmatmul.mubr.f32.gmra.mxu0 %v1204
        %v1927 = vpop.f32.mrf.mxu0
        %v1928 = vadd.f32 0.0, %v1927
        %v1929 = vpop.f32.mrf.mxu0
        %v1930 = vadd.f32 0.0, %v1929
        %1931 = vmatprep.mubr.f32.mxu0 0.0
        %1932 = vmatmul.mubr.f32.gmra.mxu0 %v1205
        %v1933 = vpop.f32.mrf.mxu0
        %v1934 = vadd.f32 0.0, %v1933
        %v1935 = vpop.f32.mrf.mxu0
        %v1936 = vadd.f32 0.0, %v1935
        %1937 = vmatprep.mubr.f32.mxu0 0.0
        %1938 = vmatmul.mubr.f32.gmra.mxu0 %v1206
        %v1939 = vpop.f32.mrf.mxu0
        %v1940 = vadd.f32 0.0, %v1939
        %v1941 = vpop.f32.mrf.mxu0
        %v1942 = vadd.f32 0.0, %v1941
        %1943 = vmatprep.mubr.f32.mxu0 0.0
        %1944 = vmatmul.mubr.f32.gmra.mxu0 %v1223
        %v1945 = vpop.f32.mrf.mxu0
        %v1946 = vadd.f32 0.0, %v1945
        %v1947 = vpop.f32.mrf.mxu0
        %v1948 = vadd.f32 0.0, %v1947
        %1949 = vmatprep.mubr.f32.mxu0 0.0
        %1950 = vmatmul.mubr.f32.gmra.mxu0 %v1224
        %v1951 = vpop.f32.mrf.mxu0
        %v1952 = vadd.f32 0.0, %v1951
        %v1953 = vpop.f32.mrf.mxu0
        %v1954 = vadd.f32 0.0, %v1953
        %1955 = vmatprep.mubr.f32.mxu0 0.0
        %1956 = vmatmul.mubr.f32.gmra.mxu0 %v1225
        %v1957 = vpop.f32.mrf.mxu0
        %v1958 = vadd.f32 0.0, %v1957
        %v1959 = vpop.f32.mrf.mxu0
        %v1960 = vadd.f32 0.0, %v1959
        %1961 = vmatprep.mubr.f32.mxu0 0.0
        %1962 = vmatmul.mubr.f32.gmra.mxu0 %v1226
        %v1963 = vpop.f32.mrf.mxu0
        %v1964 = vadd.f32 0.0, %v1963
        %v1965 = vpop.f32.mrf.mxu0
        %v1966 = vadd.f32 0.0, %v1965
        %1967 = vmatprep.mubr.f32.mxu0 0.0
        %1968 = vmatmul.mubr.f32.gmra.mxu0 %v1227
        %v1969 = vpop.f32.mrf.mxu0
        %v1970 = vadd.f32 0.0, %v1969
        %v1971 = vpop.f32.mrf.mxu0
        %v1972 = vadd.f32 0.0, %v1971
        %1973 = vmatprep.mubr.f32.mxu0 0.0
        %1974 = vmatmul.mubr.f32.gmra.mxu0 %v1228
        %v1975 = vpop.f32.mrf.mxu0
        %v1976 = vadd.f32 0.0, %v1975
        %v1977 = vpop.f32.mrf.mxu0
        %v1978 = vadd.f32 0.0, %v1977
        %1979 = vmatprep.mubr.f32.mxu0 0.0
        %1980 = vmatmul.mubr.f32.gmra.mxu0 %v1229
        %v1981 = vpop.f32.mrf.mxu0
        %v1982 = vadd.f32 0.0, %v1981
        %v1983 = vpop.f32.mrf.mxu0
        %v1984 = vadd.f32 0.0, %v1983
        %1985 = vmatprep.mubr.f32.mxu0 0.0
        %1986 = vmatmul.mubr.f32.gmra.mxu0 %v1230
        %v1987 = vpop.f32.mrf.mxu0
        %v1988 = vadd.f32 0.0, %v1987
        %v1989 = vpop.f32.mrf.mxu0
        %v1990 = vadd.f32 0.0, %v1989
        %1991 = vmatprep.mubr.f32.mxu0 0.0
        %1992 = vmatmul.mubr.f32.gmra.mxu0 %v1231
        %v1993 = vpop.f32.mrf.mxu0
        %v1994 = vadd.f32 0.0, %v1993
        %v1995 = vpop.f32.mrf.mxu0
        %v1996 = vadd.f32 0.0, %v1995
        %1997 = vmatprep.mubr.f32.mxu0 0.0
        %1998 = vmatmul.mubr.f32.gmra.mxu0 %v1232
        %v1999 = vpop.f32.mrf.mxu0
        %v2000 = vadd.f32 0.0, %v1999
        %v2001 = vpop.f32.mrf.mxu0
        %v2002 = vadd.f32 0.0, %v2001
        %2003 = vmatprep.mubr.f32.mxu0 0.0
        %2004 = vmatmul.mubr.f32.gmra.mxu0 %v1233
        %v2005 = vpop.f32.mrf.mxu0
        %v2006 = vadd.f32 0.0, %v2005
        %v2007 = vpop.f32.mrf.mxu0
        %v2008 = vadd.f32 0.0, %v2007
        %2009 = vmatprep.mubr.f32.mxu0 0.0
        %2010 = vmatmul.mubr.f32.gmra.mxu0 %v1234
        %v2011 = vpop.f32.mrf.mxu0
        %v2012 = vadd.f32 0.0, %v2011
        %v2013 = vpop.f32.mrf.mxu0
        %v2014 = vadd.f32 0.0, %v2013
        %2015 = vmatprep.mubr.f32.mxu0 0.0
        %2016 = vmatmul.mubr.f32.gmra.mxu0 %v1235
        %v2017 = vpop.f32.mrf.mxu0
        %v2018 = vadd.f32 0.0, %v2017
        %v2019 = vpop.f32.mrf.mxu0
        %v2020 = vadd.f32 0.0, %v2019
        %2021 = vmatprep.mubr.f32.mxu0 0.0
        %2022 = vmatmul.mubr.f32.gmra.mxu0 %v1236
        %v2023 = vpop.f32.mrf.mxu0
        %v2024 = vadd.f32 0.0, %v2023
        %v2025 = vpop.f32.mrf.mxu0
        %v2026 = vadd.f32 0.0, %v2025
        %2027 = vmatprep.mubr.f32.mxu0 0.0
        %2028 = vmatmul.mubr.f32.gmra.mxu0 %v1237
        %v2029 = vpop.f32.mrf.mxu0
        %v2030 = vadd.f32 0.0, %v2029
        %v2031 = vpop.f32.mrf.mxu0
        %v2032 = vadd.f32 0.0, %v2031
        %2033 = vmatprep.mubr.f32.mxu0 0.0
        %2034 = vmatmul.mubr.f32.gmra.mxu0 %v1238
        %v2035 = vpop.f32.mrf.mxu0
        %v2036 = vadd.f32 0.0, %v2035
        %v2037 = vpop.f32.mrf.mxu0
        %v2038 = vadd.f32 0.0, %v2037
        %2039 = vmatprep.mubr.f32.mxu0 0.0
        %2040 = vmatmul.mubr.f32.gmra.mxu0 %v1255
        %v2041 = vpop.f32.mrf.mxu0
        %v2042 = vadd.f32 0.0, %v2041
        %v2043 = vpop.f32.mrf.mxu0
        %v2044 = vadd.f32 0.0, %v2043
        %2045 = vmatprep.mubr.f32.mxu0 0.0
        %2046 = vmatmul.mubr.f32.gmra.mxu0 %v1256
        %v2047 = vpop.f32.mrf.mxu0
        %v2048 = vadd.f32 0.0, %v2047
        %v2049 = vpop.f32.mrf.mxu0
        %v2050 = vadd.f32 0.0, %v2049
        %2051 = vmatprep.mubr.f32.mxu0 0.0
        %2052 = vmatmul.mubr.f32.gmra.mxu0 %v1257
        %v2053 = vpop.f32.mrf.mxu0
        %v2054 = vadd.f32 0.0, %v2053
        %v2055 = vpop.f32.mrf.mxu0
        %v2056 = vadd.f32 0.0, %v2055
        %2057 = vmatprep.mubr.f32.mxu0 0.0
        %2058 = vmatmul.mubr.f32.gmra.mxu0 %v1258
        %v2059 = vpop.f32.mrf.mxu0
        %v2060 = vadd.f32 0.0, %v2059
        %v2061 = vpop.f32.mrf.mxu0
        %v2062 = vadd.f32 0.0, %v2061
        %2063 = vmatprep.mubr.f32.mxu0 0.0
        %2064 = vmatmul.mubr.f32.gmra.mxu0 %v1259
        %v2065 = vpop.f32.mrf.mxu0
        %v2066 = vadd.f32 0.0, %v2065
        %v2067 = vpop.f32.mrf.mxu0
        %v2068 = vadd.f32 0.0, %v2067
        %2069 = vmatprep.mubr.f32.mxu0 0.0
        %2070 = vmatmul.mubr.f32.gmra.mxu0 %v1260
        %v2071 = vpop.f32.mrf.mxu0
        %v2072 = vadd.f32 0.0, %v2071
        %v2073 = vpop.f32.mrf.mxu0
        %v2074 = vadd.f32 0.0, %v2073
        %2075 = vmatprep.mubr.f32.mxu0 0.0
        %2076 = vmatmul.mubr.f32.gmra.mxu0 %v1261
        %v2077 = vpop.f32.mrf.mxu0
        %v2078 = vadd.f32 0.0, %v2077
        %v2079 = vpop.f32.mrf.mxu0
        %v2080 = vadd.f32 0.0, %v2079
        %2081 = vmatprep.mubr.f32.mxu0 0.0
        %2082 = vmatmul.mubr.f32.gmra.mxu0 %v1262
        %v2083 = vpop.f32.mrf.mxu0
        %v2084 = vadd.f32 0.0, %v2083
        %v2085 = vpop.f32.mrf.mxu0
        %v2086 = vadd.f32 0.0, %v2085
        %2087 = vmatprep.mubr.f32.mxu0 0.0
        %2088 = vmatmul.mubr.f32.gmra.mxu0 %v1263
        %v2089 = vpop.f32.mrf.mxu0
        %v2090 = vadd.f32 0.0, %v2089
        %v2091 = vpop.f32.mrf.mxu0
        %v2092 = vadd.f32 0.0, %v2091
        %2093 = vmatprep.mubr.f32.mxu0 0.0
        %2094 = vmatmul.mubr.f32.gmra.mxu0 %v1264
        %v2095 = vpop.f32.mrf.mxu0
        %v2096 = vadd.f32 0.0, %v2095
        %v2097 = vpop.f32.mrf.mxu0
        %v2098 = vadd.f32 0.0, %v2097
        %2099 = vmatprep.mubr.f32.mxu0 0.0
        %2100 = vmatmul.mubr.f32.gmra.mxu0 %v1265
        %v2101 = vpop.f32.mrf.mxu0
        %v2102 = vadd.f32 0.0, %v2101
        %v2103 = vpop.f32.mrf.mxu0
        %v2104 = vadd.f32 0.0, %v2103
        %2105 = vmatprep.mubr.f32.mxu0 0.0
        %2106 = vmatmul.mubr.f32.gmra.mxu0 %v1266
        %v2107 = vpop.f32.mrf.mxu0
        %v2108 = vadd.f32 0.0, %v2107
        %v2109 = vpop.f32.mrf.mxu0
        %v2110 = vadd.f32 0.0, %v2109
        %2111 = vmatprep.mubr.f32.mxu0 0.0
        %2112 = vmatmul.mubr.f32.gmra.mxu0 %v1267
        %v2113 = vpop.f32.mrf.mxu0
        %v2114 = vadd.f32 0.0, %v2113
        %v2115 = vpop.f32.mrf.mxu0
        %v2116 = vadd.f32 0.0, %v2115
        %2117 = vmatprep.mubr.f32.mxu0 0.0
        %2118 = vmatmul.mubr.f32.gmra.mxu0 %v1268
        %v2119 = vpop.f32.mrf.mxu0
        %v2120 = vadd.f32 0.0, %v2119
        %v2121 = vpop.f32.mrf.mxu0
        %v2122 = vadd.f32 0.0, %v2121
        %2123 = vmatprep.mubr.f32.mxu0 0.0
        %2124 = vmatmul.mubr.f32.gmra.mxu0 %v1269
        %v2125 = vpop.f32.mrf.mxu0
        %v2126 = vadd.f32 0.0, %v2125
        %v2127 = vpop.f32.mrf.mxu0
        %v2128 = vadd.f32 0.0, %v2127
        %2129 = vmatprep.mubr.f32.mxu0 0.0
        %2130 = vmatmul.mubr.f32.gmra.mxu0 %v1270
        %v2131 = vpop.f32.mrf.mxu0
        %v2132 = vadd.f32 0.0, %v2131
        %v2133 = vpop.f32.mrf.mxu0
        %v2134 = vadd.f32 0.0, %v2133
        %2135 = vdwg.mxu0
        %v2136 = vadd.f32 %v1370, %v1468
        %v2137 = vadd.f32 %v1376, %v1474
        %v2138 = vadd.f32 %v1382, %v1480
        %v2139 = vadd.f32 %v1388, %v1486
        %v2140 = vadd.f32 %v1394, %v1492
        %v2141 = vadd.f32 %v1400, %v1498
        %v2142 = vadd.f32 %v1406, %v1504
        %v2143 = vadd.f32 %v1412, %v1510
        %v2144 = vadd.f32 %v1418, %v1516
        %v2145 = vadd.f32 %v1424, %v1522
        %v2146 = vadd.f32 %v1430, %v1528
        %v2147 = vadd.f32 %v1436, %v1534
        %v2148 = vadd.f32 %v1442, %v1540
        %v2149 = vadd.f32 %v1448, %v1546
        %v2150 = vadd.f32 %v1454, %v1552
        %v2151 = vadd.f32 %v1460, %v1558
        %v2152 = vadd.f32 %v1562, %v1660
        %v2153 = vadd.f32 %v1568, %v1666
        %v2154 = vadd.f32 %v1574, %v1672
        %v2155 = vadd.f32 %v1580, %v1678
        %v2156 = vadd.f32 %v1586, %v1684
        %v2157 = vadd.f32 %v1592, %v1690
        %v2158 = vadd.f32 %v1598, %v1696
        %v2159 = vadd.f32 %v1604, %v1702
        %v2160 = vadd.f32 %v1610, %v1708
        %v2161 = vadd.f32 %v1616, %v1714
        %v2162 = vadd.f32 %v1622, %v1720
        %v2163 = vadd.f32 %v1628, %v1726
        %v2164 = vadd.f32 %v1634, %v1732
        %v2165 = vadd.f32 %v1640, %v1738
        %v2166 = vadd.f32 %v1646, %v1744
        %v2167 = vadd.f32 %v1652, %v1750
        %v2168 = vadd.f32 %v1754, %v1852
        %v2169 = vadd.f32 %v1760, %v1858
        %v2170 = vadd.f32 %v1766, %v1864
        %v2171 = vadd.f32 %v1772, %v1870
        %v2172 = vadd.f32 %v1778, %v1876
        %v2173 = vadd.f32 %v1784, %v1882
        %v2174 = vadd.f32 %v1790, %v1888
        %v2175 = vadd.f32 %v1796, %v1894
        %v2176 = vadd.f32 %v1802, %v1900
        %v2177 = vadd.f32 %v1808, %v1906
        %v2178 = vadd.f32 %v1814, %v1912
        %v2179 = vadd.f32 %v1820, %v1918
        %v2180 = vadd.f32 %v1826, %v1924
        %v2181 = vadd.f32 %v1832, %v1930
        %v2182 = vadd.f32 %v1838, %v1936
        %v2183 = vadd.f32 %v1844, %v1942
        %v2184 = vadd.f32 %v1946, %v2044
        %v2185 = vadd.f32 %v1952, %v2050
        %v2186 = vadd.f32 %v1958, %v2056
        %v2187 = vadd.f32 %v1964, %v2062
        %v2188 = vadd.f32 %v1970, %v2068
        %v2189 = vadd.f32 %v1976, %v2074
        %v2190 = vadd.f32 %v1982, %v2080
        %v2191 = vadd.f32 %v1988, %v2086
        %v2192 = vadd.f32 %v1994, %v2092
        %v2193 = vadd.f32 %v2000, %v2098
        %v2194 = vadd.f32 %v2006, %v2104
        %v2195 = vadd.f32 %v2012, %v2110
        %v2196 = vadd.f32 %v2018, %v2116
        %v2197 = vadd.f32 %v2024, %v2122
        %v2198 = vadd.f32 %v2030, %v2128
        %v2199 = vadd.f32 %v2036, %v2134
        %v2200 = vsub.f32 %v1466, %v1372
        %v2201 = vsub.f32 %v1472, %v1378
        %v2202 = vsub.f32 %v1478, %v1384
        %v2203 = vsub.f32 %v1484, %v1390
        %v2204 = vsub.f32 %v1490, %v1396
        %v2205 = vsub.f32 %v1496, %v1402
        %v2206 = vsub.f32 %v1502, %v1408
        %v2207 = vsub.f32 %v1508, %v1414
        %v2208 = vsub.f32 %v1514, %v1420
        %v2209 = vsub.f32 %v1520, %v1426
        %v2210 = vsub.f32 %v1526, %v1432
        %v2211 = vsub.f32 %v1532, %v1438
        %v2212 = vsub.f32 %v1538, %v1444
        %v2213 = vsub.f32 %v1544, %v1450
        %v2214 = vsub.f32 %v1550, %v1456
        %v2215 = vsub.f32 %v1556, %v1462
        %v2216 = vsub.f32 %v1658, %v1564
        %v2217 = vsub.f32 %v1664, %v1570
        %v2218 = vsub.f32 %v1670, %v1576
        %v2219 = vsub.f32 %v1676, %v1582
        %v2220 = vsub.f32 %v1682, %v1588
        %v2221 = vsub.f32 %v1688, %v1594
        %v2222 = vsub.f32 %v1694, %v1600
        %v2223 = vsub.f32 %v1700, %v1606
        %v2224 = vsub.f32 %v1706, %v1612
        %v2225 = vsub.f32 %v1712, %v1618
        %v2226 = vsub.f32 %v1718, %v1624
        %v2227 = vsub.f32 %v1724, %v1630
        %v2228 = vsub.f32 %v1730, %v1636
        %v2229 = vsub.f32 %v1736, %v1642
        %v2230 = vsub.f32 %v1742, %v1648
        %v2231 = vsub.f32 %v1748, %v1654
        %v2232 = vsub.f32 %v1850, %v1756
        %v2233 = vsub.f32 %v1856, %v1762
        %v2234 = vsub.f32 %v1862, %v1768
        %v2235 = vsub.f32 %v1868, %v1774
        %v2236 = vsub.f32 %v1874, %v1780
        %v2237 = vsub.f32 %v1880, %v1786
        %v2238 = vsub.f32 %v1886, %v1792
        %v2239 = vsub.f32 %v1892, %v1798
        %v2240 = vsub.f32 %v1898, %v1804
        %v2241 = vsub.f32 %v1904, %v1810
        %v2242 = vsub.f32 %v1910, %v1816
        %v2243 = vsub.f32 %v1916, %v1822
        %v2244 = vsub.f32 %v1922, %v1828
        %v2245 = vsub.f32 %v1928, %v1834
        %v2246 = vsub.f32 %v1934, %v1840
        %v2247 = vsub.f32 %v1940, %v1846
        %v2248 = vsub.f32 %v2042, %v1948
        %v2249 = vsub.f32 %v2048, %v1954
        %v2250 = vsub.f32 %v2054, %v1960
        %v2251 = vsub.f32 %v2060, %v1966
        %v2252 = vsub.f32 %v2066, %v1972
        %v2253 = vsub.f32 %v2072, %v1978
        %v2254 = vsub.f32 %v2078, %v1984
        %v2255 = vsub.f32 %v2084, %v1990
        %v2256 = vsub.f32 %v2090, %v1996
        %v2257 = vsub.f32 %v2096, %v2002
        %v2258 = vsub.f32 %v2102, %v2008
        %v2259 = vsub.f32 %v2108, %v2014
        %v2260 = vsub.f32 %v2114, %v2020
        %v2261 = vsub.f32 %v2120, %v2026
        %v2262 = vsub.f32 %v2126, %v2032
        %v2263 = vsub.f32 %v2132, %v2038
        %v2264 = vld [vmem:[#allocation5] sm:$0xff]
        %v2265 = vld [vmem:[#allocation5 + $0x8] sm:$0xff]
        %v2266 = vld [vmem:[#allocation5 + $0x10] sm:$0xff]
        %v2267 = vld [vmem:[#allocation5 + $0x18] sm:$0xff]
        %v2268 = vld [vmem:[#allocation5 + $0x20] sm:$0xff]
        %v2269 = vld [vmem:[#allocation5 + $0x28] sm:$0xff]
        %v2270 = vld [vmem:[#allocation5 + $0x30] sm:$0xff]
        %v2271 = vld [vmem:[#allocation5 + $0x38] sm:$0xff]
        %v2272 = vld [vmem:[#allocation5 + $0x40] sm:$0xff]
        %v2273 = vld [vmem:[#allocation5 + $0x48] sm:$0xff]
        %v2274 = vld [vmem:[#allocation5 + $0x50] sm:$0xff]
        %v2275 = vld [vmem:[#allocation5 + $0x58] sm:$0xff]
        %v2276 = vld [vmem:[#allocation5 + $0x60] sm:$0xff]
        %v2277 = vld [vmem:[#allocation5 + $0x68] sm:$0xff]
        %v2278 = vld [vmem:[#allocation5 + $0x70] sm:$0xff]
        %v2279 = vld [vmem:[#allocation5 + $0x78] sm:$0xff]
        %v2280 = vld [vmem:[#allocation5 + $0x80] sm:$0xff]
        %v2281 = vld [vmem:[#allocation5 + $0x88] sm:$0xff]
        %v2282 = vld [vmem:[#allocation5 + $0x90] sm:$0xff]
        %v2283 = vld [vmem:[#allocation5 + $0x98] sm:$0xff]
        %v2284 = vld [vmem:[#allocation5 + $0xa0] sm:$0xff]
        %v2285 = vld [vmem:[#allocation5 + $0xa8] sm:$0xff]
        %v2286 = vld [vmem:[#allocation5 + $0xb0] sm:$0xff]
        %v2287 = vld [vmem:[#allocation5 + $0xb8] sm:$0xff]
        %v2288 = vld [vmem:[#allocation5 + $0xc0] sm:$0xff]
        %v2289 = vld [vmem:[#allocation5 + $0xc8] sm:$0xff]
        %v2290 = vld [vmem:[#allocation5 + $0xd0] sm:$0xff]
        %v2291 = vld [vmem:[#allocation5 + $0xd8] sm:$0xff]
        %v2292 = vld [vmem:[#allocation5 + $0xe0] sm:$0xff]
        %v2293 = vld [vmem:[#allocation5 + $0xe8] sm:$0xff]
        %v2294 = vld [vmem:[#allocation5 + $0xf0] sm:$0xff]
        %v2295 = vld [vmem:[#allocation5 + $0xf8] sm:$0xff]
        %v2296 = vld [vmem:[#allocation5 + $0x100] sm:$0xff]
        %v2297 = vld [vmem:[#allocation5 + $0x108] sm:$0xff]
        %v2298 = vld [vmem:[#allocation5 + $0x110] sm:$0xff]
        %v2299 = vld [vmem:[#allocation5 + $0x118] sm:$0xff]
        %v2300 = vld [vmem:[#allocation5 + $0x120] sm:$0xff]
        %v2301 = vld [vmem:[#allocation5 + $0x128] sm:$0xff]
        %v2302 = vld [vmem:[#allocation5 + $0x130] sm:$0xff]
        %v2303 = vld [vmem:[#allocation5 + $0x138] sm:$0xff]
        %v2304 = vld [vmem:[#allocation5 + $0x140] sm:$0xff]
        %v2305 = vld [vmem:[#allocation5 + $0x148] sm:$0xff]
        %v2306 = vld [vmem:[#allocation5 + $0x150] sm:$0xff]
        %v2307 = vld [vmem:[#allocation5 + $0x158] sm:$0xff]
        %v2308 = vld [vmem:[#allocation5 + $0x160] sm:$0xff]
        %v2309 = vld [vmem:[#allocation5 + $0x168] sm:$0xff]
        %v2310 = vld [vmem:[#allocation5 + $0x170] sm:$0xff]
        %v2311 = vld [vmem:[#allocation5 + $0x178] sm:$0xff]
        %v2312 = vld [vmem:[#allocation5 + $0x180] sm:$0xff]
        %v2313 = vld [vmem:[#allocation5 + $0x188] sm:$0xff]
        %v2314 = vld [vmem:[#allocation5 + $0x190] sm:$0xff]
        %v2315 = vld [vmem:[#allocation5 + $0x198] sm:$0xff]
        %v2316 = vld [vmem:[#allocation5 + $0x1a0] sm:$0xff]
        %v2317 = vld [vmem:[#allocation5 + $0x1a8] sm:$0xff]
        %v2318 = vld [vmem:[#allocation5 + $0x1b0] sm:$0xff]
        %v2319 = vld [vmem:[#allocation5 + $0x1b8] sm:$0xff]
        %v2320 = vld [vmem:[#allocation5 + $0x1c0] sm:$0xff]
        %v2321 = vld [vmem:[#allocation5 + $0x1c8] sm:$0xff]
        %v2322 = vld [vmem:[#allocation5 + $0x1d0] sm:$0xff]
        %v2323 = vld [vmem:[#allocation5 + $0x1d8] sm:$0xff]
        %v2324 = vld [vmem:[#allocation5 + $0x1e0] sm:$0xff]
        %v2325 = vld [vmem:[#allocation5 + $0x1e8] sm:$0xff]
        %v2326 = vld [vmem:[#allocation5 + $0x1f0] sm:$0xff]
        %v2327 = vld [vmem:[#allocation5 + $0x1f8] sm:$0xff]
        %v2328 = vld [vmem:[#allocation7] sm:$0xff]
        %v2329 = vld [vmem:[#allocation7 + $0x8] sm:$0xff]
        %v2330 = vld [vmem:[#allocation7 + $0x10] sm:$0xff]
        %v2331 = vld [vmem:[#allocation7 + $0x18] sm:$0xff]
        %v2332 = vld [vmem:[#allocation7 + $0x20] sm:$0xff]
        %v2333 = vld [vmem:[#allocation7 + $0x28] sm:$0xff]
        %v2334 = vld [vmem:[#allocation7 + $0x30] sm:$0xff]
        %v2335 = vld [vmem:[#allocation7 + $0x38] sm:$0xff]
        %v2336 = vld [vmem:[#allocation7 + $0x40] sm:$0xff]
        %v2337 = vld [vmem:[#allocation7 + $0x48] sm:$0xff]
        %v2338 = vld [vmem:[#allocation7 + $0x50] sm:$0xff]
        %v2339 = vld [vmem:[#allocation7 + $0x58] sm:$0xff]
        %v2340 = vld [vmem:[#allocation7 + $0x60] sm:$0xff]
        %v2341 = vld [vmem:[#allocation7 + $0x68] sm:$0xff]
        %v2342 = vld [vmem:[#allocation7 + $0x70] sm:$0xff]
        %v2343 = vld [vmem:[#allocation7 + $0x78] sm:$0xff]
        %v2344 = vld [vmem:[#allocation7 + $0x80] sm:$0xff]
        %v2345 = vld [vmem:[#allocation7 + $0x88] sm:$0xff]
        %v2346 = vld [vmem:[#allocation7 + $0x90] sm:$0xff]
        %v2347 = vld [vmem:[#allocation7 + $0x98] sm:$0xff]
        %v2348 = vld [vmem:[#allocation7 + $0xa0] sm:$0xff]
        %v2349 = vld [vmem:[#allocation7 + $0xa8] sm:$0xff]
        %v2350 = vld [vmem:[#allocation7 + $0xb0] sm:$0xff]
        %v2351 = vld [vmem:[#allocation7 + $0xb8] sm:$0xff]
        %v2352 = vld [vmem:[#allocation7 + $0xc0] sm:$0xff]
        %v2353 = vld [vmem:[#allocation7 + $0xc8] sm:$0xff]
        %v2354 = vld [vmem:[#allocation7 + $0xd0] sm:$0xff]
        %v2355 = vld [vmem:[#allocation7 + $0xd8] sm:$0xff]
        %v2356 = vld [vmem:[#allocation7 + $0xe0] sm:$0xff]
        %v2357 = vld [vmem:[#allocation7 + $0xe8] sm:$0xff]
        %v2358 = vld [vmem:[#allocation7 + $0xf0] sm:$0xff]
        %v2359 = vld [vmem:[#allocation7 + $0xf8] sm:$0xff]
        %v2360 = vld [vmem:[#allocation7 + $0x100] sm:$0xff]
        %v2361 = vld [vmem:[#allocation7 + $0x108] sm:$0xff]
        %v2362 = vld [vmem:[#allocation7 + $0x110] sm:$0xff]
        %v2363 = vld [vmem:[#allocation7 + $0x118] sm:$0xff]
        %v2364 = vld [vmem:[#allocation7 + $0x120] sm:$0xff]
        %v2365 = vld [vmem:[#allocation7 + $0x128] sm:$0xff]
        %v2366 = vld [vmem:[#allocation7 + $0x130] sm:$0xff]
        %v2367 = vld [vmem:[#allocation7 + $0x138] sm:$0xff]
        %v2368 = vld [vmem:[#allocation7 + $0x140] sm:$0xff]
        %v2369 = vld [vmem:[#allocation7 + $0x148] sm:$0xff]
        %v2370 = vld [vmem:[#allocation7 + $0x150] sm:$0xff]
        %v2371 = vld [vmem:[#allocation7 + $0x158] sm:$0xff]
        %v2372 = vld [vmem:[#allocation7 + $0x160] sm:$0xff]
        %v2373 = vld [vmem:[#allocation7 + $0x168] sm:$0xff]
        %v2374 = vld [vmem:[#allocation7 + $0x170] sm:$0xff]
        %v2375 = vld [vmem:[#allocation7 + $0x178] sm:$0xff]
        %v2376 = vld [vmem:[#allocation7 + $0x180] sm:$0xff]
        %v2377 = vld [vmem:[#allocation7 + $0x188] sm:$0xff]
        %v2378 = vld [vmem:[#allocation7 + $0x190] sm:$0xff]
        %v2379 = vld [vmem:[#allocation7 + $0x198] sm:$0xff]
        %v2380 = vld [vmem:[#allocation7 + $0x1a0] sm:$0xff]
        %v2381 = vld [vmem:[#allocation7 + $0x1a8] sm:$0xff]
        %v2382 = vld [vmem:[#allocation7 + $0x1b0] sm:$0xff]
        %v2383 = vld [vmem:[#allocation7 + $0x1b8] sm:$0xff]
        %v2384 = vld [vmem:[#allocation7 + $0x1c0] sm:$0xff]
        %v2385 = vld [vmem:[#allocation7 + $0x1c8] sm:$0xff]
        %v2386 = vld [vmem:[#allocation7 + $0x1d0] sm:$0xff]
        %v2387 = vld [vmem:[#allocation7 + $0x1d8] sm:$0xff]
        %v2388 = vld [vmem:[#allocation7 + $0x1e0] sm:$0xff]
        %v2389 = vld [vmem:[#allocation7 + $0x1e8] sm:$0xff]
        %v2390 = vld [vmem:[#allocation7 + $0x1f0] sm:$0xff]
        %v2391 = vld [vmem:[#allocation7 + $0x1f8] sm:$0xff]
        %v2392 = vmul.f32 %v2264, %v2136
        %v2393 = vmul.f32 %v2265, %v2137
        %v2394 = vmul.f32 %v2266, %v2138
        %v2395 = vmul.f32 %v2267, %v2139
        %v2396 = vmul.f32 %v2268, %v2140
        %v2397 = vmul.f32 %v2269, %v2141
        %v2398 = vmul.f32 %v2270, %v2142
        %v2399 = vmul.f32 %v2271, %v2143
        %v2400 = vmul.f32 %v2272, %v2144
        %v2401 = vmul.f32 %v2273, %v2145
        %v2402 = vmul.f32 %v2274, %v2146
        %v2403 = vmul.f32 %v2275, %v2147
        %v2404 = vmul.f32 %v2276, %v2148
        %v2405 = vmul.f32 %v2277, %v2149
        %v2406 = vmul.f32 %v2278, %v2150
        %v2407 = vmul.f32 %v2279, %v2151
        %v2408 = vmul.f32 %v2280, %v2152
        %v2409 = vmul.f32 %v2281, %v2153
        %v2410 = vmul.f32 %v2282, %v2154
        %v2411 = vmul.f32 %v2283, %v2155
        %v2412 = vmul.f32 %v2284, %v2156
        %v2413 = vmul.f32 %v2285, %v2157
        %v2414 = vmul.f32 %v2286, %v2158
        %v2415 = vmul.f32 %v2287, %v2159
        %v2416 = vmul.f32 %v2288, %v2160
        %v2417 = vmul.f32 %v2289, %v2161
        %v2418 = vmul.f32 %v2290, %v2162
        %v2419 = vmul.f32 %v2291, %v2163
        %v2420 = vmul.f32 %v2292, %v2164
        %v2421 = vmul.f32 %v2293, %v2165
        %v2422 = vmul.f32 %v2294, %v2166
        %v2423 = vmul.f32 %v2295, %v2167
        %v2424 = vmul.f32 %v2296, %v2168
        %v2425 = vmul.f32 %v2297, %v2169
        %v2426 = vmul.f32 %v2298, %v2170
        %v2427 = vmul.f32 %v2299, %v2171
        %v2428 = vmul.f32 %v2300, %v2172
        %v2429 = vmul.f32 %v2301, %v2173
        %v2430 = vmul.f32 %v2302, %v2174
        %v2431 = vmul.f32 %v2303, %v2175
        %v2432 = vmul.f32 %v2304, %v2176
        %v2433 = vmul.f32 %v2305, %v2177
        %v2434 = vmul.f32 %v2306, %v2178
        %v2435 = vmul.f32 %v2307, %v2179
        %v2436 = vmul.f32 %v2308, %v2180
        %v2437 = vmul.f32 %v2309, %v2181
        %v2438 = vmul.f32 %v2310, %v2182
        %v2439 = vmul.f32 %v2311, %v2183
        %v2440 = vmul.f32 %v2312, %v2184
        %v2441 = vmul.f32 %v2313, %v2185
        %v2442 = vmul.f32 %v2314, %v2186
        %v2443 = vmul.f32 %v2315, %v2187
        %v2444 = vmul.f32 %v2316, %v2188
        %v2445 = vmul.f32 %v2317, %v2189
        %v2446 = vmul.f32 %v2318, %v2190
        %v2447 = vmul.f32 %v2319, %v2191
        %v2448 = vmul.f32 %v2320, %v2192
        %v2449 = vmul.f32 %v2321, %v2193
        %v2450 = vmul.f32 %v2322, %v2194
        %v2451 = vmul.f32 %v2323, %v2195
        %v2452 = vmul.f32 %v2324, %v2196
        %v2453 = vmul.f32 %v2325, %v2197
        %v2454 = vmul.f32 %v2326, %v2198
        %v2455 = vmul.f32 %v2327, %v2199
        %v2456 = vmul.f32 %v2328, %v2200
        %v2457 = vmul.f32 %v2329, %v2201
        %v2458 = vmul.f32 %v2330, %v2202
        %v2459 = vmul.f32 %v2331, %v2203
        %v2460 = vmul.f32 %v2332, %v2204
        %v2461 = vmul.f32 %v2333, %v2205
        %v2462 = vmul.f32 %v2334, %v2206
        %v2463 = vmul.f32 %v2335, %v2207
        %v2464 = vmul.f32 %v2336, %v2208
        %v2465 = vmul.f32 %v2337, %v2209
        %v2466 = vmul.f32 %v2338, %v2210
        %v2467 = vmul.f32 %v2339, %v2211
        %v2468 = vmul.f32 %v2340, %v2212
        %v2469 = vmul.f32 %v2341, %v2213
        %v2470 = vmul.f32 %v2342, %v2214
        %v2471 = vmul.f32 %v2343, %v2215
        %v2472 = vmul.f32 %v2344, %v2216
        %v2473 = vmul.f32 %v2345, %v2217
        %v2474 = vmul.f32 %v2346, %v2218
        %v2475 = vmul.f32 %v2347, %v2219
        %v2476 = vmul.f32 %v2348, %v2220
        %v2477 = vmul.f32 %v2349, %v2221
        %v2478 = vmul.f32 %v2350, %v2222
        %v2479 = vmul.f32 %v2351, %v2223
        %v2480 = vmul.f32 %v2352, %v2224
        %v2481 = vmul.f32 %v2353, %v2225
        %v2482 = vmul.f32 %v2354, %v2226
        %v2483 = vmul.f32 %v2355, %v2227
        %v2484 = vmul.f32 %v2356, %v2228
        %v2485 = vmul.f32 %v2357, %v2229
        %v2486 = vmul.f32 %v2358, %v2230
        %v2487 = vmul.f32 %v2359, %v2231
        %v2488 = vmul.f32 %v2360, %v2232
        %v2489 = vmul.f32 %v2361, %v2233
        %v2490 = vmul.f32 %v2362, %v2234
        %v2491 = vmul.f32 %v2363, %v2235
        %v2492 = vmul.f32 %v2364, %v2236
        %v2493 = vmul.f32 %v2365, %v2237
        %v2494 = vmul.f32 %v2366, %v2238
        %v2495 = vmul.f32 %v2367, %v2239
        %v2496 = vmul.f32 %v2368, %v2240
        %v2497 = vmul.f32 %v2369, %v2241
        %v2498 = vmul.f32 %v2370, %v2242
        %v2499 = vmul.f32 %v2371, %v2243
        %v2500 = vmul.f32 %v2372, %v2244
        %v2501 = vmul.f32 %v2373, %v2245
        %v2502 = vmul.f32 %v2374, %v2246
        %v2503 = vmul.f32 %v2375, %v2247
        %v2504 = vmul.f32 %v2376, %v2248
        %v2505 = vmul.f32 %v2377, %v2249
        %v2506 = vmul.f32 %v2378, %v2250
        %v2507 = vmul.f32 %v2379, %v2251
        %v2508 = vmul.f32 %v2380, %v2252
        %v2509 = vmul.f32 %v2381, %v2253
        %v2510 = vmul.f32 %v2382, %v2254
        %v2511 = vmul.f32 %v2383, %v2255
        %v2512 = vmul.f32 %v2384, %v2256
        %v2513 = vmul.f32 %v2385, %v2257
        %v2514 = vmul.f32 %v2386, %v2258
        %v2515 = vmul.f32 %v2387, %v2259
        %v2516 = vmul.f32 %v2388, %v2260
        %v2517 = vmul.f32 %v2389, %v2261
        %v2518 = vmul.f32 %v2390, %v2262
        %v2519 = vmul.f32 %v2391, %v2263
        %v2520 = vsub.f32 %v2392, %v2456
        %v2521 = vsub.f32 %v2393, %v2457
        %v2522 = vsub.f32 %v2394, %v2458
        %v2523 = vsub.f32 %v2395, %v2459
        %v2524 = vsub.f32 %v2396, %v2460
        %v2525 = vsub.f32 %v2397, %v2461
        %v2526 = vsub.f32 %v2398, %v2462
        %v2527 = vsub.f32 %v2399, %v2463
        %v2528 = vsub.f32 %v2400, %v2464
        %v2529 = vsub.f32 %v2401, %v2465
        %v2530 = vsub.f32 %v2402, %v2466
        %v2531 = vsub.f32 %v2403, %v2467
        %v2532 = vsub.f32 %v2404, %v2468
        %v2533 = vsub.f32 %v2405, %v2469
        %v2534 = vsub.f32 %v2406, %v2470
        %v2535 = vsub.f32 %v2407, %v2471
        %v2536 = vsub.f32 %v2408, %v2472
        %v2537 = vsub.f32 %v2409, %v2473
        %v2538 = vsub.f32 %v2410, %v2474
        %v2539 = vsub.f32 %v2411, %v2475
        %v2540 = vsub.f32 %v2412, %v2476
        %v2541 = vsub.f32 %v2413, %v2477
        %v2542 = vsub.f32 %v2414, %v2478
        %v2543 = vsub.f32 %v2415, %v2479
        %v2544 = vsub.f32 %v2416, %v2480
        %v2545 = vsub.f32 %v2417, %v2481
        %v2546 = vsub.f32 %v2418, %v2482
        %v2547 = vsub.f32 %v2419, %v2483
        %v2548 = vsub.f32 %v2420, %v2484
        %v2549 = vsub.f32 %v2421, %v2485
        %v2550 = vsub.f32 %v2422, %v2486
        %v2551 = vsub.f32 %v2423, %v2487
        %v2552 = vsub.f32 %v2424, %v2488
        %v2553 = vsub.f32 %v2425, %v2489
        %v2554 = vsub.f32 %v2426, %v2490
        %v2555 = vsub.f32 %v2427, %v2491
        %v2556 = vsub.f32 %v2428, %v2492
        %v2557 = vsub.f32 %v2429, %v2493
        %v2558 = vsub.f32 %v2430, %v2494
        %v2559 = vsub.f32 %v2431, %v2495
        %v2560 = vsub.f32 %v2432, %v2496
        %v2561 = vsub.f32 %v2433, %v2497
        %v2562 = vsub.f32 %v2434, %v2498
        %v2563 = vsub.f32 %v2435, %v2499
        %v2564 = vsub.f32 %v2436, %v2500
        %v2565 = vsub.f32 %v2437, %v2501
        %v2566 = vsub.f32 %v2438, %v2502
        %v2567 = vsub.f32 %v2439, %v2503
        %v2568 = vsub.f32 %v2440, %v2504
        %v2569 = vsub.f32 %v2441, %v2505
        %v2570 = vsub.f32 %v2442, %v2506
        %v2571 = vsub.f32 %v2443, %v2507
        %v2572 = vsub.f32 %v2444, %v2508
        %v2573 = vsub.f32 %v2445, %v2509
        %v2574 = vsub.f32 %v2446, %v2510
        %v2575 = vsub.f32 %v2447, %v2511
        %v2576 = vsub.f32 %v2448, %v2512
        %v2577 = vsub.f32 %v2449, %v2513
        %v2578 = vsub.f32 %v2450, %v2514
        %v2579 = vsub.f32 %v2451, %v2515
        %v2580 = vsub.f32 %v2452, %v2516
        %v2581 = vsub.f32 %v2453, %v2517
        %v2582 = vsub.f32 %v2454, %v2518
        %v2583 = vsub.f32 %v2455, %v2519
        %v2584 = vmul.f32 %v2264, %v2200
        %v2585 = vmul.f32 %v2265, %v2201
        %v2586 = vmul.f32 %v2266, %v2202
        %v2587 = vmul.f32 %v2267, %v2203
        %v2588 = vmul.f32 %v2268, %v2204
        %v2589 = vmul.f32 %v2269, %v2205
        %v2590 = vmul.f32 %v2270, %v2206
        %v2591 = vmul.f32 %v2271, %v2207
        %v2592 = vmul.f32 %v2272, %v2208
        %v2593 = vmul.f32 %v2273, %v2209
        %v2594 = vmul.f32 %v2274, %v2210
        %v2595 = vmul.f32 %v2275, %v2211
        %v2596 = vmul.f32 %v2276, %v2212
        %v2597 = vmul.f32 %v2277, %v2213
        %v2598 = vmul.f32 %v2278, %v2214
        %v2599 = vmul.f32 %v2279, %v2215
        %v2600 = vmul.f32 %v2280, %v2216
        %v2601 = vmul.f32 %v2281, %v2217
        %v2602 = vmul.f32 %v2282, %v2218
        %v2603 = vmul.f32 %v2283, %v2219
        %v2604 = vmul.f32 %v2284, %v2220
        %v2605 = vmul.f32 %v2285, %v2221
        %v2606 = vmul.f32 %v2286, %v2222
        %v2607 = vmul.f32 %v2287, %v2223
        %v2608 = vmul.f32 %v2288, %v2224
        %v2609 = vmul.f32 %v2289, %v2225
        %v2610 = vmul.f32 %v2290, %v2226
        %v2611 = vmul.f32 %v2291, %v2227
        %v2612 = vmul.f32 %v2292, %v2228
        %v2613 = vmul.f32 %v2293, %v2229
        %v2614 = vmul.f32 %v2294, %v2230
        %v2615 = vmul.f32 %v2295, %v2231
        %v2616 = vmul.f32 %v2296, %v2232
        %v2617 = vmul.f32 %v2297, %v2233
        %v2618 = vmul.f32 %v2298, %v2234
        %v2619 = vmul.f32 %v2299, %v2235
        %v2620 = vmul.f32 %v2300, %v2236
        %v2621 = vmul.f32 %v2301, %v2237
        %v2622 = vmul.f32 %v2302, %v2238
        %v2623 = vmul.f32 %v2303, %v2239
        %v2624 = vmul.f32 %v2304, %v2240
        %v2625 = vmul.f32 %v2305, %v2241
        %v2626 = vmul.f32 %v2306, %v2242
        %v2627 = vmul.f32 %v2307, %v2243
        %v2628 = vmul.f32 %v2308, %v2244
        %v2629 = vmul.f32 %v2309, %v2245
        %v2630 = vmul.f32 %v2310, %v2246
        %v2631 = vmul.f32 %v2311, %v2247
        %v2632 = vmul.f32 %v2312, %v2248
        %v2633 = vmul.f32 %v2313, %v2249
        %v2634 = vmul.f32 %v2314, %v2250
        %v2635 = vmul.f32 %v2315, %v2251
        %v2636 = vmul.f32 %v2316, %v2252
        %v2637 = vmul.f32 %v2317, %v2253
        %v2638 = vmul.f32 %v2318, %v2254
        %v2639 = vmul.f32 %v2319, %v2255
        %v2640 = vmul.f32 %v2320, %v2256
        %v2641 = vmul.f32 %v2321, %v2257
        %v2642 = vmul.f32 %v2322, %v2258
        %v2643 = vmul.f32 %v2323, %v2259
        %v2644 = vmul.f32 %v2324, %v2260
        %v2645 = vmul.f32 %v2325, %v2261
        %v2646 = vmul.f32 %v2326, %v2262
        %v2647 = vmul.f32 %v2327, %v2263
        %v2648 = vmul.f32 %v2328, %v2136
        %v2649 = vmul.f32 %v2329, %v2137
        %v2650 = vmul.f32 %v2330, %v2138
        %v2651 = vmul.f32 %v2331, %v2139
        %v2652 = vmul.f32 %v2332, %v2140
        %v2653 = vmul.f32 %v2333, %v2141
        %v2654 = vmul.f32 %v2334, %v2142
        %v2655 = vmul.f32 %v2335, %v2143
        %v2656 = vmul.f32 %v2336, %v2144
        %v2657 = vmul.f32 %v2337, %v2145
        %v2658 = vmul.f32 %v2338, %v2146
        %v2659 = vmul.f32 %v2339, %v2147
        %v2660 = vmul.f32 %v2340, %v2148
        %v2661 = vmul.f32 %v2341, %v2149
        %v2662 = vmul.f32 %v2342, %v2150
        %v2663 = vmul.f32 %v2343, %v2151
        %v2664 = vmul.f32 %v2344, %v2152
        %v2665 = vmul.f32 %v2345, %v2153
        %v2666 = vmul.f32 %v2346, %v2154
        %v2667 = vmul.f32 %v2347, %v2155
        %v2668 = vmul.f32 %v2348, %v2156
        %v2669 = vmul.f32 %v2349, %v2157
        %v2670 = vmul.f32 %v2350, %v2158
        %v2671 = vmul.f32 %v2351, %v2159
        %v2672 = vmul.f32 %v2352, %v2160
        %v2673 = vmul.f32 %v2353, %v2161
        %v2674 = vmul.f32 %v2354, %v2162
        %v2675 = vmul.f32 %v2355, %v2163
        %v2676 = vmul.f32 %v2356, %v2164
        %v2677 = vmul.f32 %v2357, %v2165
        %v2678 = vmul.f32 %v2358, %v2166
        %v2679 = vmul.f32 %v2359, %v2167
        %v2680 = vmul.f32 %v2360, %v2168
        %v2681 = vmul.f32 %v2361, %v2169
        %v2682 = vmul.f32 %v2362, %v2170
        %v2683 = vmul.f32 %v2363, %v2171
        %v2684 = vmul.f32 %v2364, %v2172
        %v2685 = vmul.f32 %v2365, %v2173
        %v2686 = vmul.f32 %v2366, %v2174
        %v2687 = vmul.f32 %v2367, %v2175
        %v2688 = vmul.f32 %v2368, %v2176
        %v2689 = vmul.f32 %v2369, %v2177
        %v2690 = vmul.f32 %v2370, %v2178
        %v2691 = vmul.f32 %v2371, %v2179
        %v2692 = vmul.f32 %v2372, %v2180
        %v2693 = vmul.f32 %v2373, %v2181
        %v2694 = vmul.f32 %v2374, %v2182
        %v2695 = vmul.f32 %v2375, %v2183
        %v2696 = vmul.f32 %v2376, %v2184
        %v2697 = vmul.f32 %v2377, %v2185
        %v2698 = vmul.f32 %v2378, %v2186
        %v2699 = vmul.f32 %v2379, %v2187
        %v2700 = vmul.f32 %v2380, %v2188
        %v2701 = vmul.f32 %v2381, %v2189
        %v2702 = vmul.f32 %v2382, %v2190
        %v2703 = vmul.f32 %v2383, %v2191
        %v2704 = vmul.f32 %v2384, %v2192
        %v2705 = vmul.f32 %v2385, %v2193
        %v2706 = vmul.f32 %v2386, %v2194
        %v2707 = vmul.f32 %v2387, %v2195
        %v2708 = vmul.f32 %v2388, %v2196
        %v2709 = vmul.f32 %v2389, %v2197
        %v2710 = vmul.f32 %v2390, %v2198
        %v2711 = vmul.f32 %v2391, %v2199
        %v2712 = vadd.f32 %v2584, %v2648
        %v2713 = vadd.f32 %v2585, %v2649
        %v2714 = vadd.f32 %v2586, %v2650
        %v2715 = vadd.f32 %v2587, %v2651
        %v2716 = vadd.f32 %v2588, %v2652
        %v2717 = vadd.f32 %v2589, %v2653
        %v2718 = vadd.f32 %v2590, %v2654
        %v2719 = vadd.f32 %v2591, %v2655
        %v2720 = vadd.f32 %v2592, %v2656
        %v2721 = vadd.f32 %v2593, %v2657
        %v2722 = vadd.f32 %v2594, %v2658
        %v2723 = vadd.f32 %v2595, %v2659
        %v2724 = vadd.f32 %v2596, %v2660
        %v2725 = vadd.f32 %v2597, %v2661
        %v2726 = vadd.f32 %v2598, %v2662
        %v2727 = vadd.f32 %v2599, %v2663
        %v2728 = vadd.f32 %v2600, %v2664
        %v2729 = vadd.f32 %v2601, %v2665
        %v2730 = vadd.f32 %v2602, %v2666
        %v2731 = vadd.f32 %v2603, %v2667
        %v2732 = vadd.f32 %v2604, %v2668
        %v2733 = vadd.f32 %v2605, %v2669
        %v2734 = vadd.f32 %v2606, %v2670
        %v2735 = vadd.f32 %v2607, %v2671
        %v2736 = vadd.f32 %v2608, %v2672
        %v2737 = vadd.f32 %v2609, %v2673
        %v2738 = vadd.f32 %v2610, %v2674
        %v2739 = vadd.f32 %v2611, %v2675
        %v2740 = vadd.f32 %v2612, %v2676
        %v2741 = vadd.f32 %v2613, %v2677
        %v2742 = vadd.f32 %v2614, %v2678
        %v2743 = vadd.f32 %v2615, %v2679
        %v2744 = vadd.f32 %v2616, %v2680
        %v2745 = vadd.f32 %v2617, %v2681
        %v2746 = vadd.f32 %v2618, %v2682
        %v2747 = vadd.f32 %v2619, %v2683
        %v2748 = vadd.f32 %v2620, %v2684
        %v2749 = vadd.f32 %v2621, %v2685
        %v2750 = vadd.f32 %v2622, %v2686
        %v2751 = vadd.f32 %v2623, %v2687
        %v2752 = vadd.f32 %v2624, %v2688
        %v2753 = vadd.f32 %v2625, %v2689
        %v2754 = vadd.f32 %v2626, %v2690
        %v2755 = vadd.f32 %v2627, %v2691
        %v2756 = vadd.f32 %v2628, %v2692
        %v2757 = vadd.f32 %v2629, %v2693
        %v2758 = vadd.f32 %v2630, %v2694
        %v2759 = vadd.f32 %v2631, %v2695
        %v2760 = vadd.f32 %v2632, %v2696
        %v2761 = vadd.f32 %v2633, %v2697
        %v2762 = vadd.f32 %v2634, %v2698
        %v2763 = vadd.f32 %v2635, %v2699
        %v2764 = vadd.f32 %v2636, %v2700
        %v2765 = vadd.f32 %v2637, %v2701
        %v2766 = vadd.f32 %v2638, %v2702
        %v2767 = vadd.f32 %v2639, %v2703
        %v2768 = vadd.f32 %v2640, %v2704
        %v2769 = vadd.f32 %v2641, %v2705
        %v2770 = vadd.f32 %v2642, %v2706
        %v2771 = vadd.f32 %v2643, %v2707
        %v2772 = vadd.f32 %v2644, %v2708
        %v2773 = vadd.f32 %v2645, %v2709
        %v2774 = vadd.f32 %v2646, %v2710
        %v2775 = vadd.f32 %v2647, %v2711
        %v2776 = vld [vmem:[#allocation11] sm:$0xff]
        %v2777 = vld [vmem:[#allocation11 + $0x8] sm:$0xff]
        %v2778 = vld [vmem:[#allocation11 + $0x10] sm:$0xff]
        %v2779 = vld [vmem:[#allocation11 + $0x18] sm:$0xff]
        %v2780 = vld [vmem:[#allocation11 + $0x20] sm:$0xff]
        %v2781 = vld [vmem:[#allocation11 + $0x28] sm:$0xff]
        %v2782 = vld [vmem:[#allocation11 + $0x30] sm:$0xff]
        %v2783 = vld [vmem:[#allocation11 + $0x38] sm:$0xff]
        %v2784 = vld [vmem:[#allocation11 + $0x40] sm:$0xff]
        %v2785 = vld [vmem:[#allocation11 + $0x48] sm:$0xff]
        %v2786 = vld [vmem:[#allocation11 + $0x50] sm:$0xff]
        %v2787 = vld [vmem:[#allocation11 + $0x58] sm:$0xff]
        %v2788 = vld [vmem:[#allocation11 + $0x60] sm:$0xff]
        %v2789 = vld [vmem:[#allocation11 + $0x68] sm:$0xff]
        %v2790 = vld [vmem:[#allocation11 + $0x70] sm:$0xff]
        %v2791 = vld [vmem:[#allocation11 + $0x78] sm:$0xff]
        %v2792 = vld [vmem:[#allocation11 + $0x80] sm:$0xff]
        %v2793 = vld [vmem:[#allocation11 + $0x88] sm:$0xff]
        %v2794 = vld [vmem:[#allocation11 + $0x90] sm:$0xff]
        %v2795 = vld [vmem:[#allocation11 + $0x98] sm:$0xff]
        %v2796 = vld [vmem:[#allocation11 + $0xa0] sm:$0xff]
        %v2797 = vld [vmem:[#allocation11 + $0xa8] sm:$0xff]
        %v2798 = vld [vmem:[#allocation11 + $0xb0] sm:$0xff]
        %v2799 = vld [vmem:[#allocation11 + $0xb8] sm:$0xff]
        %v2800 = vld [vmem:[#allocation11 + $0xc0] sm:$0xff]
        %v2801 = vld [vmem:[#allocation11 + $0xc8] sm:$0xff]
        %v2802 = vld [vmem:[#allocation11 + $0xd0] sm:$0xff]
        %v2803 = vld [vmem:[#allocation11 + $0xd8] sm:$0xff]
        %v2804 = vld [vmem:[#allocation11 + $0xe0] sm:$0xff]
        %v2805 = vld [vmem:[#allocation11 + $0xe8] sm:$0xff]
        %v2806 = vld [vmem:[#allocation11 + $0xf0] sm:$0xff]
        %v2807 = vld [vmem:[#allocation11 + $0xf8] sm:$0xff]
        %v2808 = vld [vmem:[#allocation13] sm:$0xff]
        %v2809 = vld [vmem:[#allocation13 + $0x8] sm:$0xff]
        %v2810 = vld [vmem:[#allocation13 + $0x10] sm:$0xff]
        %v2811 = vld [vmem:[#allocation13 + $0x18] sm:$0xff]
        %v2812 = vld [vmem:[#allocation13 + $0x20] sm:$0xff]
        %v2813 = vld [vmem:[#allocation13 + $0x28] sm:$0xff]
        %v2814 = vld [vmem:[#allocation13 + $0x30] sm:$0xff]
        %v2815 = vld [vmem:[#allocation13 + $0x38] sm:$0xff]
        %v2816 = vld [vmem:[#allocation13 + $0x40] sm:$0xff]
        %v2817 = vld [vmem:[#allocation13 + $0x48] sm:$0xff]
        %v2818 = vld [vmem:[#allocation13 + $0x50] sm:$0xff]
        %v2819 = vld [vmem:[#allocation13 + $0x58] sm:$0xff]
        %v2820 = vld [vmem:[#allocation13 + $0x60] sm:$0xff]
        %v2821 = vld [vmem:[#allocation13 + $0x68] sm:$0xff]
        %v2822 = vld [vmem:[#allocation13 + $0x70] sm:$0xff]
        %v2823 = vld [vmem:[#allocation13 + $0x78] sm:$0xff]
        %v2824 = vld [vmem:[#allocation13 + $0x80] sm:$0xff]
        %v2825 = vld [vmem:[#allocation13 + $0x88] sm:$0xff]
        %v2826 = vld [vmem:[#allocation13 + $0x90] sm:$0xff]
        %v2827 = vld [vmem:[#allocation13 + $0x98] sm:$0xff]
        %v2828 = vld [vmem:[#allocation13 + $0xa0] sm:$0xff]
        %v2829 = vld [vmem:[#allocation13 + $0xa8] sm:$0xff]
        %v2830 = vld [vmem:[#allocation13 + $0xb0] sm:$0xff]
        %v2831 = vld [vmem:[#allocation13 + $0xb8] sm:$0xff]
        %v2832 = vld [vmem:[#allocation13 + $0xc0] sm:$0xff]
        %v2833 = vld [vmem:[#allocation13 + $0xc8] sm:$0xff]
        %v2834 = vld [vmem:[#allocation13 + $0xd0] sm:$0xff]
        %v2835 = vld [vmem:[#allocation13 + $0xd8] sm:$0xff]
        %v2836 = vld [vmem:[#allocation13 + $0xe0] sm:$0xff]
        %v2837 = vld [vmem:[#allocation13 + $0xe8] sm:$0xff]
        %v2838 = vld [vmem:[#allocation13 + $0xf0] sm:$0xff]
        %v2839 = vld [vmem:[#allocation13 + $0xf8] sm:$0xff]
        %2840 = vmatprep.subr.mxu0 %v2839
        %2841 = vmatpush1.msra.mxu0 %v2838
        %2842 = vmatprep.subr.mxu0 %v2837
        %2843 = vmatpush1.msra.mxu0 %v2836
        %2844 = vmatprep.subr.mxu0 %v2835
        %2845 = vmatpush1.msra.mxu0 %v2834
        %2846 = vmatprep.subr.mxu0 %v2833
        %2847 = vmatpush1.msra.mxu0 %v2832
        %2848 = vmatprep.subr.mxu0 %v2831
        %2849 = vmatpush1.msra.mxu0 %v2830
        %2850 = vmatprep.subr.mxu0 %v2829
        %2851 = vmatpush1.msra.mxu0 %v2828
        %2852 = vmatprep.subr.mxu0 %v2827
        %2853 = vmatpush1.msra.mxu0 %v2826
        %2854 = vmatprep.subr.mxu0 %v2825
        %2855 = vmatpush1.msra.mxu0 %v2824
        %2856 = vmatprep.subr.mxu0 %v2823
        %2857 = vmatpush1.msra.mxu0 %v2822
        %2858 = vmatprep.subr.mxu0 %v2821
        %2859 = vmatpush1.msra.mxu0 %v2820
        %2860 = vmatprep.subr.mxu0 %v2819
        %2861 = vmatpush1.msra.mxu0 %v2818
        %2862 = vmatprep.subr.mxu0 %v2817
        %2863 = vmatpush1.msra.mxu0 %v2816
        %2864 = vmatprep.subr.mxu0 %v2815
        %2865 = vmatpush1.msra.mxu0 %v2814
        %2866 = vmatprep.subr.mxu0 %v2813
        %2867 = vmatpush1.msra.mxu0 %v2812
        %2868 = vmatprep.subr.mxu0 %v2811
        %2869 = vmatpush1.msra.mxu0 %v2810
        %2870 = vmatprep.subr.mxu0 %v2809
        %2871 = vmatpush1.msra.mxu0 %v2808
        %2872 = vmatprep.subr.mxu0 0.0
        %2873 = vmatpush2.msra.mxu0 0.0
        %2874 = vmatprep.subr.mxu0 0.0
        %2875 = vmatpush2.msra.mxu0 0.0
        %2876 = vmatprep.subr.mxu0 0.0
        %2877 = vmatpush2.msra.mxu0 0.0
        %2878 = vmatprep.subr.mxu0 0.0
        %2879 = vmatpush2.msra.mxu0 0.0
        %2880 = vmatprep.subr.mxu0 0.0
        %2881 = vmatpush2.msra.mxu0 0.0
        %2882 = vmatprep.subr.mxu0 0.0
        %2883 = vmatpush2.msra.mxu0 0.0
        %2884 = vmatprep.subr.mxu0 0.0
        %2885 = vmatpush2.msra.mxu0 0.0
        %2886 = vmatprep.subr.mxu0 0.0
        %2887 = vmatpush2.msra.mxu0 0.0
        %2888 = vmatprep.subr.mxu0 0.0
        %2889 = vmatpush2.msra.mxu0 0.0
        %2890 = vmatprep.subr.mxu0 0.0
        %2891 = vmatpush2.msra.mxu0 0.0
        %2892 = vmatprep.subr.mxu0 0.0
        %2893 = vmatpush2.msra.mxu0 0.0
        %2894 = vmatprep.subr.mxu0 0.0
        %2895 = vmatpush2.msra.mxu0 0.0
        %2896 = vmatprep.subr.mxu0 0.0
        %2897 = vmatpush2.msra.mxu0 0.0
        %2898 = vmatprep.subr.mxu0 0.0
        %2899 = vmatpush2.msra.mxu0 0.0
        %2900 = vmatprep.subr.mxu0 0.0
        %2901 = vmatpush2.msra.mxu0 0.0
        %2902 = vmatprep.subr.mxu0 0.0
        %2903 = vmatpush2.msra.mxu0 0.0
        %2904 = vmatprep.mubr.f32.mxu0 0.0
        %2905 = vmatmul.mubr.f32.gmra.mxu0 %v2712
        %v2906 = vpop.f32.mrf.mxu0
        %v2907 = vadd.f32 0.0, %v2906
        %v2908 = vpop.f32.mrf.mxu0
        %v2909 = vadd.f32 0.0, %v2908
        %2910 = vmatprep.mubr.f32.mxu0 0.0
        %2911 = vmatmul.mubr.f32.gmra.mxu0 %v2713
        %v2912 = vpop.f32.mrf.mxu0
        %v2913 = vadd.f32 0.0, %v2912
        %v2914 = vpop.f32.mrf.mxu0
        %v2915 = vadd.f32 0.0, %v2914
        %2916 = vmatprep.mubr.f32.mxu0 0.0
        %2917 = vmatmul.mubr.f32.gmra.mxu0 %v2714
        %v2918 = vpop.f32.mrf.mxu0
        %v2919 = vadd.f32 0.0, %v2918
        %v2920 = vpop.f32.mrf.mxu0
        %v2921 = vadd.f32 0.0, %v2920
        %2922 = vmatprep.mubr.f32.mxu0 0.0
        %2923 = vmatmul.mubr.f32.gmra.mxu0 %v2715
        %v2924 = vpop.f32.mrf.mxu0
        %v2925 = vadd.f32 0.0, %v2924
        %v2926 = vpop.f32.mrf.mxu0
        %v2927 = vadd.f32 0.0, %v2926
        %2928 = vmatprep.mubr.f32.mxu0 0.0
        %2929 = vmatmul.mubr.f32.gmra.mxu0 %v2716
        %v2930 = vpop.f32.mrf.mxu0
        %v2931 = vadd.f32 0.0, %v2930
        %v2932 = vpop.f32.mrf.mxu0
        %v2933 = vadd.f32 0.0, %v2932
        %2934 = vmatprep.mubr.f32.mxu0 0.0
        %2935 = vmatmul.mubr.f32.gmra.mxu0 %v2717
        %v2936 = vpop.f32.mrf.mxu0
        %v2937 = vadd.f32 0.0, %v2936
        %v2938 = vpop.f32.mrf.mxu0
        %v2939 = vadd.f32 0.0, %v2938
        %2940 = vmatprep.mubr.f32.mxu0 0.0
        %2941 = vmatmul.mubr.f32.gmra.mxu0 %v2718
        %v2942 = vpop.f32.mrf.mxu0
        %v2943 = vadd.f32 0.0, %v2942
        %v2944 = vpop.f32.mrf.mxu0
        %v2945 = vadd.f32 0.0, %v2944
        %2946 = vmatprep.mubr.f32.mxu0 0.0
        %2947 = vmatmul.mubr.f32.gmra.mxu0 %v2719
        %v2948 = vpop.f32.mrf.mxu0
        %v2949 = vadd.f32 0.0, %v2948
        %v2950 = vpop.f32.mrf.mxu0
        %v2951 = vadd.f32 0.0, %v2950
        %2952 = vmatprep.mubr.f32.mxu0 0.0
        %2953 = vmatmul.mubr.f32.gmra.mxu0 %v2720
        %v2954 = vpop.f32.mrf.mxu0
        %v2955 = vadd.f32 0.0, %v2954
        %v2956 = vpop.f32.mrf.mxu0
        %v2957 = vadd.f32 0.0, %v2956
        %2958 = vmatprep.mubr.f32.mxu0 0.0
        %2959 = vmatmul.mubr.f32.gmra.mxu0 %v2721
        %v2960 = vpop.f32.mrf.mxu0
        %v2961 = vadd.f32 0.0, %v2960
        %v2962 = vpop.f32.mrf.mxu0
        %v2963 = vadd.f32 0.0, %v2962
        %2964 = vmatprep.mubr.f32.mxu0 0.0
        %2965 = vmatmul.mubr.f32.gmra.mxu0 %v2722
        %v2966 = vpop.f32.mrf.mxu0
        %v2967 = vadd.f32 0.0, %v2966
        %v2968 = vpop.f32.mrf.mxu0
        %v2969 = vadd.f32 0.0, %v2968
        %2970 = vmatprep.mubr.f32.mxu0 0.0
        %2971 = vmatmul.mubr.f32.gmra.mxu0 %v2723
        %v2972 = vpop.f32.mrf.mxu0
        %v2973 = vadd.f32 0.0, %v2972
        %v2974 = vpop.f32.mrf.mxu0
        %v2975 = vadd.f32 0.0, %v2974
        %2976 = vmatprep.mubr.f32.mxu0 0.0
        %2977 = vmatmul.mubr.f32.gmra.mxu0 %v2724
        %v2978 = vpop.f32.mrf.mxu0
        %v2979 = vadd.f32 0.0, %v2978
        %v2980 = vpop.f32.mrf.mxu0
        %v2981 = vadd.f32 0.0, %v2980
        %2982 = vmatprep.mubr.f32.mxu0 0.0
        %2983 = vmatmul.mubr.f32.gmra.mxu0 %v2725
        %v2984 = vpop.f32.mrf.mxu0
        %v2985 = vadd.f32 0.0, %v2984
        %v2986 = vpop.f32.mrf.mxu0
        %v2987 = vadd.f32 0.0, %v2986
        %2988 = vmatprep.mubr.f32.mxu0 0.0
        %2989 = vmatmul.mubr.f32.gmra.mxu0 %v2726
        %v2990 = vpop.f32.mrf.mxu0
        %v2991 = vadd.f32 0.0, %v2990
        %v2992 = vpop.f32.mrf.mxu0
        %v2993 = vadd.f32 0.0, %v2992
        %2994 = vmatprep.mubr.f32.mxu0 0.0
        %2995 = vmatmul.mubr.f32.gmra.mxu0 %v2727
        %v2996 = vpop.f32.mrf.mxu0
        %v2997 = vadd.f32 0.0, %v2996
        %v2998 = vpop.f32.mrf.mxu0
        %v2999 = vadd.f32 0.0, %v2998
        %3000 = vmatprep.mubr.f32.mxu0 0.0
        %3001 = vmatmul.mubr.f32.gmra.mxu0 %v2728
        %v3002 = vpop.f32.mrf.mxu0
        %v3003 = vadd.f32 0.0, %v3002
        %v3004 = vpop.f32.mrf.mxu0
        %v3005 = vadd.f32 0.0, %v3004
        %3006 = vmatprep.mubr.f32.mxu0 0.0
        %3007 = vmatmul.mubr.f32.gmra.mxu0 %v2729
        %v3008 = vpop.f32.mrf.mxu0
        %v3009 = vadd.f32 0.0, %v3008
        %v3010 = vpop.f32.mrf.mxu0
        %v3011 = vadd.f32 0.0, %v3010
        %3012 = vmatprep.mubr.f32.mxu0 0.0
        %3013 = vmatmul.mubr.f32.gmra.mxu0 %v2730
        %v3014 = vpop.f32.mrf.mxu0
        %v3015 = vadd.f32 0.0, %v3014
        %v3016 = vpop.f32.mrf.mxu0
        %v3017 = vadd.f32 0.0, %v3016
        %3018 = vmatprep.mubr.f32.mxu0 0.0
        %3019 = vmatmul.mubr.f32.gmra.mxu0 %v2731
        %v3020 = vpop.f32.mrf.mxu0
        %v3021 = vadd.f32 0.0, %v3020
        %v3022 = vpop.f32.mrf.mxu0
        %v3023 = vadd.f32 0.0, %v3022
        %3024 = vmatprep.mubr.f32.mxu0 0.0
        %3025 = vmatmul.mubr.f32.gmra.mxu0 %v2732
        %v3026 = vpop.f32.mrf.mxu0
        %v3027 = vadd.f32 0.0, %v3026
        %v3028 = vpop.f32.mrf.mxu0
        %v3029 = vadd.f32 0.0, %v3028
        %3030 = vmatprep.mubr.f32.mxu0 0.0
        %3031 = vmatmul.mubr.f32.gmra.mxu0 %v2733
        %v3032 = vpop.f32.mrf.mxu0
        %v3033 = vadd.f32 0.0, %v3032
        %v3034 = vpop.f32.mrf.mxu0
        %v3035 = vadd.f32 0.0, %v3034
        %3036 = vmatprep.mubr.f32.mxu0 0.0
        %3037 = vmatmul.mubr.f32.gmra.mxu0 %v2734
        %v3038 = vpop.f32.mrf.mxu0
        %v3039 = vadd.f32 0.0, %v3038
        %v3040 = vpop.f32.mrf.mxu0
        %v3041 = vadd.f32 0.0, %v3040
        %3042 = vmatprep.mubr.f32.mxu0 0.0
        %3043 = vmatmul.mubr.f32.gmra.mxu0 %v2735
        %v3044 = vpop.f32.mrf.mxu0
        %v3045 = vadd.f32 0.0, %v3044
        %v3046 = vpop.f32.mrf.mxu0
        %v3047 = vadd.f32 0.0, %v3046
        %3048 = vmatprep.mubr.f32.mxu0 0.0
        %3049 = vmatmul.mubr.f32.gmra.mxu0 %v2736
        %v3050 = vpop.f32.mrf.mxu0
        %v3051 = vadd.f32 0.0, %v3050
        %v3052 = vpop.f32.mrf.mxu0
        %v3053 = vadd.f32 0.0, %v3052
        %3054 = vmatprep.mubr.f32.mxu0 0.0
        %3055 = vmatmul.mubr.f32.gmra.mxu0 %v2737
        %v3056 = vpop.f32.mrf.mxu0
        %v3057 = vadd.f32 0.0, %v3056
        %v3058 = vpop.f32.mrf.mxu0
        %v3059 = vadd.f32 0.0, %v3058
        %3060 = vmatprep.mubr.f32.mxu0 0.0
        %3061 = vmatmul.mubr.f32.gmra.mxu0 %v2738
        %v3062 = vpop.f32.mrf.mxu0
        %v3063 = vadd.f32 0.0, %v3062
        %v3064 = vpop.f32.mrf.mxu0
        %v3065 = vadd.f32 0.0, %v3064
        %3066 = vmatprep.mubr.f32.mxu0 0.0
        %3067 = vmatmul.mubr.f32.gmra.mxu0 %v2739
        %v3068 = vpop.f32.mrf.mxu0
        %v3069 = vadd.f32 0.0, %v3068
        %v3070 = vpop.f32.mrf.mxu0
        %v3071 = vadd.f32 0.0, %v3070
        %3072 = vmatprep.mubr.f32.mxu0 0.0
        %3073 = vmatmul.mubr.f32.gmra.mxu0 %v2740
        %v3074 = vpop.f32.mrf.mxu0
        %v3075 = vadd.f32 0.0, %v3074
        %v3076 = vpop.f32.mrf.mxu0
        %v3077 = vadd.f32 0.0, %v3076
        %3078 = vmatprep.mubr.f32.mxu0 0.0
        %3079 = vmatmul.mubr.f32.gmra.mxu0 %v2741
        %v3080 = vpop.f32.mrf.mxu0
        %v3081 = vadd.f32 0.0, %v3080
        %v3082 = vpop.f32.mrf.mxu0
        %v3083 = vadd.f32 0.0, %v3082
        %3084 = vmatprep.mubr.f32.mxu0 0.0
        %3085 = vmatmul.mubr.f32.gmra.mxu0 %v2742
        %v3086 = vpop.f32.mrf.mxu0
        %v3087 = vadd.f32 0.0, %v3086
        %v3088 = vpop.f32.mrf.mxu0
        %v3089 = vadd.f32 0.0, %v3088
        %3090 = vmatprep.mubr.f32.mxu0 0.0
        %3091 = vmatmul.mubr.f32.gmra.mxu0 %v2743
        %v3092 = vpop.f32.mrf.mxu0
        %v3093 = vadd.f32 0.0, %v3092
        %v3094 = vpop.f32.mrf.mxu0
        %v3095 = vadd.f32 0.0, %v3094
        %3096 = vmatprep.mubr.f32.mxu0 0.0
        %3097 = vmatmul.mubr.f32.gmra.mxu0 %v2744
        %v3098 = vpop.f32.mrf.mxu0
        %v3099 = vadd.f32 0.0, %v3098
        %v3100 = vpop.f32.mrf.mxu0
        %v3101 = vadd.f32 0.0, %v3100
        %3102 = vmatprep.mubr.f32.mxu0 0.0
        %3103 = vmatmul.mubr.f32.gmra.mxu0 %v2745
        %v3104 = vpop.f32.mrf.mxu0
        %v3105 = vadd.f32 0.0, %v3104
        %v3106 = vpop.f32.mrf.mxu0
        %v3107 = vadd.f32 0.0, %v3106
        %3108 = vmatprep.mubr.f32.mxu0 0.0
        %3109 = vmatmul.mubr.f32.gmra.mxu0 %v2746
        %v3110 = vpop.f32.mrf.mxu0
        %v3111 = vadd.f32 0.0, %v3110
        %v3112 = vpop.f32.mrf.mxu0
        %v3113 = vadd.f32 0.0, %v3112
        %3114 = vmatprep.mubr.f32.mxu0 0.0
        %3115 = vmatmul.mubr.f32.gmra.mxu0 %v2747
        %v3116 = vpop.f32.mrf.mxu0
        %v3117 = vadd.f32 0.0, %v3116
        %v3118 = vpop.f32.mrf.mxu0
        %v3119 = vadd.f32 0.0, %v3118
        %3120 = vmatprep.mubr.f32.mxu0 0.0
        %3121 = vmatmul.mubr.f32.gmra.mxu0 %v2748
        %v3122 = vpop.f32.mrf.mxu0
        %v3123 = vadd.f32 0.0, %v3122
        %v3124 = vpop.f32.mrf.mxu0
        %v3125 = vadd.f32 0.0, %v3124
        %3126 = vmatprep.mubr.f32.mxu0 0.0
        %3127 = vmatmul.mubr.f32.gmra.mxu0 %v2749
        %v3128 = vpop.f32.mrf.mxu0
        %v3129 = vadd.f32 0.0, %v3128
        %v3130 = vpop.f32.mrf.mxu0
        %v3131 = vadd.f32 0.0, %v3130
        %3132 = vmatprep.mubr.f32.mxu0 0.0
        %3133 = vmatmul.mubr.f32.gmra.mxu0 %v2750
        %v3134 = vpop.f32.mrf.mxu0
        %v3135 = vadd.f32 0.0, %v3134
        %v3136 = vpop.f32.mrf.mxu0
        %v3137 = vadd.f32 0.0, %v3136
        %3138 = vmatprep.mubr.f32.mxu0 0.0
        %3139 = vmatmul.mubr.f32.gmra.mxu0 %v2751
        %v3140 = vpop.f32.mrf.mxu0
        %v3141 = vadd.f32 0.0, %v3140
        %v3142 = vpop.f32.mrf.mxu0
        %v3143 = vadd.f32 0.0, %v3142
        %3144 = vmatprep.mubr.f32.mxu0 0.0
        %3145 = vmatmul.mubr.f32.gmra.mxu0 %v2752
        %v3146 = vpop.f32.mrf.mxu0
        %v3147 = vadd.f32 0.0, %v3146
        %v3148 = vpop.f32.mrf.mxu0
        %v3149 = vadd.f32 0.0, %v3148
        %3150 = vmatprep.mubr.f32.mxu0 0.0
        %3151 = vmatmul.mubr.f32.gmra.mxu0 %v2753
        %v3152 = vpop.f32.mrf.mxu0
        %v3153 = vadd.f32 0.0, %v3152
        %v3154 = vpop.f32.mrf.mxu0
        %v3155 = vadd.f32 0.0, %v3154
        %3156 = vmatprep.mubr.f32.mxu0 0.0
        %3157 = vmatmul.mubr.f32.gmra.mxu0 %v2754
        %v3158 = vpop.f32.mrf.mxu0
        %v3159 = vadd.f32 0.0, %v3158
        %v3160 = vpop.f32.mrf.mxu0
        %v3161 = vadd.f32 0.0, %v3160
        %3162 = vmatprep.mubr.f32.mxu0 0.0
        %3163 = vmatmul.mubr.f32.gmra.mxu0 %v2755
        %v3164 = vpop.f32.mrf.mxu0
        %v3165 = vadd.f32 0.0, %v3164
        %v3166 = vpop.f32.mrf.mxu0
        %v3167 = vadd.f32 0.0, %v3166
        %3168 = vmatprep.mubr.f32.mxu0 0.0
        %3169 = vmatmul.mubr.f32.gmra.mxu0 %v2756
        %v3170 = vpop.f32.mrf.mxu0
        %v3171 = vadd.f32 0.0, %v3170
        %v3172 = vpop.f32.mrf.mxu0
        %v3173 = vadd.f32 0.0, %v3172
        %3174 = vmatprep.mubr.f32.mxu0 0.0
        %3175 = vmatmul.mubr.f32.gmra.mxu0 %v2757
        %v3176 = vpop.f32.mrf.mxu0
        %v3177 = vadd.f32 0.0, %v3176
        %v3178 = vpop.f32.mrf.mxu0
        %v3179 = vadd.f32 0.0, %v3178
        %3180 = vmatprep.mubr.f32.mxu0 0.0
        %3181 = vmatmul.mubr.f32.gmra.mxu0 %v2758
        %v3182 = vpop.f32.mrf.mxu0
        %v3183 = vadd.f32 0.0, %v3182
        %v3184 = vpop.f32.mrf.mxu0
        %v3185 = vadd.f32 0.0, %v3184
        %3186 = vmatprep.mubr.f32.mxu0 0.0
        %3187 = vmatmul.mubr.f32.gmra.mxu0 %v2759
        %v3188 = vpop.f32.mrf.mxu0
        %v3189 = vadd.f32 0.0, %v3188
        %v3190 = vpop.f32.mrf.mxu0
        %v3191 = vadd.f32 0.0, %v3190
        %3192 = vmatprep.mubr.f32.mxu0 0.0
        %3193 = vmatmul.mubr.f32.gmra.mxu0 %v2760
        %v3194 = vpop.f32.mrf.mxu0
        %v3195 = vadd.f32 0.0, %v3194
        %v3196 = vpop.f32.mrf.mxu0
        %v3197 = vadd.f32 0.0, %v3196
        %3198 = vmatprep.mubr.f32.mxu0 0.0
        %3199 = vmatmul.mubr.f32.gmra.mxu0 %v2761
        %v3200 = vpop.f32.mrf.mxu0
        %v3201 = vadd.f32 0.0, %v3200
        %v3202 = vpop.f32.mrf.mxu0
        %v3203 = vadd.f32 0.0, %v3202
        %3204 = vmatprep.mubr.f32.mxu0 0.0
        %3205 = vmatmul.mubr.f32.gmra.mxu0 %v2762
        %v3206 = vpop.f32.mrf.mxu0
        %v3207 = vadd.f32 0.0, %v3206
        %v3208 = vpop.f32.mrf.mxu0
        %v3209 = vadd.f32 0.0, %v3208
        %3210 = vmatprep.mubr.f32.mxu0 0.0
        %3211 = vmatmul.mubr.f32.gmra.mxu0 %v2763
        %v3212 = vpop.f32.mrf.mxu0
        %v3213 = vadd.f32 0.0, %v3212
        %v3214 = vpop.f32.mrf.mxu0
        %v3215 = vadd.f32 0.0, %v3214
        %3216 = vmatprep.mubr.f32.mxu0 0.0
        %3217 = vmatmul.mubr.f32.gmra.mxu0 %v2764
        %v3218 = vpop.f32.mrf.mxu0
        %v3219 = vadd.f32 0.0, %v3218
        %v3220 = vpop.f32.mrf.mxu0
        %v3221 = vadd.f32 0.0, %v3220
        %3222 = vmatprep.mubr.f32.mxu0 0.0
        %3223 = vmatmul.mubr.f32.gmra.mxu0 %v2765
        %v3224 = vpop.f32.mrf.mxu0
        %v3225 = vadd.f32 0.0, %v3224
        %v3226 = vpop.f32.mrf.mxu0
        %v3227 = vadd.f32 0.0, %v3226
        %3228 = vmatprep.mubr.f32.mxu0 0.0
        %3229 = vmatmul.mubr.f32.gmra.mxu0 %v2766
        %v3230 = vpop.f32.mrf.mxu0
        %v3231 = vadd.f32 0.0, %v3230
        %v3232 = vpop.f32.mrf.mxu0
        %v3233 = vadd.f32 0.0, %v3232
        %3234 = vmatprep.mubr.f32.mxu0 0.0
        %3235 = vmatmul.mubr.f32.gmra.mxu0 %v2767
        %v3236 = vpop.f32.mrf.mxu0
        %v3237 = vadd.f32 0.0, %v3236
        %v3238 = vpop.f32.mrf.mxu0
        %v3239 = vadd.f32 0.0, %v3238
        %3240 = vmatprep.mubr.f32.mxu0 0.0
        %3241 = vmatmul.mubr.f32.gmra.mxu0 %v2768
        %v3242 = vpop.f32.mrf.mxu0
        %v3243 = vadd.f32 0.0, %v3242
        %v3244 = vpop.f32.mrf.mxu0
        %v3245 = vadd.f32 0.0, %v3244
        %3246 = vmatprep.mubr.f32.mxu0 0.0
        %3247 = vmatmul.mubr.f32.gmra.mxu0 %v2769
        %v3248 = vpop.f32.mrf.mxu0
        %v3249 = vadd.f32 0.0, %v3248
        %v3250 = vpop.f32.mrf.mxu0
        %v3251 = vadd.f32 0.0, %v3250
        %3252 = vmatprep.mubr.f32.mxu0 0.0
        %3253 = vmatmul.mubr.f32.gmra.mxu0 %v2770
        %v3254 = vpop.f32.mrf.mxu0
        %v3255 = vadd.f32 0.0, %v3254
        %v3256 = vpop.f32.mrf.mxu0
        %v3257 = vadd.f32 0.0, %v3256
        %3258 = vmatprep.mubr.f32.mxu0 0.0
        %3259 = vmatmul.mubr.f32.gmra.mxu0 %v2771
        %v3260 = vpop.f32.mrf.mxu0
        %v3261 = vadd.f32 0.0, %v3260
        %v3262 = vpop.f32.mrf.mxu0
        %v3263 = vadd.f32 0.0, %v3262
        %3264 = vmatprep.mubr.f32.mxu0 0.0
        %3265 = vmatmul.mubr.f32.gmra.mxu0 %v2772
        %v3266 = vpop.f32.mrf.mxu0
        %v3267 = vadd.f32 0.0, %v3266
        %v3268 = vpop.f32.mrf.mxu0
        %v3269 = vadd.f32 0.0, %v3268
        %3270 = vmatprep.mubr.f32.mxu0 0.0
        %3271 = vmatmul.mubr.f32.gmra.mxu0 %v2773
        %v3272 = vpop.f32.mrf.mxu0
        %v3273 = vadd.f32 0.0, %v3272
        %v3274 = vpop.f32.mrf.mxu0
        %v3275 = vadd.f32 0.0, %v3274
        %3276 = vmatprep.mubr.f32.mxu0 0.0
        %3277 = vmatmul.mubr.f32.gmra.mxu0 %v2774
        %v3278 = vpop.f32.mrf.mxu0
        %v3279 = vadd.f32 0.0, %v3278
        %v3280 = vpop.f32.mrf.mxu0
        %v3281 = vadd.f32 0.0, %v3280
        %3282 = vmatprep.mubr.f32.mxu0 0.0
        %3283 = vmatmul.mubr.f32.gmra.mxu0 %v2775
        %v3284 = vpop.f32.mrf.mxu0
        %v3285 = vadd.f32 0.0, %v3284
        %v3286 = vpop.f32.mrf.mxu0
        %v3287 = vadd.f32 0.0, %v3286
        %3288 = vdwg.mxu0
        %3289 = vmatprep.subr.mxu0 %v2807
        %3290 = vmatpush1.msra.mxu0 %v2806
        %3291 = vmatprep.subr.mxu0 %v2805
        %3292 = vmatpush1.msra.mxu0 %v2804
        %3293 = vmatprep.subr.mxu0 %v2803
        %3294 = vmatpush1.msra.mxu0 %v2802
        %3295 = vmatprep.subr.mxu0 %v2801
        %3296 = vmatpush1.msra.mxu0 %v2800
        %3297 = vmatprep.subr.mxu0 %v2799
        %3298 = vmatpush1.msra.mxu0 %v2798
        %3299 = vmatprep.subr.mxu0 %v2797
        %3300 = vmatpush1.msra.mxu0 %v2796
        %3301 = vmatprep.subr.mxu0 %v2795
        %3302 = vmatpush1.msra.mxu0 %v2794
        %3303 = vmatprep.subr.mxu0 %v2793
        %3304 = vmatpush1.msra.mxu0 %v2792
        %3305 = vmatprep.subr.mxu0 %v2791
        %3306 = vmatpush1.msra.mxu0 %v2790
        %3307 = vmatprep.subr.mxu0 %v2789
        %3308 = vmatpush1.msra.mxu0 %v2788
        %3309 = vmatprep.subr.mxu0 %v2787
        %3310 = vmatpush1.msra.mxu0 %v2786
        %3311 = vmatprep.subr.mxu0 %v2785
        %3312 = vmatpush1.msra.mxu0 %v2784
        %3313 = vmatprep.subr.mxu0 %v2783
        %3314 = vmatpush1.msra.mxu0 %v2782
        %3315 = vmatprep.subr.mxu0 %v2781
        %3316 = vmatpush1.msra.mxu0 %v2780
        %3317 = vmatprep.subr.mxu0 %v2779
        %3318 = vmatpush1.msra.mxu0 %v2778
        %3319 = vmatprep.subr.mxu0 %v2777
        %3320 = vmatpush1.msra.mxu0 %v2776
        %3321 = vmatprep.subr.mxu0 0.0
        %3322 = vmatpush2.msra.mxu0 0.0
        %3323 = vmatprep.subr.mxu0 0.0
        %3324 = vmatpush2.msra.mxu0 0.0
        %3325 = vmatprep.subr.mxu0 0.0
        %3326 = vmatpush2.msra.mxu0 0.0
        %3327 = vmatprep.subr.mxu0 0.0
        %3328 = vmatpush2.msra.mxu0 0.0
        %3329 = vmatprep.subr.mxu0 0.0
        %3330 = vmatpush2.msra.mxu0 0.0
        %3331 = vmatprep.subr.mxu0 0.0
        %3332 = vmatpush2.msra.mxu0 0.0
        %3333 = vmatprep.subr.mxu0 0.0
        %3334 = vmatpush2.msra.mxu0 0.0
        %3335 = vmatprep.subr.mxu0 0.0
        %3336 = vmatpush2.msra.mxu0 0.0
        %3337 = vmatprep.subr.mxu0 0.0
        %3338 = vmatpush2.msra.mxu0 0.0
        %3339 = vmatprep.subr.mxu0 0.0
        %3340 = vmatpush2.msra.mxu0 0.0
        %3341 = vmatprep.subr.mxu0 0.0
        %3342 = vmatpush2.msra.mxu0 0.0
        %3343 = vmatprep.subr.mxu0 0.0
        %3344 = vmatpush2.msra.mxu0 0.0
        %3345 = vmatprep.subr.mxu0 0.0
        %3346 = vmatpush2.msra.mxu0 0.0
        %3347 = vmatprep.subr.mxu0 0.0
        %3348 = vmatpush2.msra.mxu0 0.0
        %3349 = vmatprep.subr.mxu0 0.0
        %3350 = vmatpush2.msra.mxu0 0.0
        %3351 = vmatprep.subr.mxu0 0.0
        %3352 = vmatpush2.msra.mxu0 0.0
        %3353 = vmatprep.mubr.f32.mxu0 0.0
        %3354 = vmatmul.mubr.f32.gmra.mxu0 %v2520
        %v3355 = vpop.f32.mrf.mxu0
        %v3356 = vadd.f32 %v2907, %v3355
        %v3357 = vpop.f32.mrf.mxu0
        %v3358 = vadd.f32 %v2909, %v3357
        %3359 = vmatprep.mubr.f32.mxu0 0.0
        %3360 = vmatmul.mubr.f32.gmra.mxu0 %v2521
        %v3361 = vpop.f32.mrf.mxu0
        %v3362 = vadd.f32 %v2913, %v3361
        %v3363 = vpop.f32.mrf.mxu0
        %v3364 = vadd.f32 %v2915, %v3363
        %3365 = vmatprep.mubr.f32.mxu0 0.0
        %3366 = vmatmul.mubr.f32.gmra.mxu0 %v2522
        %v3367 = vpop.f32.mrf.mxu0
        %v3368 = vadd.f32 %v2919, %v3367
        %v3369 = vpop.f32.mrf.mxu0
        %v3370 = vadd.f32 %v2921, %v3369
        %3371 = vmatprep.mubr.f32.mxu0 0.0
        %3372 = vmatmul.mubr.f32.gmra.mxu0 %v2523
        %v3373 = vpop.f32.mrf.mxu0
        %v3374 = vadd.f32 %v2925, %v3373
        %v3375 = vpop.f32.mrf.mxu0
        %v3376 = vadd.f32 %v2927, %v3375
        %3377 = vmatprep.mubr.f32.mxu0 0.0
        %3378 = vmatmul.mubr.f32.gmra.mxu0 %v2524
        %v3379 = vpop.f32.mrf.mxu0
        %v3380 = vadd.f32 %v2931, %v3379
        %v3381 = vpop.f32.mrf.mxu0
        %v3382 = vadd.f32 %v2933, %v3381
        %3383 = vmatprep.mubr.f32.mxu0 0.0
        %3384 = vmatmul.mubr.f32.gmra.mxu0 %v2525
        %v3385 = vpop.f32.mrf.mxu0
        %v3386 = vadd.f32 %v2937, %v3385
        %v3387 = vpop.f32.mrf.mxu0
        %v3388 = vadd.f32 %v2939, %v3387
        %3389 = vmatprep.mubr.f32.mxu0 0.0
        %3390 = vmatmul.mubr.f32.gmra.mxu0 %v2526
        %v3391 = vpop.f32.mrf.mxu0
        %v3392 = vadd.f32 %v2943, %v3391
        %v3393 = vpop.f32.mrf.mxu0
        %v3394 = vadd.f32 %v2945, %v3393
        %3395 = vmatprep.mubr.f32.mxu0 0.0
        %3396 = vmatmul.mubr.f32.gmra.mxu0 %v2527
        %v3397 = vpop.f32.mrf.mxu0
        %v3398 = vadd.f32 %v2949, %v3397
        %v3399 = vpop.f32.mrf.mxu0
        %v3400 = vadd.f32 %v2951, %v3399
        %3401 = vmatprep.mubr.f32.mxu0 0.0
        %3402 = vmatmul.mubr.f32.gmra.mxu0 %v2528
        %v3403 = vpop.f32.mrf.mxu0
        %v3404 = vadd.f32 %v2955, %v3403
        %v3405 = vpop.f32.mrf.mxu0
        %v3406 = vadd.f32 %v2957, %v3405
        %3407 = vmatprep.mubr.f32.mxu0 0.0
        %3408 = vmatmul.mubr.f32.gmra.mxu0 %v2529
        %v3409 = vpop.f32.mrf.mxu0
        %v3410 = vadd.f32 %v2961, %v3409
        %v3411 = vpop.f32.mrf.mxu0
        %v3412 = vadd.f32 %v2963, %v3411
        %3413 = vmatprep.mubr.f32.mxu0 0.0
        %3414 = vmatmul.mubr.f32.gmra.mxu0 %v2530
        %v3415 = vpop.f32.mrf.mxu0
        %v3416 = vadd.f32 %v2967, %v3415
        %v3417 = vpop.f32.mrf.mxu0
        %v3418 = vadd.f32 %v2969, %v3417
        %3419 = vmatprep.mubr.f32.mxu0 0.0
        %3420 = vmatmul.mubr.f32.gmra.mxu0 %v2531
        %v3421 = vpop.f32.mrf.mxu0
        %v3422 = vadd.f32 %v2973, %v3421
        %v3423 = vpop.f32.mrf.mxu0
        %v3424 = vadd.f32 %v2975, %v3423
        %3425 = vmatprep.mubr.f32.mxu0 0.0
        %3426 = vmatmul.mubr.f32.gmra.mxu0 %v2532
        %v3427 = vpop.f32.mrf.mxu0
        %v3428 = vadd.f32 %v2979, %v3427
        %v3429 = vpop.f32.mrf.mxu0
        %v3430 = vadd.f32 %v2981, %v3429
        %3431 = vmatprep.mubr.f32.mxu0 0.0
        %3432 = vmatmul.mubr.f32.gmra.mxu0 %v2533
        %v3433 = vpop.f32.mrf.mxu0
        %v3434 = vadd.f32 %v2985, %v3433
        %v3435 = vpop.f32.mrf.mxu0
        %v3436 = vadd.f32 %v2987, %v3435
        %3437 = vmatprep.mubr.f32.mxu0 0.0
        %3438 = vmatmul.mubr.f32.gmra.mxu0 %v2534
        %v3439 = vpop.f32.mrf.mxu0
        %v3440 = vadd.f32 %v2991, %v3439
        %v3441 = vpop.f32.mrf.mxu0
        %v3442 = vadd.f32 %v2993, %v3441
        %3443 = vmatprep.mubr.f32.mxu0 0.0
        %3444 = vmatmul.mubr.f32.gmra.mxu0 %v2535
        %v3445 = vpop.f32.mrf.mxu0
        %v3446 = vadd.f32 %v2997, %v3445
        %v3447 = vpop.f32.mrf.mxu0
        %v3448 = vadd.f32 %v2999, %v3447
        %3449 = vmatprep.mubr.f32.mxu0 0.0
        %3450 = vmatmul.mubr.f32.gmra.mxu0 %v2536
        %v3451 = vpop.f32.mrf.mxu0
        %v3452 = vadd.f32 %v3003, %v3451
        %v3453 = vpop.f32.mrf.mxu0
        %v3454 = vadd.f32 %v3005, %v3453
        %3455 = vmatprep.mubr.f32.mxu0 0.0
        %3456 = vmatmul.mubr.f32.gmra.mxu0 %v2537
        %v3457 = vpop.f32.mrf.mxu0
        %v3458 = vadd.f32 %v3009, %v3457
        %v3459 = vpop.f32.mrf.mxu0
        %v3460 = vadd.f32 %v3011, %v3459
        %3461 = vmatprep.mubr.f32.mxu0 0.0
        %3462 = vmatmul.mubr.f32.gmra.mxu0 %v2538
        %v3463 = vpop.f32.mrf.mxu0
        %v3464 = vadd.f32 %v3015, %v3463
        %v3465 = vpop.f32.mrf.mxu0
        %v3466 = vadd.f32 %v3017, %v3465
        %3467 = vmatprep.mubr.f32.mxu0 0.0
        %3468 = vmatmul.mubr.f32.gmra.mxu0 %v2539
        %v3469 = vpop.f32.mrf.mxu0
        %v3470 = vadd.f32 %v3021, %v3469
        %v3471 = vpop.f32.mrf.mxu0
        %v3472 = vadd.f32 %v3023, %v3471
        %3473 = vmatprep.mubr.f32.mxu0 0.0
        %3474 = vmatmul.mubr.f32.gmra.mxu0 %v2540
        %v3475 = vpop.f32.mrf.mxu0
        %v3476 = vadd.f32 %v3027, %v3475
        %v3477 = vpop.f32.mrf.mxu0
        %v3478 = vadd.f32 %v3029, %v3477
        %3479 = vmatprep.mubr.f32.mxu0 0.0
        %3480 = vmatmul.mubr.f32.gmra.mxu0 %v2541
        %v3481 = vpop.f32.mrf.mxu0
        %v3482 = vadd.f32 %v3033, %v3481
        %v3483 = vpop.f32.mrf.mxu0
        %v3484 = vadd.f32 %v3035, %v3483
        %3485 = vmatprep.mubr.f32.mxu0 0.0
        %3486 = vmatmul.mubr.f32.gmra.mxu0 %v2542
        %v3487 = vpop.f32.mrf.mxu0
        %v3488 = vadd.f32 %v3039, %v3487
        %v3489 = vpop.f32.mrf.mxu0
        %v3490 = vadd.f32 %v3041, %v3489
        %3491 = vmatprep.mubr.f32.mxu0 0.0
        %3492 = vmatmul.mubr.f32.gmra.mxu0 %v2543
        %v3493 = vpop.f32.mrf.mxu0
        %v3494 = vadd.f32 %v3045, %v3493
        %v3495 = vpop.f32.mrf.mxu0
        %v3496 = vadd.f32 %v3047, %v3495
        %3497 = vmatprep.mubr.f32.mxu0 0.0
        %3498 = vmatmul.mubr.f32.gmra.mxu0 %v2544
        %v3499 = vpop.f32.mrf.mxu0
        %v3500 = vadd.f32 %v3051, %v3499
        %v3501 = vpop.f32.mrf.mxu0
        %v3502 = vadd.f32 %v3053, %v3501
        %3503 = vmatprep.mubr.f32.mxu0 0.0
        %3504 = vmatmul.mubr.f32.gmra.mxu0 %v2545
        %v3505 = vpop.f32.mrf.mxu0
        %v3506 = vadd.f32 %v3057, %v3505
        %v3507 = vpop.f32.mrf.mxu0
        %v3508 = vadd.f32 %v3059, %v3507
        %3509 = vmatprep.mubr.f32.mxu0 0.0
        %3510 = vmatmul.mubr.f32.gmra.mxu0 %v2546
        %v3511 = vpop.f32.mrf.mxu0
        %v3512 = vadd.f32 %v3063, %v3511
        %v3513 = vpop.f32.mrf.mxu0
        %v3514 = vadd.f32 %v3065, %v3513
        %3515 = vmatprep.mubr.f32.mxu0 0.0
        %3516 = vmatmul.mubr.f32.gmra.mxu0 %v2547
        %v3517 = vpop.f32.mrf.mxu0
        %v3518 = vadd.f32 %v3069, %v3517
        %v3519 = vpop.f32.mrf.mxu0
        %v3520 = vadd.f32 %v3071, %v3519
        %3521 = vmatprep.mubr.f32.mxu0 0.0
        %3522 = vmatmul.mubr.f32.gmra.mxu0 %v2548
        %v3523 = vpop.f32.mrf.mxu0
        %v3524 = vadd.f32 %v3075, %v3523
        %v3525 = vpop.f32.mrf.mxu0
        %v3526 = vadd.f32 %v3077, %v3525
        %3527 = vmatprep.mubr.f32.mxu0 0.0
        %3528 = vmatmul.mubr.f32.gmra.mxu0 %v2549
        %v3529 = vpop.f32.mrf.mxu0
        %v3530 = vadd.f32 %v3081, %v3529
        %v3531 = vpop.f32.mrf.mxu0
        %v3532 = vadd.f32 %v3083, %v3531
        %3533 = vmatprep.mubr.f32.mxu0 0.0
        %3534 = vmatmul.mubr.f32.gmra.mxu0 %v2550
        %v3535 = vpop.f32.mrf.mxu0
        %v3536 = vadd.f32 %v3087, %v3535
        %v3537 = vpop.f32.mrf.mxu0
        %v3538 = vadd.f32 %v3089, %v3537
        %3539 = vmatprep.mubr.f32.mxu0 0.0
        %3540 = vmatmul.mubr.f32.gmra.mxu0 %v2551
        %v3541 = vpop.f32.mrf.mxu0
        %v3542 = vadd.f32 %v3093, %v3541
        %v3543 = vpop.f32.mrf.mxu0
        %v3544 = vadd.f32 %v3095, %v3543
        %3545 = vmatprep.mubr.f32.mxu0 0.0
        %3546 = vmatmul.mubr.f32.gmra.mxu0 %v2552
        %v3547 = vpop.f32.mrf.mxu0
        %v3548 = vadd.f32 %v3099, %v3547
        %v3549 = vpop.f32.mrf.mxu0
        %v3550 = vadd.f32 %v3101, %v3549
        %3551 = vmatprep.mubr.f32.mxu0 0.0
        %3552 = vmatmul.mubr.f32.gmra.mxu0 %v2553
        %v3553 = vpop.f32.mrf.mxu0
        %v3554 = vadd.f32 %v3105, %v3553
        %v3555 = vpop.f32.mrf.mxu0
        %v3556 = vadd.f32 %v3107, %v3555
        %3557 = vmatprep.mubr.f32.mxu0 0.0
        %3558 = vmatmul.mubr.f32.gmra.mxu0 %v2554
        %v3559 = vpop.f32.mrf.mxu0
        %v3560 = vadd.f32 %v3111, %v3559
        %v3561 = vpop.f32.mrf.mxu0
        %v3562 = vadd.f32 %v3113, %v3561
        %3563 = vmatprep.mubr.f32.mxu0 0.0
        %3564 = vmatmul.mubr.f32.gmra.mxu0 %v2555
        %v3565 = vpop.f32.mrf.mxu0
        %v3566 = vadd.f32 %v3117, %v3565
        %v3567 = vpop.f32.mrf.mxu0
        %v3568 = vadd.f32 %v3119, %v3567
        %3569 = vmatprep.mubr.f32.mxu0 0.0
        %3570 = vmatmul.mubr.f32.gmra.mxu0 %v2556
        %v3571 = vpop.f32.mrf.mxu0
        %v3572 = vadd.f32 %v3123, %v3571
        %v3573 = vpop.f32.mrf.mxu0
        %v3574 = vadd.f32 %v3125, %v3573
        %3575 = vmatprep.mubr.f32.mxu0 0.0
        %3576 = vmatmul.mubr.f32.gmra.mxu0 %v2557
        %v3577 = vpop.f32.mrf.mxu0
        %v3578 = vadd.f32 %v3129, %v3577
        %v3579 = vpop.f32.mrf.mxu0
        %v3580 = vadd.f32 %v3131, %v3579
        %3581 = vmatprep.mubr.f32.mxu0 0.0
        %3582 = vmatmul.mubr.f32.gmra.mxu0 %v2558
        %v3583 = vpop.f32.mrf.mxu0
        %v3584 = vadd.f32 %v3135, %v3583
        %v3585 = vpop.f32.mrf.mxu0
        %v3586 = vadd.f32 %v3137, %v3585
        %3587 = vmatprep.mubr.f32.mxu0 0.0
        %3588 = vmatmul.mubr.f32.gmra.mxu0 %v2559
        %v3589 = vpop.f32.mrf.mxu0
        %v3590 = vadd.f32 %v3141, %v3589
        %v3591 = vpop.f32.mrf.mxu0
        %v3592 = vadd.f32 %v3143, %v3591
        %3593 = vmatprep.mubr.f32.mxu0 0.0
        %3594 = vmatmul.mubr.f32.gmra.mxu0 %v2560
        %v3595 = vpop.f32.mrf.mxu0
        %v3596 = vadd.f32 %v3147, %v3595
        %v3597 = vpop.f32.mrf.mxu0
        %v3598 = vadd.f32 %v3149, %v3597
        %3599 = vmatprep.mubr.f32.mxu0 0.0
        %3600 = vmatmul.mubr.f32.gmra.mxu0 %v2561
        %v3601 = vpop.f32.mrf.mxu0
        %v3602 = vadd.f32 %v3153, %v3601
        %v3603 = vpop.f32.mrf.mxu0
        %v3604 = vadd.f32 %v3155, %v3603
        %3605 = vmatprep.mubr.f32.mxu0 0.0
        %3606 = vmatmul.mubr.f32.gmra.mxu0 %v2562
        %v3607 = vpop.f32.mrf.mxu0
        %v3608 = vadd.f32 %v3159, %v3607
        %v3609 = vpop.f32.mrf.mxu0
        %v3610 = vadd.f32 %v3161, %v3609
        %3611 = vmatprep.mubr.f32.mxu0 0.0
        %3612 = vmatmul.mubr.f32.gmra.mxu0 %v2563
        %v3613 = vpop.f32.mrf.mxu0
        %v3614 = vadd.f32 %v3165, %v3613
        %v3615 = vpop.f32.mrf.mxu0
        %v3616 = vadd.f32 %v3167, %v3615
        %3617 = vmatprep.mubr.f32.mxu0 0.0
        %3618 = vmatmul.mubr.f32.gmra.mxu0 %v2564
        %v3619 = vpop.f32.mrf.mxu0
        %v3620 = vadd.f32 %v3171, %v3619
        %v3621 = vpop.f32.mrf.mxu0
        %v3622 = vadd.f32 %v3173, %v3621
        %3623 = vmatprep.mubr.f32.mxu0 0.0
        %3624 = vmatmul.mubr.f32.gmra.mxu0 %v2565
        %v3625 = vpop.f32.mrf.mxu0
        %v3626 = vadd.f32 %v3177, %v3625
        %v3627 = vpop.f32.mrf.mxu0
        %v3628 = vadd.f32 %v3179, %v3627
        %3629 = vmatprep.mubr.f32.mxu0 0.0
        %3630 = vmatmul.mubr.f32.gmra.mxu0 %v2566
        %v3631 = vpop.f32.mrf.mxu0
        %v3632 = vadd.f32 %v3183, %v3631
        %v3633 = vpop.f32.mrf.mxu0
        %v3634 = vadd.f32 %v3185, %v3633
        %3635 = vmatprep.mubr.f32.mxu0 0.0
        %3636 = vmatmul.mubr.f32.gmra.mxu0 %v2567
        %v3637 = vpop.f32.mrf.mxu0
        %v3638 = vadd.f32 %v3189, %v3637
        %v3639 = vpop.f32.mrf.mxu0
        %v3640 = vadd.f32 %v3191, %v3639
        %3641 = vmatprep.mubr.f32.mxu0 0.0
        %3642 = vmatmul.mubr.f32.gmra.mxu0 %v2568
        %v3643 = vpop.f32.mrf.mxu0
        %v3644 = vadd.f32 %v3195, %v3643
        %v3645 = vpop.f32.mrf.mxu0
        %v3646 = vadd.f32 %v3197, %v3645
        %3647 = vmatprep.mubr.f32.mxu0 0.0
        %3648 = vmatmul.mubr.f32.gmra.mxu0 %v2569
        %v3649 = vpop.f32.mrf.mxu0
        %v3650 = vadd.f32 %v3201, %v3649
        %v3651 = vpop.f32.mrf.mxu0
        %v3652 = vadd.f32 %v3203, %v3651
        %3653 = vmatprep.mubr.f32.mxu0 0.0
        %3654 = vmatmul.mubr.f32.gmra.mxu0 %v2570
        %v3655 = vpop.f32.mrf.mxu0
        %v3656 = vadd.f32 %v3207, %v3655
        %v3657 = vpop.f32.mrf.mxu0
        %v3658 = vadd.f32 %v3209, %v3657
        %3659 = vmatprep.mubr.f32.mxu0 0.0
        %3660 = vmatmul.mubr.f32.gmra.mxu0 %v2571
        %v3661 = vpop.f32.mrf.mxu0
        %v3662 = vadd.f32 %v3213, %v3661
        %v3663 = vpop.f32.mrf.mxu0
        %v3664 = vadd.f32 %v3215, %v3663
        %3665 = vmatprep.mubr.f32.mxu0 0.0
        %3666 = vmatmul.mubr.f32.gmra.mxu0 %v2572
        %v3667 = vpop.f32.mrf.mxu0
        %v3668 = vadd.f32 %v3219, %v3667
        %v3669 = vpop.f32.mrf.mxu0
        %v3670 = vadd.f32 %v3221, %v3669
        %3671 = vmatprep.mubr.f32.mxu0 0.0
        %3672 = vmatmul.mubr.f32.gmra.mxu0 %v2573
        %v3673 = vpop.f32.mrf.mxu0
        %v3674 = vadd.f32 %v3225, %v3673
        %v3675 = vpop.f32.mrf.mxu0
        %v3676 = vadd.f32 %v3227, %v3675
        %3677 = vmatprep.mubr.f32.mxu0 0.0
        %3678 = vmatmul.mubr.f32.gmra.mxu0 %v2574
        %v3679 = vpop.f32.mrf.mxu0
        %v3680 = vadd.f32 %v3231, %v3679
        %v3681 = vpop.f32.mrf.mxu0
        %v3682 = vadd.f32 %v3233, %v3681
        %3683 = vmatprep.mubr.f32.mxu0 0.0
        %3684 = vmatmul.mubr.f32.gmra.mxu0 %v2575
        %v3685 = vpop.f32.mrf.mxu0
        %v3686 = vadd.f32 %v3237, %v3685
        %v3687 = vpop.f32.mrf.mxu0
        %v3688 = vadd.f32 %v3239, %v3687
        %3689 = vmatprep.mubr.f32.mxu0 0.0
        %3690 = vmatmul.mubr.f32.gmra.mxu0 %v2576
        %v3691 = vpop.f32.mrf.mxu0
        %v3692 = vadd.f32 %v3243, %v3691
        %v3693 = vpop.f32.mrf.mxu0
        %v3694 = vadd.f32 %v3245, %v3693
        %3695 = vmatprep.mubr.f32.mxu0 0.0
        %3696 = vmatmul.mubr.f32.gmra.mxu0 %v2577
        %v3697 = vpop.f32.mrf.mxu0
        %v3698 = vadd.f32 %v3249, %v3697
        %v3699 = vpop.f32.mrf.mxu0
        %v3700 = vadd.f32 %v3251, %v3699
        %3701 = vmatprep.mubr.f32.mxu0 0.0
        %3702 = vmatmul.mubr.f32.gmra.mxu0 %v2578
        %v3703 = vpop.f32.mrf.mxu0
        %v3704 = vadd.f32 %v3255, %v3703
        %v3705 = vpop.f32.mrf.mxu0
        %v3706 = vadd.f32 %v3257, %v3705
        %3707 = vmatprep.mubr.f32.mxu0 0.0
        %3708 = vmatmul.mubr.f32.gmra.mxu0 %v2579
        %v3709 = vpop.f32.mrf.mxu0
        %v3710 = vadd.f32 %v3261, %v3709
        %v3711 = vpop.f32.mrf.mxu0
        %v3712 = vadd.f32 %v3263, %v3711
        %3713 = vmatprep.mubr.f32.mxu0 0.0
        %3714 = vmatmul.mubr.f32.gmra.mxu0 %v2580
        %v3715 = vpop.f32.mrf.mxu0
        %v3716 = vadd.f32 %v3267, %v3715
        %v3717 = vpop.f32.mrf.mxu0
        %v3718 = vadd.f32 %v3269, %v3717
        %3719 = vmatprep.mubr.f32.mxu0 0.0
        %3720 = vmatmul.mubr.f32.gmra.mxu0 %v2581
        %v3721 = vpop.f32.mrf.mxu0
        %v3722 = vadd.f32 %v3273, %v3721
        %v3723 = vpop.f32.mrf.mxu0
        %v3724 = vadd.f32 %v3275, %v3723
        %3725 = vmatprep.mubr.f32.mxu0 0.0
        %3726 = vmatmul.mubr.f32.gmra.mxu0 %v2582
        %v3727 = vpop.f32.mrf.mxu0
        %v3728 = vadd.f32 %v3279, %v3727
        %v3729 = vpop.f32.mrf.mxu0
        %v3730 = vadd.f32 %v3281, %v3729
        %3731 = vmatprep.mubr.f32.mxu0 0.0
        %3732 = vmatmul.mubr.f32.gmra.mxu0 %v2583
        %v3733 = vpop.f32.mrf.mxu0
        %v3734 = vadd.f32 %v3285, %v3733
        %v3735 = vpop.f32.mrf.mxu0
        %v3736 = vadd.f32 %v3287, %v3735
        %3737 = vdwg.mxu0
        %3738 = vxpose.xlu0.b32.start [1/16] %v3356, 128
        %3739 = vxpose.xlu0.b32.cont [2/16] %v3362, 128
        %3740 = vxpose.xlu0.b32.cont [3/16] %v3368, 128
        %3741 = vxpose.xlu0.b32.cont [4/16] %v3374, 128
        %3742 = vxpose.xlu0.b32.cont [5/16] %v3380, 128
        %3743 = vxpose.xlu0.b32.cont [6/16] %v3386, 128
        %3744 = vxpose.xlu0.b32.cont [7/16] %v3392, 128
        %3745 = vxpose.xlu0.b32.cont [8/16] %v3398, 128
        %3746 = vxpose.xlu0.b32.cont [9/16] %v3404, 128
        %3747 = vxpose.xlu0.b32.cont [10/16] %v3410, 128
        %3748 = vxpose.xlu0.b32.cont [11/16] %v3416, 128
        %3749 = vxpose.xlu0.b32.cont [12/16] %v3422, 128
        %3750 = vxpose.xlu0.b32.cont [13/16] %v3428, 128
        %3751 = vxpose.xlu0.b32.cont [14/16] %v3434, 128
        %3752 = vxpose.xlu0.b32.cont [15/16] %v3440, 128
        %3753 = vxpose.xlu0.b32.end [16/16] %v3446, 128
        %v3754 = vpop.trf.xlu0
        %v3755 = vpop.trf.xlu0
        %v3756 = vpop.trf.xlu0
        %v3757 = vpop.trf.xlu0
        %v3758 = vpop.trf.xlu0
        %v3759 = vpop.trf.xlu0
        %v3760 = vpop.trf.xlu0
        %v3761 = vpop.trf.xlu0
        %v3762 = vpop.trf.xlu0
        %v3763 = vpop.trf.xlu0
        %v3764 = vpop.trf.xlu0
        %v3765 = vpop.trf.xlu0
        %v3766 = vpop.trf.xlu0
        %v3767 = vpop.trf.xlu0
        %v3768 = vpop.trf.xlu0
        %v3769 = vpop.trf.xlu0
        %3770 = vxpose.xlu0.b32.start [1/16] %v3358, 128
        %3771 = vxpose.xlu0.b32.cont [2/16] %v3364, 128
        %3772 = vxpose.xlu0.b32.cont [3/16] %v3370, 128
        %3773 = vxpose.xlu0.b32.cont [4/16] %v3376, 128
        %3774 = vxpose.xlu0.b32.cont [5/16] %v3382, 128
        %3775 = vxpose.xlu0.b32.cont [6/16] %v3388, 128
        %3776 = vxpose.xlu0.b32.cont [7/16] %v3394, 128
        %3777 = vxpose.xlu0.b32.cont [8/16] %v3400, 128
        %3778 = vxpose.xlu0.b32.cont [9/16] %v3406, 128
        %3779 = vxpose.xlu0.b32.cont [10/16] %v3412, 128
        %3780 = vxpose.xlu0.b32.cont [11/16] %v3418, 128
        %3781 = vxpose.xlu0.b32.cont [12/16] %v3424, 128
        %3782 = vxpose.xlu0.b32.cont [13/16] %v3430, 128
        %3783 = vxpose.xlu0.b32.cont [14/16] %v3436, 128
        %3784 = vxpose.xlu0.b32.cont [15/16] %v3442, 128
        %3785 = vxpose.xlu0.b32.end [16/16] %v3448, 128
        %v3786 = vpop.trf.xlu0
        %v3787 = vpop.trf.xlu0
        %v3788 = vpop.trf.xlu0
        %v3789 = vpop.trf.xlu0
        %v3790 = vpop.trf.xlu0
        %v3791 = vpop.trf.xlu0
        %v3792 = vpop.trf.xlu0
        %v3793 = vpop.trf.xlu0
        %v3794 = vpop.trf.xlu0
        %v3795 = vpop.trf.xlu0
        %v3796 = vpop.trf.xlu0
        %v3797 = vpop.trf.xlu0
        %v3798 = vpop.trf.xlu0
        %v3799 = vpop.trf.xlu0
        %v3800 = vpop.trf.xlu0
        %v3801 = vpop.trf.xlu0
        %3802 = vxpose.xlu0.b32.start [1/16] %v3452, 128
        %3803 = vxpose.xlu0.b32.cont [2/16] %v3458, 128
        %3804 = vxpose.xlu0.b32.cont [3/16] %v3464, 128
        %3805 = vxpose.xlu0.b32.cont [4/16] %v3470, 128
        %3806 = vxpose.xlu0.b32.cont [5/16] %v3476, 128
        %3807 = vxpose.xlu0.b32.cont [6/16] %v3482, 128
        %3808 = vxpose.xlu0.b32.cont [7/16] %v3488, 128
        %3809 = vxpose.xlu0.b32.cont [8/16] %v3494, 128
        %3810 = vxpose.xlu0.b32.cont [9/16] %v3500, 128
        %3811 = vxpose.xlu0.b32.cont [10/16] %v3506, 128
        %3812 = vxpose.xlu0.b32.cont [11/16] %v3512, 128
        %3813 = vxpose.xlu0.b32.cont [12/16] %v3518, 128
        %3814 = vxpose.xlu0.b32.cont [13/16] %v3524, 128
        %3815 = vxpose.xlu0.b32.cont [14/16] %v3530, 128
        %3816 = vxpose.xlu0.b32.cont [15/16] %v3536, 128
        %3817 = vxpose.xlu0.b32.end [16/16] %v3542, 128
        %v3818 = vpop.trf.xlu0
        %v3819 = vpop.trf.xlu0
        %v3820 = vpop.trf.xlu0
        %v3821 = vpop.trf.xlu0
        %v3822 = vpop.trf.xlu0
        %v3823 = vpop.trf.xlu0
        %v3824 = vpop.trf.xlu0
        %v3825 = vpop.trf.xlu0
        %v3826 = vpop.trf.xlu0
        %v3827 = vpop.trf.xlu0
        %v3828 = vpop.trf.xlu0
        %v3829 = vpop.trf.xlu0
        %v3830 = vpop.trf.xlu0
        %v3831 = vpop.trf.xlu0
        %v3832 = vpop.trf.xlu0
        %v3833 = vpop.trf.xlu0
        %3834 = vxpose.xlu0.b32.start [1/16] %v3454, 128
        %3835 = vxpose.xlu0.b32.cont [2/16] %v3460, 128
        %3836 = vxpose.xlu0.b32.cont [3/16] %v3466, 128
        %3837 = vxpose.xlu0.b32.cont [4/16] %v3472, 128
        %3838 = vxpose.xlu0.b32.cont [5/16] %v3478, 128
        %3839 = vxpose.xlu0.b32.cont [6/16] %v3484, 128
        %3840 = vxpose.xlu0.b32.cont [7/16] %v3490, 128
        %3841 = vxpose.xlu0.b32.cont [8/16] %v3496, 128
        %3842 = vxpose.xlu0.b32.cont [9/16] %v3502, 128
        %3843 = vxpose.xlu0.b32.cont [10/16] %v3508, 128
        %3844 = vxpose.xlu0.b32.cont [11/16] %v3514, 128
        %3845 = vxpose.xlu0.b32.cont [12/16] %v3520, 128
        %3846 = vxpose.xlu0.b32.cont [13/16] %v3526, 128
        %3847 = vxpose.xlu0.b32.cont [14/16] %v3532, 128
        %3848 = vxpose.xlu0.b32.cont [15/16] %v3538, 128
        %3849 = vxpose.xlu0.b32.end [16/16] %v3544, 128
        %v3850 = vpop.trf.xlu0
        %v3851 = vpop.trf.xlu0
        %v3852 = vpop.trf.xlu0
        %v3853 = vpop.trf.xlu0
        %v3854 = vpop.trf.xlu0
        %v3855 = vpop.trf.xlu0
        %v3856 = vpop.trf.xlu0
        %v3857 = vpop.trf.xlu0
        %v3858 = vpop.trf.xlu0
        %v3859 = vpop.trf.xlu0
        %v3860 = vpop.trf.xlu0
        %v3861 = vpop.trf.xlu0
        %v3862 = vpop.trf.xlu0
        %v3863 = vpop.trf.xlu0
        %v3864 = vpop.trf.xlu0
        %v3865 = vpop.trf.xlu0
        %3866 = vxpose.xlu0.b32.start [1/16] %v3548, 128
        %3867 = vxpose.xlu0.b32.cont [2/16] %v3554, 128
        %3868 = vxpose.xlu0.b32.cont [3/16] %v3560, 128
        %3869 = vxpose.xlu0.b32.cont [4/16] %v3566, 128
        %3870 = vxpose.xlu0.b32.cont [5/16] %v3572, 128
        %3871 = vxpose.xlu0.b32.cont [6/16] %v3578, 128
        %3872 = vxpose.xlu0.b32.cont [7/16] %v3584, 128
        %3873 = vxpose.xlu0.b32.cont [8/16] %v3590, 128
        %3874 = vxpose.xlu0.b32.cont [9/16] %v3596, 128
        %3875 = vxpose.xlu0.b32.cont [10/16] %v3602, 128
        %3876 = vxpose.xlu0.b32.cont [11/16] %v3608, 128
        %3877 = vxpose.xlu0.b32.cont [12/16] %v3614, 128
        %3878 = vxpose.xlu0.b32.cont [13/16] %v3620, 128
        %3879 = vxpose.xlu0.b32.cont [14/16] %v3626, 128
        %3880 = vxpose.xlu0.b32.cont [15/16] %v3632, 128
        %3881 = vxpose.xlu0.b32.end [16/16] %v3638, 128
        %v3882 = vpop.trf.xlu0
        %v3883 = vpop.trf.xlu0
        %v3884 = vpop.trf.xlu0
        %v3885 = vpop.trf.xlu0
        %v3886 = vpop.trf.xlu0
        %v3887 = vpop.trf.xlu0
        %v3888 = vpop.trf.xlu0
        %v3889 = vpop.trf.xlu0
        %v3890 = vpop.trf.xlu0
        %v3891 = vpop.trf.xlu0
        %v3892 = vpop.trf.xlu0
        %v3893 = vpop.trf.xlu0
        %v3894 = vpop.trf.xlu0
        %v3895 = vpop.trf.xlu0
        %v3896 = vpop.trf.xlu0
        %v3897 = vpop.trf.xlu0
        %3898 = vxpose.xlu0.b32.start [1/16] %v3550, 128
        %3899 = vxpose.xlu0.b32.cont [2/16] %v3556, 128
        %3900 = vxpose.xlu0.b32.cont [3/16] %v3562, 128
        %3901 = vxpose.xlu0.b32.cont [4/16] %v3568, 128
        %3902 = vxpose.xlu0.b32.cont [5/16] %v3574, 128
        %3903 = vxpose.xlu0.b32.cont [6/16] %v3580, 128
        %3904 = vxpose.xlu0.b32.cont [7/16] %v3586, 128
        %3905 = vxpose.xlu0.b32.cont [8/16] %v3592, 128
        %3906 = vxpose.xlu0.b32.cont [9/16] %v3598, 128
        %3907 = vxpose.xlu0.b32.cont [10/16] %v3604, 128
        %3908 = vxpose.xlu0.b32.cont [11/16] %v3610, 128
        %3909 = vxpose.xlu0.b32.cont [12/16] %v3616, 128
        %3910 = vxpose.xlu0.b32.cont [13/16] %v3622, 128
        %3911 = vxpose.xlu0.b32.cont [14/16] %v3628, 128
        %3912 = vxpose.xlu0.b32.cont [15/16] %v3634, 128
        %3913 = vxpose.xlu0.b32.end [16/16] %v3640, 128
        %v3914 = vpop.trf.xlu0
        %v3915 = vpop.trf.xlu0
        %v3916 = vpop.trf.xlu0
        %v3917 = vpop.trf.xlu0
        %v3918 = vpop.trf.xlu0
        %v3919 = vpop.trf.xlu0
        %v3920 = vpop.trf.xlu0
        %v3921 = vpop.trf.xlu0
        %v3922 = vpop.trf.xlu0
        %v3923 = vpop.trf.xlu0
        %v3924 = vpop.trf.xlu0
        %v3925 = vpop.trf.xlu0
        %v3926 = vpop.trf.xlu0
        %v3927 = vpop.trf.xlu0
        %v3928 = vpop.trf.xlu0
        %v3929 = vpop.trf.xlu0
        %3930 = vxpose.xlu0.b32.start [1/16] %v3644, 128
        %3931 = vxpose.xlu0.b32.cont [2/16] %v3650, 128
        %3932 = vxpose.xlu0.b32.cont [3/16] %v3656, 128
        %3933 = vxpose.xlu0.b32.cont [4/16] %v3662, 128
        %3934 = vxpose.xlu0.b32.cont [5/16] %v3668, 128
        %3935 = vxpose.xlu0.b32.cont [6/16] %v3674, 128
        %3936 = vxpose.xlu0.b32.cont [7/16] %v3680, 128
        %3937 = vxpose.xlu0.b32.cont [8/16] %v3686, 128
        %3938 = vxpose.xlu0.b32.cont [9/16] %v3692, 128
        %3939 = vxpose.xlu0.b32.cont [10/16] %v3698, 128
        %3940 = vxpose.xlu0.b32.cont [11/16] %v3704, 128
        %3941 = vxpose.xlu0.b32.cont [12/16] %v3710, 128
        %3942 = vxpose.xlu0.b32.cont [13/16] %v3716, 128
        %3943 = vxpose.xlu0.b32.cont [14/16] %v3722, 128
        %3944 = vxpose.xlu0.b32.cont [15/16] %v3728, 128
        %3945 = vxpose.xlu0.b32.end [16/16] %v3734, 128
        %v3946 = vpop.trf.xlu0
        %v3947 = vpop.trf.xlu0
        %v3948 = vpop.trf.xlu0
        %v3949 = vpop.trf.xlu0
        %v3950 = vpop.trf.xlu0
        %v3951 = vpop.trf.xlu0
        %v3952 = vpop.trf.xlu0
        %v3953 = vpop.trf.xlu0
        %v3954 = vpop.trf.xlu0
        %v3955 = vpop.trf.xlu0
        %v3956 = vpop.trf.xlu0
        %v3957 = vpop.trf.xlu0
        %v3958 = vpop.trf.xlu0
        %v3959 = vpop.trf.xlu0
        %v3960 = vpop.trf.xlu0
        %v3961 = vpop.trf.xlu0
        %3962 = vxpose.xlu0.b32.start [1/16] %v3646, 128
        %3963 = vxpose.xlu0.b32.cont [2/16] %v3652, 128
        %3964 = vxpose.xlu0.b32.cont [3/16] %v3658, 128
        %3965 = vxpose.xlu0.b32.cont [4/16] %v3664, 128
        %3966 = vxpose.xlu0.b32.cont [5/16] %v3670, 128
        %3967 = vxpose.xlu0.b32.cont [6/16] %v3676, 128
        %3968 = vxpose.xlu0.b32.cont [7/16] %v3682, 128
        %3969 = vxpose.xlu0.b32.cont [8/16] %v3688, 128
        %3970 = vxpose.xlu0.b32.cont [9/16] %v3694, 128
        %3971 = vxpose.xlu0.b32.cont [10/16] %v3700, 128
        %3972 = vxpose.xlu0.b32.cont [11/16] %v3706, 128
        %3973 = vxpose.xlu0.b32.cont [12/16] %v3712, 128
        %3974 = vxpose.xlu0.b32.cont [13/16] %v3718, 128
        %3975 = vxpose.xlu0.b32.cont [14/16] %v3724, 128
        %3976 = vxpose.xlu0.b32.cont [15/16] %v3730, 128
        %3977 = vxpose.xlu0.b32.end [16/16] %v3736, 128
        %v3978 = vpop.trf.xlu0
        %v3979 = vpop.trf.xlu0
        %v3980 = vpop.trf.xlu0
        %v3981 = vpop.trf.xlu0
        %v3982 = vpop.trf.xlu0
        %v3983 = vpop.trf.xlu0
        %v3984 = vpop.trf.xlu0
        %v3985 = vpop.trf.xlu0
        %v3986 = vpop.trf.xlu0
        %v3987 = vpop.trf.xlu0
        %v3988 = vpop.trf.xlu0
        %v3989 = vpop.trf.xlu0
        %v3990 = vpop.trf.xlu0
        %v3991 = vpop.trf.xlu0
        %v3992 = vpop.trf.xlu0
        %v3993 = vpop.trf.xlu0
        %v3994 = vld [vmem:[#allocation14] sm:$0xff]
        %v3995 = vld [vmem:[#allocation14 + $0x8] sm:$0xff]
        %v3996 = vld [vmem:[#allocation14 + $0x10] sm:$0xff]
        %v3997 = vld [vmem:[#allocation14 + $0x18] sm:$0xff]
        %v3998 = vld [vmem:[#allocation14 + $0x20] sm:$0xff]
        %v3999 = vld [vmem:[#allocation14 + $0x28] sm:$0xff]
        %v4000 = vld [vmem:[#allocation14 + $0x30] sm:$0xff]
        %v4001 = vld [vmem:[#allocation14 + $0x38] sm:$0xff]
        %v4002 = vld [vmem:[#allocation14 + $0x40] sm:$0xff]
        %v4003 = vld [vmem:[#allocation14 + $0x48] sm:$0xff]
        %v4004 = vld [vmem:[#allocation14 + $0x50] sm:$0xff]
        %v4005 = vld [vmem:[#allocation14 + $0x58] sm:$0xff]
        %v4006 = vld [vmem:[#allocation14 + $0x60] sm:$0xff]
        %v4007 = vld [vmem:[#allocation14 + $0x68] sm:$0xff]
        %v4008 = vld [vmem:[#allocation14 + $0x70] sm:$0xff]
        %v4009 = vld [vmem:[#allocation14 + $0x78] sm:$0xff]
        %4010 = vmatprep.subr.mxu0 0.0
        %4011 = vmatpush1.msra.mxu0 %v4009
        %4012 = vmatprep.subr.mxu0 0.0
        %4013 = vmatpush1.msra.mxu0 %v4008
        %4014 = vmatprep.subr.mxu0 0.0
        %4015 = vmatpush1.msra.mxu0 %v4007
        %4016 = vmatprep.subr.mxu0 0.0
        %4017 = vmatpush1.msra.mxu0 %v4006
        %4018 = vmatprep.subr.mxu0 0.0
        %4019 = vmatpush1.msra.mxu0 %v4005
        %4020 = vmatprep.subr.mxu0 0.0
        %4021 = vmatpush1.msra.mxu0 %v4004
        %4022 = vmatprep.subr.mxu0 0.0
        %4023 = vmatpush1.msra.mxu0 %v4003
        %4024 = vmatprep.subr.mxu0 0.0
        %4025 = vmatpush1.msra.mxu0 %v4002
        %4026 = vmatprep.subr.mxu0 0.0
        %4027 = vmatpush1.msra.mxu0 %v4001
        %4028 = vmatprep.subr.mxu0 0.0
        %4029 = vmatpush1.msra.mxu0 %v4000
        %4030 = vmatprep.subr.mxu0 0.0
        %4031 = vmatpush1.msra.mxu0 %v3999
        %4032 = vmatprep.subr.mxu0 0.0
        %4033 = vmatpush1.msra.mxu0 %v3998
        %4034 = vmatprep.subr.mxu0 0.0
        %4035 = vmatpush1.msra.mxu0 %v3997
        %4036 = vmatprep.subr.mxu0 0.0
        %4037 = vmatpush1.msra.mxu0 %v3996
        %4038 = vmatprep.subr.mxu0 0.0
        %4039 = vmatpush1.msra.mxu0 %v3995
        %4040 = vmatprep.subr.mxu0 0.0
        %4041 = vmatpush1.msra.mxu0 %v3994
        %4042 = vmatprep.subr.mxu0 0.0
        %4043 = vmatpush2.msra.mxu0 0.0
        %4044 = vmatprep.subr.mxu0 0.0
        %4045 = vmatpush2.msra.mxu0 0.0
        %4046 = vmatprep.subr.mxu0 0.0
        %4047 = vmatpush2.msra.mxu0 0.0
        %4048 = vmatprep.subr.mxu0 0.0
        %4049 = vmatpush2.msra.mxu0 0.0
        %4050 = vmatprep.subr.mxu0 0.0
        %4051 = vmatpush2.msra.mxu0 0.0
        %4052 = vmatprep.subr.mxu0 0.0
        %4053 = vmatpush2.msra.mxu0 0.0
        %4054 = vmatprep.subr.mxu0 0.0
        %4055 = vmatpush2.msra.mxu0 0.0
        %4056 = vmatprep.subr.mxu0 0.0
        %4057 = vmatpush2.msra.mxu0 0.0
        %4058 = vmatprep.subr.mxu0 0.0
        %4059 = vmatpush2.msra.mxu0 0.0
        %4060 = vmatprep.subr.mxu0 0.0
        %4061 = vmatpush2.msra.mxu0 0.0
        %4062 = vmatprep.subr.mxu0 0.0
        %4063 = vmatpush2.msra.mxu0 0.0
        %4064 = vmatprep.subr.mxu0 0.0
        %4065 = vmatpush2.msra.mxu0 0.0
        %4066 = vmatprep.subr.mxu0 0.0
        %4067 = vmatpush2.msra.mxu0 0.0
        %4068 = vmatprep.subr.mxu0 0.0
        %4069 = vmatpush2.msra.mxu0 0.0
        %4070 = vmatprep.subr.mxu0 0.0
        %4071 = vmatpush2.msra.mxu0 0.0
        %4072 = vmatprep.subr.mxu0 0.0
        %4073 = vmatpush2.msra.mxu0 0.0
        %4074 = vmatprep.mubr.f32.mxu0 0.0
        %4075 = vmatmul.mubr.f32.gmra.mxu0 %v3754
        %v4076 = vpop.f32.mrf.mxu0
        %v4077 = vadd.f32 0.0, %v4076
        %v4078 = vpop.f32.mrf.mxu0
        %4079 = vmatprep.mubr.f32.mxu0 0.0
        %4080 = vmatmul.mubr.f32.gmra.mxu0 %v3755
        %v4081 = vpop.f32.mrf.mxu0
        %v4082 = vadd.f32 0.0, %v4081
        %v4083 = vpop.f32.mrf.mxu0
        %4084 = vmatprep.mubr.f32.mxu0 0.0
        %4085 = vmatmul.mubr.f32.gmra.mxu0 %v3756
        %v4086 = vpop.f32.mrf.mxu0
        %v4087 = vadd.f32 0.0, %v4086
        %v4088 = vpop.f32.mrf.mxu0
        %4089 = vmatprep.mubr.f32.mxu0 0.0
        %4090 = vmatmul.mubr.f32.gmra.mxu0 %v3757
        %v4091 = vpop.f32.mrf.mxu0
        %v4092 = vadd.f32 0.0, %v4091
        %v4093 = vpop.f32.mrf.mxu0
        %4094 = vmatprep.mubr.f32.mxu0 0.0
        %4095 = vmatmul.mubr.f32.gmra.mxu0 %v3758
        %v4096 = vpop.f32.mrf.mxu0
        %v4097 = vadd.f32 0.0, %v4096
        %v4098 = vpop.f32.mrf.mxu0
        %4099 = vmatprep.mubr.f32.mxu0 0.0
        %4100 = vmatmul.mubr.f32.gmra.mxu0 %v3759
        %v4101 = vpop.f32.mrf.mxu0
        %v4102 = vadd.f32 0.0, %v4101
        %v4103 = vpop.f32.mrf.mxu0
        %4104 = vmatprep.mubr.f32.mxu0 0.0
        %4105 = vmatmul.mubr.f32.gmra.mxu0 %v3760
        %v4106 = vpop.f32.mrf.mxu0
        %v4107 = vadd.f32 0.0, %v4106
        %v4108 = vpop.f32.mrf.mxu0
        %4109 = vmatprep.mubr.f32.mxu0 0.0
        %4110 = vmatmul.mubr.f32.gmra.mxu0 %v3761
        %v4111 = vpop.f32.mrf.mxu0
        %v4112 = vadd.f32 0.0, %v4111
        %v4113 = vpop.f32.mrf.mxu0
        %4114 = vmatprep.mubr.f32.mxu0 0.0
        %4115 = vmatmul.mubr.f32.gmra.mxu0 %v3762
        %v4116 = vpop.f32.mrf.mxu0
        %v4117 = vadd.f32 0.0, %v4116
        %v4118 = vpop.f32.mrf.mxu0
        %4119 = vmatprep.mubr.f32.mxu0 0.0
        %4120 = vmatmul.mubr.f32.gmra.mxu0 %v3763
        %v4121 = vpop.f32.mrf.mxu0
        %v4122 = vadd.f32 0.0, %v4121
        %v4123 = vpop.f32.mrf.mxu0
        %4124 = vmatprep.mubr.f32.mxu0 0.0
        %4125 = vmatmul.mubr.f32.gmra.mxu0 %v3764
        %v4126 = vpop.f32.mrf.mxu0
        %v4127 = vadd.f32 0.0, %v4126
        %v4128 = vpop.f32.mrf.mxu0
        %4129 = vmatprep.mubr.f32.mxu0 0.0
        %4130 = vmatmul.mubr.f32.gmra.mxu0 %v3765
        %v4131 = vpop.f32.mrf.mxu0
        %v4132 = vadd.f32 0.0, %v4131
        %v4133 = vpop.f32.mrf.mxu0
        %4134 = vmatprep.mubr.f32.mxu0 0.0
        %4135 = vmatmul.mubr.f32.gmra.mxu0 %v3766
        %v4136 = vpop.f32.mrf.mxu0
        %v4137 = vadd.f32 0.0, %v4136
        %v4138 = vpop.f32.mrf.mxu0
        %4139 = vmatprep.mubr.f32.mxu0 0.0
        %4140 = vmatmul.mubr.f32.gmra.mxu0 %v3767
        %v4141 = vpop.f32.mrf.mxu0
        %v4142 = vadd.f32 0.0, %v4141
        %v4143 = vpop.f32.mrf.mxu0
        %4144 = vmatprep.mubr.f32.mxu0 0.0
        %4145 = vmatmul.mubr.f32.gmra.mxu0 %v3768
        %v4146 = vpop.f32.mrf.mxu0
        %v4147 = vadd.f32 0.0, %v4146
        %v4148 = vpop.f32.mrf.mxu0
        %4149 = vmatprep.mubr.f32.mxu0 0.0
        %4150 = vmatmul.mubr.f32.gmra.mxu0 %v3769
        %v4151 = vpop.f32.mrf.mxu0
        %v4152 = vadd.f32 0.0, %v4151
        %v4153 = vpop.f32.mrf.mxu0
        %4154 = vmatprep.mubr.f32.mxu0 0.0
        %4155 = vmatmul.mubr.f32.gmra.mxu0 %v3818
        %v4156 = vpop.f32.mrf.mxu0
        %v4157 = vadd.f32 0.0, %v4156
        %v4158 = vpop.f32.mrf.mxu0
        %4159 = vmatprep.mubr.f32.mxu0 0.0
        %4160 = vmatmul.mubr.f32.gmra.mxu0 %v3819
        %v4161 = vpop.f32.mrf.mxu0
        %v4162 = vadd.f32 0.0, %v4161
        %v4163 = vpop.f32.mrf.mxu0
        %4164 = vmatprep.mubr.f32.mxu0 0.0
        %4165 = vmatmul.mubr.f32.gmra.mxu0 %v3820
        %v4166 = vpop.f32.mrf.mxu0
        %v4167 = vadd.f32 0.0, %v4166
        %v4168 = vpop.f32.mrf.mxu0
        %4169 = vmatprep.mubr.f32.mxu0 0.0
        %4170 = vmatmul.mubr.f32.gmra.mxu0 %v3821
        %v4171 = vpop.f32.mrf.mxu0
        %v4172 = vadd.f32 0.0, %v4171
        %v4173 = vpop.f32.mrf.mxu0
        %4174 = vmatprep.mubr.f32.mxu0 0.0
        %4175 = vmatmul.mubr.f32.gmra.mxu0 %v3822
        %v4176 = vpop.f32.mrf.mxu0
        %v4177 = vadd.f32 0.0, %v4176
        %v4178 = vpop.f32.mrf.mxu0
        %4179 = vmatprep.mubr.f32.mxu0 0.0
        %4180 = vmatmul.mubr.f32.gmra.mxu0 %v3823
        %v4181 = vpop.f32.mrf.mxu0
        %v4182 = vadd.f32 0.0, %v4181
        %v4183 = vpop.f32.mrf.mxu0
        %4184 = vmatprep.mubr.f32.mxu0 0.0
        %4185 = vmatmul.mubr.f32.gmra.mxu0 %v3824
        %v4186 = vpop.f32.mrf.mxu0
        %v4187 = vadd.f32 0.0, %v4186
        %v4188 = vpop.f32.mrf.mxu0
        %4189 = vmatprep.mubr.f32.mxu0 0.0
        %4190 = vmatmul.mubr.f32.gmra.mxu0 %v3825
        %v4191 = vpop.f32.mrf.mxu0
        %v4192 = vadd.f32 0.0, %v4191
        %v4193 = vpop.f32.mrf.mxu0
        %4194 = vmatprep.mubr.f32.mxu0 0.0
        %4195 = vmatmul.mubr.f32.gmra.mxu0 %v3826
        %v4196 = vpop.f32.mrf.mxu0
        %v4197 = vadd.f32 0.0, %v4196
        %v4198 = vpop.f32.mrf.mxu0
        %4199 = vmatprep.mubr.f32.mxu0 0.0
        %4200 = vmatmul.mubr.f32.gmra.mxu0 %v3827
        %v4201 = vpop.f32.mrf.mxu0
        %v4202 = vadd.f32 0.0, %v4201
        %v4203 = vpop.f32.mrf.mxu0
        %4204 = vmatprep.mubr.f32.mxu0 0.0
        %4205 = vmatmul.mubr.f32.gmra.mxu0 %v3828
        %v4206 = vpop.f32.mrf.mxu0
        %v4207 = vadd.f32 0.0, %v4206
        %v4208 = vpop.f32.mrf.mxu0
        %4209 = vmatprep.mubr.f32.mxu0 0.0
        %4210 = vmatmul.mubr.f32.gmra.mxu0 %v3829
        %v4211 = vpop.f32.mrf.mxu0
        %v4212 = vadd.f32 0.0, %v4211
        %v4213 = vpop.f32.mrf.mxu0
        %4214 = vmatprep.mubr.f32.mxu0 0.0
        %4215 = vmatmul.mubr.f32.gmra.mxu0 %v3830
        %v4216 = vpop.f32.mrf.mxu0
        %v4217 = vadd.f32 0.0, %v4216
        %v4218 = vpop.f32.mrf.mxu0
        %4219 = vmatprep.mubr.f32.mxu0 0.0
        %4220 = vmatmul.mubr.f32.gmra.mxu0 %v3831
        %v4221 = vpop.f32.mrf.mxu0
        %v4222 = vadd.f32 0.0, %v4221
        %v4223 = vpop.f32.mrf.mxu0
        %4224 = vmatprep.mubr.f32.mxu0 0.0
        %4225 = vmatmul.mubr.f32.gmra.mxu0 %v3832
        %v4226 = vpop.f32.mrf.mxu0
        %v4227 = vadd.f32 0.0, %v4226
        %v4228 = vpop.f32.mrf.mxu0
        %4229 = vmatprep.mubr.f32.mxu0 0.0
        %4230 = vmatmul.mubr.f32.gmra.mxu0 %v3833
        %v4231 = vpop.f32.mrf.mxu0
        %v4232 = vadd.f32 0.0, %v4231
        %v4233 = vpop.f32.mrf.mxu0
        %4234 = vmatprep.mubr.f32.mxu0 0.0
        %4235 = vmatmul.mubr.f32.gmra.mxu0 %v3882
        %v4236 = vpop.f32.mrf.mxu0
        %v4237 = vadd.f32 0.0, %v4236
        %v4238 = vpop.f32.mrf.mxu0
        %4239 = vmatprep.mubr.f32.mxu0 0.0
        %4240 = vmatmul.mubr.f32.gmra.mxu0 %v3883
        %v4241 = vpop.f32.mrf.mxu0
        %v4242 = vadd.f32 0.0, %v4241
        %v4243 = vpop.f32.mrf.mxu0
        %4244 = vmatprep.mubr.f32.mxu0 0.0
        %4245 = vmatmul.mubr.f32.gmra.mxu0 %v3884
        %v4246 = vpop.f32.mrf.mxu0
        %v4247 = vadd.f32 0.0, %v4246
        %v4248 = vpop.f32.mrf.mxu0
        %4249 = vmatprep.mubr.f32.mxu0 0.0
        %4250 = vmatmul.mubr.f32.gmra.mxu0 %v3885
        %v4251 = vpop.f32.mrf.mxu0
        %v4252 = vadd.f32 0.0, %v4251
        %v4253 = vpop.f32.mrf.mxu0
        %4254 = vmatprep.mubr.f32.mxu0 0.0
        %4255 = vmatmul.mubr.f32.gmra.mxu0 %v3886
        %v4256 = vpop.f32.mrf.mxu0
        %v4257 = vadd.f32 0.0, %v4256
        %v4258 = vpop.f32.mrf.mxu0
        %4259 = vmatprep.mubr.f32.mxu0 0.0
        %4260 = vmatmul.mubr.f32.gmra.mxu0 %v3887
        %v4261 = vpop.f32.mrf.mxu0
        %v4262 = vadd.f32 0.0, %v4261
        %v4263 = vpop.f32.mrf.mxu0
        %4264 = vmatprep.mubr.f32.mxu0 0.0
        %4265 = vmatmul.mubr.f32.gmra.mxu0 %v3888
        %v4266 = vpop.f32.mrf.mxu0
        %v4267 = vadd.f32 0.0, %v4266
        %v4268 = vpop.f32.mrf.mxu0
        %4269 = vmatprep.mubr.f32.mxu0 0.0
        %4270 = vmatmul.mubr.f32.gmra.mxu0 %v3889
        %v4271 = vpop.f32.mrf.mxu0
        %v4272 = vadd.f32 0.0, %v4271
        %v4273 = vpop.f32.mrf.mxu0
        %4274 = vmatprep.mubr.f32.mxu0 0.0
        %4275 = vmatmul.mubr.f32.gmra.mxu0 %v3890
        %v4276 = vpop.f32.mrf.mxu0
        %v4277 = vadd.f32 0.0, %v4276
        %v4278 = vpop.f32.mrf.mxu0
        %4279 = vmatprep.mubr.f32.mxu0 0.0
        %4280 = vmatmul.mubr.f32.gmra.mxu0 %v3891
        %v4281 = vpop.f32.mrf.mxu0
        %v4282 = vadd.f32 0.0, %v4281
        %v4283 = vpop.f32.mrf.mxu0
        %4284 = vmatprep.mubr.f32.mxu0 0.0
        %4285 = vmatmul.mubr.f32.gmra.mxu0 %v3892
        %v4286 = vpop.f32.mrf.mxu0
        %v4287 = vadd.f32 0.0, %v4286
        %v4288 = vpop.f32.mrf.mxu0
        %4289 = vmatprep.mubr.f32.mxu0 0.0
        %4290 = vmatmul.mubr.f32.gmra.mxu0 %v3893
        %v4291 = vpop.f32.mrf.mxu0
        %v4292 = vadd.f32 0.0, %v4291
        %v4293 = vpop.f32.mrf.mxu0
        %4294 = vmatprep.mubr.f32.mxu0 0.0
        %4295 = vmatmul.mubr.f32.gmra.mxu0 %v3894
        %v4296 = vpop.f32.mrf.mxu0
        %v4297 = vadd.f32 0.0, %v4296
        %v4298 = vpop.f32.mrf.mxu0
        %4299 = vmatprep.mubr.f32.mxu0 0.0
        %4300 = vmatmul.mubr.f32.gmra.mxu0 %v3895
        %v4301 = vpop.f32.mrf.mxu0
        %v4302 = vadd.f32 0.0, %v4301
        %v4303 = vpop.f32.mrf.mxu0
        %4304 = vmatprep.mubr.f32.mxu0 0.0
        %4305 = vmatmul.mubr.f32.gmra.mxu0 %v3896
        %v4306 = vpop.f32.mrf.mxu0
        %v4307 = vadd.f32 0.0, %v4306
        %v4308 = vpop.f32.mrf.mxu0
        %4309 = vmatprep.mubr.f32.mxu0 0.0
        %4310 = vmatmul.mubr.f32.gmra.mxu0 %v3897
        %v4311 = vpop.f32.mrf.mxu0
        %v4312 = vadd.f32 0.0, %v4311
        %v4313 = vpop.f32.mrf.mxu0
        %4314 = vmatprep.mubr.f32.mxu0 0.0
        %4315 = vmatmul.mubr.f32.gmra.mxu0 %v3946
        %v4316 = vpop.f32.mrf.mxu0
        %v4317 = vadd.f32 0.0, %v4316
        %v4318 = vpop.f32.mrf.mxu0
        %4319 = vmatprep.mubr.f32.mxu0 0.0
        %4320 = vmatmul.mubr.f32.gmra.mxu0 %v3947
        %v4321 = vpop.f32.mrf.mxu0
        %v4322 = vadd.f32 0.0, %v4321
        %v4323 = vpop.f32.mrf.mxu0
        %4324 = vmatprep.mubr.f32.mxu0 0.0
        %4325 = vmatmul.mubr.f32.gmra.mxu0 %v3948
        %v4326 = vpop.f32.mrf.mxu0
        %v4327 = vadd.f32 0.0, %v4326
        %v4328 = vpop.f32.mrf.mxu0
        %4329 = vmatprep.mubr.f32.mxu0 0.0
        %4330 = vmatmul.mubr.f32.gmra.mxu0 %v3949
        %v4331 = vpop.f32.mrf.mxu0
        %v4332 = vadd.f32 0.0, %v4331
        %v4333 = vpop.f32.mrf.mxu0
        %4334 = vmatprep.mubr.f32.mxu0 0.0
        %4335 = vmatmul.mubr.f32.gmra.mxu0 %v3950
        %v4336 = vpop.f32.mrf.mxu0
        %v4337 = vadd.f32 0.0, %v4336
        %v4338 = vpop.f32.mrf.mxu0
        %4339 = vmatprep.mubr.f32.mxu0 0.0
        %4340 = vmatmul.mubr.f32.gmra.mxu0 %v3951
        %v4341 = vpop.f32.mrf.mxu0
        %v4342 = vadd.f32 0.0, %v4341
        %v4343 = vpop.f32.mrf.mxu0
        %4344 = vmatprep.mubr.f32.mxu0 0.0
        %4345 = vmatmul.mubr.f32.gmra.mxu0 %v3952
        %v4346 = vpop.f32.mrf.mxu0
        %v4347 = vadd.f32 0.0, %v4346
        %v4348 = vpop.f32.mrf.mxu0
        %4349 = vmatprep.mubr.f32.mxu0 0.0
        %4350 = vmatmul.mubr.f32.gmra.mxu0 %v3953
        %v4351 = vpop.f32.mrf.mxu0
        %v4352 = vadd.f32 0.0, %v4351
        %v4353 = vpop.f32.mrf.mxu0
        %4354 = vmatprep.mubr.f32.mxu0 0.0
        %4355 = vmatmul.mubr.f32.gmra.mxu0 %v3954
        %v4356 = vpop.f32.mrf.mxu0
        %v4357 = vadd.f32 0.0, %v4356
        %v4358 = vpop.f32.mrf.mxu0
        %4359 = vmatprep.mubr.f32.mxu0 0.0
        %4360 = vmatmul.mubr.f32.gmra.mxu0 %v3955
        %v4361 = vpop.f32.mrf.mxu0
        %v4362 = vadd.f32 0.0, %v4361
        %v4363 = vpop.f32.mrf.mxu0
        %4364 = vmatprep.mubr.f32.mxu0 0.0
        %4365 = vmatmul.mubr.f32.gmra.mxu0 %v3956
        %v4366 = vpop.f32.mrf.mxu0
        %v4367 = vadd.f32 0.0, %v4366
        %v4368 = vpop.f32.mrf.mxu0
        %4369 = vmatprep.mubr.f32.mxu0 0.0
        %4370 = vmatmul.mubr.f32.gmra.mxu0 %v3957
        %v4371 = vpop.f32.mrf.mxu0
        %v4372 = vadd.f32 0.0, %v4371
        %v4373 = vpop.f32.mrf.mxu0
        %4374 = vmatprep.mubr.f32.mxu0 0.0
        %4375 = vmatmul.mubr.f32.gmra.mxu0 %v3958
        %v4376 = vpop.f32.mrf.mxu0
        %v4377 = vadd.f32 0.0, %v4376
        %v4378 = vpop.f32.mrf.mxu0
        %4379 = vmatprep.mubr.f32.mxu0 0.0
        %4380 = vmatmul.mubr.f32.gmra.mxu0 %v3959
        %v4381 = vpop.f32.mrf.mxu0
        %v4382 = vadd.f32 0.0, %v4381
        %v4383 = vpop.f32.mrf.mxu0
        %4384 = vmatprep.mubr.f32.mxu0 0.0
        %4385 = vmatmul.mubr.f32.gmra.mxu0 %v3960
        %v4386 = vpop.f32.mrf.mxu0
        %v4387 = vadd.f32 0.0, %v4386
        %v4388 = vpop.f32.mrf.mxu0
        %4389 = vmatprep.mubr.f32.mxu0 0.0
        %4390 = vmatmul.mubr.f32.gmra.mxu0 %v3961
        %v4391 = vpop.f32.mrf.mxu0
        %v4392 = vadd.f32 0.0, %v4391
        %v4393 = vpop.f32.mrf.mxu0
        %4394 = vdwg.mxu0
        %v4395 = vld [vmem:[#allocation16] sm:$0xff]
        %v4396 = vld [vmem:[#allocation16 + $0x8] sm:$0xff]
        %v4397 = vld [vmem:[#allocation16 + $0x10] sm:$0xff]
        %v4398 = vld [vmem:[#allocation16 + $0x18] sm:$0xff]
        %v4399 = vld [vmem:[#allocation16 + $0x20] sm:$0xff]
        %v4400 = vld [vmem:[#allocation16 + $0x28] sm:$0xff]
        %v4401 = vld [vmem:[#allocation16 + $0x30] sm:$0xff]
        %v4402 = vld [vmem:[#allocation16 + $0x38] sm:$0xff]
        %v4403 = vld [vmem:[#allocation16 + $0x40] sm:$0xff]
        %v4404 = vld [vmem:[#allocation16 + $0x48] sm:$0xff]
        %v4405 = vld [vmem:[#allocation16 + $0x50] sm:$0xff]
        %v4406 = vld [vmem:[#allocation16 + $0x58] sm:$0xff]
        %v4407 = vld [vmem:[#allocation16 + $0x60] sm:$0xff]
        %v4408 = vld [vmem:[#allocation16 + $0x68] sm:$0xff]
        %v4409 = vld [vmem:[#allocation16 + $0x70] sm:$0xff]
        %v4410 = vld [vmem:[#allocation16 + $0x78] sm:$0xff]
        %4411 = vmatprep.subr.mxu0 0.0
        %4412 = vmatpush1.msra.mxu0 %v4410
        %4413 = vmatprep.subr.mxu0 0.0
        %4414 = vmatpush1.msra.mxu0 %v4409
        %4415 = vmatprep.subr.mxu0 0.0
        %4416 = vmatpush1.msra.mxu0 %v4408
        %4417 = vmatprep.subr.mxu0 0.0
        %4418 = vmatpush1.msra.mxu0 %v4407
        %4419 = vmatprep.subr.mxu0 0.0
        %4420 = vmatpush1.msra.mxu0 %v4406
        %4421 = vmatprep.subr.mxu0 0.0
        %4422 = vmatpush1.msra.mxu0 %v4405
        %4423 = vmatprep.subr.mxu0 0.0
        %4424 = vmatpush1.msra.mxu0 %v4404
        %4425 = vmatprep.subr.mxu0 0.0
        %4426 = vmatpush1.msra.mxu0 %v4403
        %4427 = vmatprep.subr.mxu0 0.0
        %4428 = vmatpush1.msra.mxu0 %v4402
        %4429 = vmatprep.subr.mxu0 0.0
        %4430 = vmatpush1.msra.mxu0 %v4401
        %4431 = vmatprep.subr.mxu0 0.0
        %4432 = vmatpush1.msra.mxu0 %v4400
        %4433 = vmatprep.subr.mxu0 0.0
        %4434 = vmatpush1.msra.mxu0 %v4399
        %4435 = vmatprep.subr.mxu0 0.0
        %4436 = vmatpush1.msra.mxu0 %v4398
        %4437 = vmatprep.subr.mxu0 0.0
        %4438 = vmatpush1.msra.mxu0 %v4397
        %4439 = vmatprep.subr.mxu0 0.0
        %4440 = vmatpush1.msra.mxu0 %v4396
        %4441 = vmatprep.subr.mxu0 0.0
        %4442 = vmatpush1.msra.mxu0 %v4395
        %4443 = vmatprep.subr.mxu0 0.0
        %4444 = vmatpush2.msra.mxu0 0.0
        %4445 = vmatprep.subr.mxu0 0.0
        %4446 = vmatpush2.msra.mxu0 0.0
        %4447 = vmatprep.subr.mxu0 0.0
        %4448 = vmatpush2.msra.mxu0 0.0
        %4449 = vmatprep.subr.mxu0 0.0
        %4450 = vmatpush2.msra.mxu0 0.0
        %4451 = vmatprep.subr.mxu0 0.0
        %4452 = vmatpush2.msra.mxu0 0.0
        %4453 = vmatprep.subr.mxu0 0.0
        %4454 = vmatpush2.msra.mxu0 0.0
        %4455 = vmatprep.subr.mxu0 0.0
        %4456 = vmatpush2.msra.mxu0 0.0
        %4457 = vmatprep.subr.mxu0 0.0
        %4458 = vmatpush2.msra.mxu0 0.0
        %4459 = vmatprep.subr.mxu0 0.0
        %4460 = vmatpush2.msra.mxu0 0.0
        %4461 = vmatprep.subr.mxu0 0.0
        %4462 = vmatpush2.msra.mxu0 0.0
        %4463 = vmatprep.subr.mxu0 0.0
        %4464 = vmatpush2.msra.mxu0 0.0
        %4465 = vmatprep.subr.mxu0 0.0
        %4466 = vmatpush2.msra.mxu0 0.0
        %4467 = vmatprep.subr.mxu0 0.0
        %4468 = vmatpush2.msra.mxu0 0.0
        %4469 = vmatprep.subr.mxu0 0.0
        %4470 = vmatpush2.msra.mxu0 0.0
        %4471 = vmatprep.subr.mxu0 0.0
        %4472 = vmatpush2.msra.mxu0 0.0
        %4473 = vmatprep.subr.mxu0 0.0
        %4474 = vmatpush2.msra.mxu0 0.0
        %4475 = vmatprep.mubr.f32.mxu0 0.0
        %4476 = vmatmul.mubr.f32.gmra.mxu0 %v3786
        %v4477 = vpop.f32.mrf.mxu0
        %v4478 = vadd.f32 0.0, %v4477
        %v4479 = vpop.f32.mrf.mxu0
        %4480 = vmatprep.mubr.f32.mxu0 0.0
        %4481 = vmatmul.mubr.f32.gmra.mxu0 %v3787
        %v4482 = vpop.f32.mrf.mxu0
        %v4483 = vadd.f32 0.0, %v4482
        %v4484 = vpop.f32.mrf.mxu0
        %4485 = vmatprep.mubr.f32.mxu0 0.0
        %4486 = vmatmul.mubr.f32.gmra.mxu0 %v3788
        %v4487 = vpop.f32.mrf.mxu0
        %v4488 = vadd.f32 0.0, %v4487
        %v4489 = vpop.f32.mrf.mxu0
        %4490 = vmatprep.mubr.f32.mxu0 0.0
        %4491 = vmatmul.mubr.f32.gmra.mxu0 %v3789
        %v4492 = vpop.f32.mrf.mxu0
        %v4493 = vadd.f32 0.0, %v4492
        %v4494 = vpop.f32.mrf.mxu0
        %4495 = vmatprep.mubr.f32.mxu0 0.0
        %4496 = vmatmul.mubr.f32.gmra.mxu0 %v3790
        %v4497 = vpop.f32.mrf.mxu0
        %v4498 = vadd.f32 0.0, %v4497
        %v4499 = vpop.f32.mrf.mxu0
        %4500 = vmatprep.mubr.f32.mxu0 0.0
        %4501 = vmatmul.mubr.f32.gmra.mxu0 %v3791
        %v4502 = vpop.f32.mrf.mxu0
        %v4503 = vadd.f32 0.0, %v4502
        %v4504 = vpop.f32.mrf.mxu0
        %4505 = vmatprep.mubr.f32.mxu0 0.0
        %4506 = vmatmul.mubr.f32.gmra.mxu0 %v3792
        %v4507 = vpop.f32.mrf.mxu0
        %v4508 = vadd.f32 0.0, %v4507
        %v4509 = vpop.f32.mrf.mxu0
        %4510 = vmatprep.mubr.f32.mxu0 0.0
        %4511 = vmatmul.mubr.f32.gmra.mxu0 %v3793
        %v4512 = vpop.f32.mrf.mxu0
        %v4513 = vadd.f32 0.0, %v4512
        %v4514 = vpop.f32.mrf.mxu0
        %4515 = vmatprep.mubr.f32.mxu0 0.0
        %4516 = vmatmul.mubr.f32.gmra.mxu0 %v3794
        %v4517 = vpop.f32.mrf.mxu0
        %v4518 = vadd.f32 0.0, %v4517
        %v4519 = vpop.f32.mrf.mxu0
        %4520 = vmatprep.mubr.f32.mxu0 0.0
        %4521 = vmatmul.mubr.f32.gmra.mxu0 %v3795
        %v4522 = vpop.f32.mrf.mxu0
        %v4523 = vadd.f32 0.0, %v4522
        %v4524 = vpop.f32.mrf.mxu0
        %4525 = vmatprep.mubr.f32.mxu0 0.0
        %4526 = vmatmul.mubr.f32.gmra.mxu0 %v3796
        %v4527 = vpop.f32.mrf.mxu0
        %v4528 = vadd.f32 0.0, %v4527
        %v4529 = vpop.f32.mrf.mxu0
        %4530 = vmatprep.mubr.f32.mxu0 0.0
        %4531 = vmatmul.mubr.f32.gmra.mxu0 %v3797
        %v4532 = vpop.f32.mrf.mxu0
        %v4533 = vadd.f32 0.0, %v4532
        %v4534 = vpop.f32.mrf.mxu0
        %4535 = vmatprep.mubr.f32.mxu0 0.0
        %4536 = vmatmul.mubr.f32.gmra.mxu0 %v3798
        %v4537 = vpop.f32.mrf.mxu0
        %v4538 = vadd.f32 0.0, %v4537
        %v4539 = vpop.f32.mrf.mxu0
        %4540 = vmatprep.mubr.f32.mxu0 0.0
        %4541 = vmatmul.mubr.f32.gmra.mxu0 %v3799
        %v4542 = vpop.f32.mrf.mxu0
        %v4543 = vadd.f32 0.0, %v4542
        %v4544 = vpop.f32.mrf.mxu0
        %4545 = vmatprep.mubr.f32.mxu0 0.0
        %4546 = vmatmul.mubr.f32.gmra.mxu0 %v3800
        %v4547 = vpop.f32.mrf.mxu0
        %v4548 = vadd.f32 0.0, %v4547
        %v4549 = vpop.f32.mrf.mxu0
        %4550 = vmatprep.mubr.f32.mxu0 0.0
        %4551 = vmatmul.mubr.f32.gmra.mxu0 %v3801
        %v4552 = vpop.f32.mrf.mxu0
        %v4553 = vadd.f32 0.0, %v4552
        %v4554 = vpop.f32.mrf.mxu0
        %4555 = vmatprep.mubr.f32.mxu0 0.0
        %4556 = vmatmul.mubr.f32.gmra.mxu0 %v3850
        %v4557 = vpop.f32.mrf.mxu0
        %v4558 = vadd.f32 0.0, %v4557
        %v4559 = vpop.f32.mrf.mxu0
        %4560 = vmatprep.mubr.f32.mxu0 0.0
        %4561 = vmatmul.mubr.f32.gmra.mxu0 %v3851
        %v4562 = vpop.f32.mrf.mxu0
        %v4563 = vadd.f32 0.0, %v4562
        %v4564 = vpop.f32.mrf.mxu0
        %4565 = vmatprep.mubr.f32.mxu0 0.0
        %4566 = vmatmul.mubr.f32.gmra.mxu0 %v3852
        %v4567 = vpop.f32.mrf.mxu0
        %v4568 = vadd.f32 0.0, %v4567
        %v4569 = vpop.f32.mrf.mxu0
        %4570 = vmatprep.mubr.f32.mxu0 0.0
        %4571 = vmatmul.mubr.f32.gmra.mxu0 %v3853
        %v4572 = vpop.f32.mrf.mxu0
        %v4573 = vadd.f32 0.0, %v4572
        %v4574 = vpop.f32.mrf.mxu0
        %4575 = vmatprep.mubr.f32.mxu0 0.0
        %4576 = vmatmul.mubr.f32.gmra.mxu0 %v3854
        %v4577 = vpop.f32.mrf.mxu0
        %v4578 = vadd.f32 0.0, %v4577
        %v4579 = vpop.f32.mrf.mxu0
        %4580 = vmatprep.mubr.f32.mxu0 0.0
        %4581 = vmatmul.mubr.f32.gmra.mxu0 %v3855
        %v4582 = vpop.f32.mrf.mxu0
        %v4583 = vadd.f32 0.0, %v4582
        %v4584 = vpop.f32.mrf.mxu0
        %4585 = vmatprep.mubr.f32.mxu0 0.0
        %4586 = vmatmul.mubr.f32.gmra.mxu0 %v3856
        %v4587 = vpop.f32.mrf.mxu0
        %v4588 = vadd.f32 0.0, %v4587
        %v4589 = vpop.f32.mrf.mxu0
        %4590 = vmatprep.mubr.f32.mxu0 0.0
        %4591 = vmatmul.mubr.f32.gmra.mxu0 %v3857
        %v4592 = vpop.f32.mrf.mxu0
        %v4593 = vadd.f32 0.0, %v4592
        %v4594 = vpop.f32.mrf.mxu0
        %4595 = vmatprep.mubr.f32.mxu0 0.0
        %4596 = vmatmul.mubr.f32.gmra.mxu0 %v3858
        %v4597 = vpop.f32.mrf.mxu0
        %v4598 = vadd.f32 0.0, %v4597
        %v4599 = vpop.f32.mrf.mxu0
        %4600 = vmatprep.mubr.f32.mxu0 0.0
        %4601 = vmatmul.mubr.f32.gmra.mxu0 %v3859
        %v4602 = vpop.f32.mrf.mxu0
        %v4603 = vadd.f32 0.0, %v4602
        %v4604 = vpop.f32.mrf.mxu0
        %4605 = vmatprep.mubr.f32.mxu0 0.0
        %4606 = vmatmul.mubr.f32.gmra.mxu0 %v3860
        %v4607 = vpop.f32.mrf.mxu0
        %v4608 = vadd.f32 0.0, %v4607
        %v4609 = vpop.f32.mrf.mxu0
        %4610 = vmatprep.mubr.f32.mxu0 0.0
        %4611 = vmatmul.mubr.f32.gmra.mxu0 %v3861
        %v4612 = vpop.f32.mrf.mxu0
        %v4613 = vadd.f32 0.0, %v4612
        %v4614 = vpop.f32.mrf.mxu0
        %4615 = vmatprep.mubr.f32.mxu0 0.0
        %4616 = vmatmul.mubr.f32.gmra.mxu0 %v3862
        %v4617 = vpop.f32.mrf.mxu0
        %v4618 = vadd.f32 0.0, %v4617
        %v4619 = vpop.f32.mrf.mxu0
        %4620 = vmatprep.mubr.f32.mxu0 0.0
        %4621 = vmatmul.mubr.f32.gmra.mxu0 %v3863
        %v4622 = vpop.f32.mrf.mxu0
        %v4623 = vadd.f32 0.0, %v4622
        %v4624 = vpop.f32.mrf.mxu0
        %4625 = vmatprep.mubr.f32.mxu0 0.0
        %4626 = vmatmul.mubr.f32.gmra.mxu0 %v3864
        %v4627 = vpop.f32.mrf.mxu0
        %v4628 = vadd.f32 0.0, %v4627
        %v4629 = vpop.f32.mrf.mxu0
        %4630 = vmatprep.mubr.f32.mxu0 0.0
        %4631 = vmatmul.mubr.f32.gmra.mxu0 %v3865
        %v4632 = vpop.f32.mrf.mxu0
        %v4633 = vadd.f32 0.0, %v4632
        %v4634 = vpop.f32.mrf.mxu0
        %4635 = vmatprep.mubr.f32.mxu0 0.0
        %4636 = vmatmul.mubr.f32.gmra.mxu0 %v3914
        %v4637 = vpop.f32.mrf.mxu0
        %v4638 = vadd.f32 0.0, %v4637
        %v4639 = vpop.f32.mrf.mxu0
        %4640 = vmatprep.mubr.f32.mxu0 0.0
        %4641 = vmatmul.mubr.f32.gmra.mxu0 %v3915
        %v4642 = vpop.f32.mrf.mxu0
        %v4643 = vadd.f32 0.0, %v4642
        %v4644 = vpop.f32.mrf.mxu0
        %4645 = vmatprep.mubr.f32.mxu0 0.0
        %4646 = vmatmul.mubr.f32.gmra.mxu0 %v3916
        %v4647 = vpop.f32.mrf.mxu0
        %v4648 = vadd.f32 0.0, %v4647
        %v4649 = vpop.f32.mrf.mxu0
        %4650 = vmatprep.mubr.f32.mxu0 0.0
        %4651 = vmatmul.mubr.f32.gmra.mxu0 %v3917
        %v4652 = vpop.f32.mrf.mxu0
        %v4653 = vadd.f32 0.0, %v4652
        %v4654 = vpop.f32.mrf.mxu0
        %4655 = vmatprep.mubr.f32.mxu0 0.0
        %4656 = vmatmul.mubr.f32.gmra.mxu0 %v3918
        %v4657 = vpop.f32.mrf.mxu0
        %v4658 = vadd.f32 0.0, %v4657
        %v4659 = vpop.f32.mrf.mxu0
        %4660 = vmatprep.mubr.f32.mxu0 0.0
        %4661 = vmatmul.mubr.f32.gmra.mxu0 %v3919
        %v4662 = vpop.f32.mrf.mxu0
        %v4663 = vadd.f32 0.0, %v4662
        %v4664 = vpop.f32.mrf.mxu0
        %4665 = vmatprep.mubr.f32.mxu0 0.0
        %4666 = vmatmul.mubr.f32.gmra.mxu0 %v3920
        %v4667 = vpop.f32.mrf.mxu0
        %v4668 = vadd.f32 0.0, %v4667
        %v4669 = vpop.f32.mrf.mxu0
        %4670 = vmatprep.mubr.f32.mxu0 0.0
        %4671 = vmatmul.mubr.f32.gmra.mxu0 %v3921
        %v4672 = vpop.f32.mrf.mxu0
        %v4673 = vadd.f32 0.0, %v4672
        %v4674 = vpop.f32.mrf.mxu0
        %4675 = vmatprep.mubr.f32.mxu0 0.0
        %4676 = vmatmul.mubr.f32.gmra.mxu0 %v3922
        %v4677 = vpop.f32.mrf.mxu0
        %v4678 = vadd.f32 0.0, %v4677
        %v4679 = vpop.f32.mrf.mxu0
        %4680 = vmatprep.mubr.f32.mxu0 0.0
        %4681 = vmatmul.mubr.f32.gmra.mxu0 %v3923
        %v4682 = vpop.f32.mrf.mxu0
        %v4683 = vadd.f32 0.0, %v4682
        %v4684 = vpop.f32.mrf.mxu0
        %4685 = vmatprep.mubr.f32.mxu0 0.0
        %4686 = vmatmul.mubr.f32.gmra.mxu0 %v3924
        %v4687 = vpop.f32.mrf.mxu0
        %v4688 = vadd.f32 0.0, %v4687
        %v4689 = vpop.f32.mrf.mxu0
        %4690 = vmatprep.mubr.f32.mxu0 0.0
        %4691 = vmatmul.mubr.f32.gmra.mxu0 %v3925
        %v4692 = vpop.f32.mrf.mxu0
        %v4693 = vadd.f32 0.0, %v4692
        %v4694 = vpop.f32.mrf.mxu0
        %4695 = vmatprep.mubr.f32.mxu0 0.0
        %4696 = vmatmul.mubr.f32.gmra.mxu0 %v3926
        %v4697 = vpop.f32.mrf.mxu0
        %v4698 = vadd.f32 0.0, %v4697
        %v4699 = vpop.f32.mrf.mxu0
        %4700 = vmatprep.mubr.f32.mxu0 0.0
        %4701 = vmatmul.mubr.f32.gmra.mxu0 %v3927
        %v4702 = vpop.f32.mrf.mxu0
        %v4703 = vadd.f32 0.0, %v4702
        %v4704 = vpop.f32.mrf.mxu0
        %4705 = vmatprep.mubr.f32.mxu0 0.0
        %4706 = vmatmul.mubr.f32.gmra.mxu0 %v3928
        %v4707 = vpop.f32.mrf.mxu0
        %v4708 = vadd.f32 0.0, %v4707
        %v4709 = vpop.f32.mrf.mxu0
        %4710 = vmatprep.mubr.f32.mxu0 0.0
        %4711 = vmatmul.mubr.f32.gmra.mxu0 %v3929
        %v4712 = vpop.f32.mrf.mxu0
        %v4713 = vadd.f32 0.0, %v4712
        %v4714 = vpop.f32.mrf.mxu0
        %4715 = vmatprep.mubr.f32.mxu0 0.0
        %4716 = vmatmul.mubr.f32.gmra.mxu0 %v3978
        %v4717 = vpop.f32.mrf.mxu0
        %v4718 = vadd.f32 0.0, %v4717
        %v4719 = vpop.f32.mrf.mxu0
        %4720 = vmatprep.mubr.f32.mxu0 0.0
        %4721 = vmatmul.mubr.f32.gmra.mxu0 %v3979
        %v4722 = vpop.f32.mrf.mxu0
        %v4723 = vadd.f32 0.0, %v4722
        %v4724 = vpop.f32.mrf.mxu0
        %4725 = vmatprep.mubr.f32.mxu0 0.0
        %4726 = vmatmul.mubr.f32.gmra.mxu0 %v3980
        %v4727 = vpop.f32.mrf.mxu0
        %v4728 = vadd.f32 0.0, %v4727
        %v4729 = vpop.f32.mrf.mxu0
        %4730 = vmatprep.mubr.f32.mxu0 0.0
        %4731 = vmatmul.mubr.f32.gmra.mxu0 %v3981
        %v4732 = vpop.f32.mrf.mxu0
        %v4733 = vadd.f32 0.0, %v4732
        %v4734 = vpop.f32.mrf.mxu0
        %4735 = vmatprep.mubr.f32.mxu0 0.0
        %4736 = vmatmul.mubr.f32.gmra.mxu0 %v3982
        %v4737 = vpop.f32.mrf.mxu0
        %v4738 = vadd.f32 0.0, %v4737
        %v4739 = vpop.f32.mrf.mxu0
        %4740 = vmatprep.mubr.f32.mxu0 0.0
        %4741 = vmatmul.mubr.f32.gmra.mxu0 %v3983
        %v4742 = vpop.f32.mrf.mxu0
        %v4743 = vadd.f32 0.0, %v4742
        %v4744 = vpop.f32.mrf.mxu0
        %4745 = vmatprep.mubr.f32.mxu0 0.0
        %4746 = vmatmul.mubr.f32.gmra.mxu0 %v3984
        %v4747 = vpop.f32.mrf.mxu0
        %v4748 = vadd.f32 0.0, %v4747
        %v4749 = vpop.f32.mrf.mxu0
        %4750 = vmatprep.mubr.f32.mxu0 0.0
        %4751 = vmatmul.mubr.f32.gmra.mxu0 %v3985
        %v4752 = vpop.f32.mrf.mxu0
        %v4753 = vadd.f32 0.0, %v4752
        %v4754 = vpop.f32.mrf.mxu0
        %4755 = vmatprep.mubr.f32.mxu0 0.0
        %4756 = vmatmul.mubr.f32.gmra.mxu0 %v3986
        %v4757 = vpop.f32.mrf.mxu0
        %v4758 = vadd.f32 0.0, %v4757
        %v4759 = vpop.f32.mrf.mxu0
        %4760 = vmatprep.mubr.f32.mxu0 0.0
        %4761 = vmatmul.mubr.f32.gmra.mxu0 %v3987
        %v4762 = vpop.f32.mrf.mxu0
        %v4763 = vadd.f32 0.0, %v4762
        %v4764 = vpop.f32.mrf.mxu0
        %4765 = vmatprep.mubr.f32.mxu0 0.0
        %4766 = vmatmul.mubr.f32.gmra.mxu0 %v3988
        %v4767 = vpop.f32.mrf.mxu0
        %v4768 = vadd.f32 0.0, %v4767
        %v4769 = vpop.f32.mrf.mxu0
        %4770 = vmatprep.mubr.f32.mxu0 0.0
        %4771 = vmatmul.mubr.f32.gmra.mxu0 %v3989
        %v4772 = vpop.f32.mrf.mxu0
        %v4773 = vadd.f32 0.0, %v4772
        %v4774 = vpop.f32.mrf.mxu0
        %4775 = vmatprep.mubr.f32.mxu0 0.0
        %4776 = vmatmul.mubr.f32.gmra.mxu0 %v3990
        %v4777 = vpop.f32.mrf.mxu0
        %v4778 = vadd.f32 0.0, %v4777
        %v4779 = vpop.f32.mrf.mxu0
        %4780 = vmatprep.mubr.f32.mxu0 0.0
        %4781 = vmatmul.mubr.f32.gmra.mxu0 %v3991
        %v4782 = vpop.f32.mrf.mxu0
        %v4783 = vadd.f32 0.0, %v4782
        %v4784 = vpop.f32.mrf.mxu0
        %4785 = vmatprep.mubr.f32.mxu0 0.0
        %4786 = vmatmul.mubr.f32.gmra.mxu0 %v3992
        %v4787 = vpop.f32.mrf.mxu0
        %v4788 = vadd.f32 0.0, %v4787
        %v4789 = vpop.f32.mrf.mxu0
        %4790 = vmatprep.mubr.f32.mxu0 0.0
        %4791 = vmatmul.mubr.f32.gmra.mxu0 %v3993
        %v4792 = vpop.f32.mrf.mxu0
        %v4793 = vadd.f32 0.0, %v4792
        %v4794 = vpop.f32.mrf.mxu0
        %4795 = vdwg.mxu0
        %v4796 = vsub.f32 %v4077, %v4478
        %v4797 = vsub.f32 %v4082, %v4483
        %v4798 = vsub.f32 %v4087, %v4488
        %v4799 = vsub.f32 %v4092, %v4493
        %v4800 = vsub.f32 %v4097, %v4498
        %v4801 = vsub.f32 %v4102, %v4503
        %v4802 = vsub.f32 %v4107, %v4508
        %v4803 = vsub.f32 %v4112, %v4513
        %v4804 = vsub.f32 %v4117, %v4518
        %v4805 = vsub.f32 %v4122, %v4523
        %v4806 = vsub.f32 %v4127, %v4528
        %v4807 = vsub.f32 %v4132, %v4533
        %v4808 = vsub.f32 %v4137, %v4538
        %v4809 = vsub.f32 %v4142, %v4543
        %v4810 = vsub.f32 %v4147, %v4548
        %v4811 = vsub.f32 %v4152, %v4553
        %v4812 = vsub.f32 %v4157, %v4558
        %v4813 = vsub.f32 %v4162, %v4563
        %v4814 = vsub.f32 %v4167, %v4568
        %v4815 = vsub.f32 %v4172, %v4573
        %v4816 = vsub.f32 %v4177, %v4578
        %v4817 = vsub.f32 %v4182, %v4583
        %v4818 = vsub.f32 %v4187, %v4588
        %v4819 = vsub.f32 %v4192, %v4593
        %v4820 = vsub.f32 %v4197, %v4598
        %v4821 = vsub.f32 %v4202, %v4603
        %v4822 = vsub.f32 %v4207, %v4608
        %v4823 = vsub.f32 %v4212, %v4613
        %v4824 = vsub.f32 %v4217, %v4618
        %v4825 = vsub.f32 %v4222, %v4623
        %v4826 = vsub.f32 %v4227, %v4628
        %v4827 = vsub.f32 %v4232, %v4633
        %v4828 = vsub.f32 %v4237, %v4638
        %v4829 = vsub.f32 %v4242, %v4643
        %v4830 = vsub.f32 %v4247, %v4648
        %v4831 = vsub.f32 %v4252, %v4653
        %v4832 = vsub.f32 %v4257, %v4658
        %v4833 = vsub.f32 %v4262, %v4663
        %v4834 = vsub.f32 %v4267, %v4668
        %v4835 = vsub.f32 %v4272, %v4673
        %v4836 = vsub.f32 %v4277, %v4678
        %v4837 = vsub.f32 %v4282, %v4683
        %v4838 = vsub.f32 %v4287, %v4688
        %v4839 = vsub.f32 %v4292, %v4693
        %v4840 = vsub.f32 %v4297, %v4698
        %v4841 = vsub.f32 %v4302, %v4703
        %v4842 = vsub.f32 %v4307, %v4708
        %v4843 = vsub.f32 %v4312, %v4713
        %v4844 = vsub.f32 %v4317, %v4718
        %v4845 = vsub.f32 %v4322, %v4723
        %v4846 = vsub.f32 %v4327, %v4728
        %v4847 = vsub.f32 %v4332, %v4733
        %v4848 = vsub.f32 %v4337, %v4738
        %v4849 = vsub.f32 %v4342, %v4743
        %v4850 = vsub.f32 %v4347, %v4748
        %v4851 = vsub.f32 %v4352, %v4753
        %v4852 = vsub.f32 %v4357, %v4758
        %v4853 = vsub.f32 %v4362, %v4763
        %v4854 = vsub.f32 %v4367, %v4768
        %v4855 = vsub.f32 %v4372, %v4773
        %v4856 = vsub.f32 %v4377, %v4778
        %v4857 = vsub.f32 %v4382, %v4783
        %v4858 = vsub.f32 %v4387, %v4788
        %v4859 = vsub.f32 %v4392, %v4793
        %4860 = vst [vmem:[%s467] sm:$0xff] %v4796
        %4861 = vst [vmem:[%s467 + $0x8] sm:$0xff] %v4797
        %4862 = vst [vmem:[%s467 + $0x10] sm:$0xff] %v4798
        %4863 = vst [vmem:[%s467 + $0x18] sm:$0xff] %v4799
        %4864 = vst [vmem:[%s467 + $0x20] sm:$0xff] %v4800
        %4865 = vst [vmem:[%s467 + $0x28] sm:$0xff] %v4801
        %4866 = vst [vmem:[%s467 + $0x30] sm:$0xff] %v4802
        %4867 = vst [vmem:[%s467 + $0x38] sm:$0xff] %v4803
        %4868 = vst [vmem:[%s467 + $0x40] sm:$0xff] %v4804
        %4869 = vst [vmem:[%s467 + $0x48] sm:$0xff] %v4805
        %4870 = vst [vmem:[%s467 + $0x50] sm:$0xff] %v4806
        %4871 = vst [vmem:[%s467 + $0x58] sm:$0xff] %v4807
        %4872 = vst [vmem:[%s467 + $0x60] sm:$0xff] %v4808
        %4873 = vst [vmem:[%s467 + $0x68] sm:$0xff] %v4809
        %4874 = vst [vmem:[%s467 + $0x70] sm:$0xff] %v4810
        %4875 = vst [vmem:[%s467 + $0x78] sm:$0xff] %v4811
        %4876 = vst [vmem:[%s467 + $0x80] sm:$0xff] %v4812
        %4877 = vst [vmem:[%s467 + $0x88] sm:$0xff] %v4813
        %4878 = vst [vmem:[%s467 + $0x90] sm:$0xff] %v4814
        %4879 = vst [vmem:[%s467 + $0x98] sm:$0xff] %v4815
        %4880 = vst [vmem:[%s467 + $0xa0] sm:$0xff] %v4816
        %4881 = vst [vmem:[%s467 + $0xa8] sm:$0xff] %v4817
        %4882 = vst [vmem:[%s467 + $0xb0] sm:$0xff] %v4818
        %4883 = vst [vmem:[%s467 + $0xb8] sm:$0xff] %v4819
        %4884 = vst [vmem:[%s467 + $0xc0] sm:$0xff] %v4820
        %4885 = vst [vmem:[%s467 + $0xc8] sm:$0xff] %v4821
        %4886 = vst [vmem:[%s467 + $0xd0] sm:$0xff] %v4822
        %4887 = vst [vmem:[%s467 + $0xd8] sm:$0xff] %v4823
        %4888 = vst [vmem:[%s467 + $0xe0] sm:$0xff] %v4824
        %4889 = vst [vmem:[%s467 + $0xe8] sm:$0xff] %v4825
        %4890 = vst [vmem:[%s467 + $0xf0] sm:$0xff] %v4826
        %4891 = vst [vmem:[%s467 + $0xf8] sm:$0xff] %v4827
        %4892 = vst [vmem:[%s467 + $0x100] sm:$0xff] %v4828
        %4893 = vst [vmem:[%s467 + $0x108] sm:$0xff] %v4829
        %4894 = vst [vmem:[%s467 + $0x110] sm:$0xff] %v4830
        %4895 = vst [vmem:[%s467 + $0x118] sm:$0xff] %v4831
        %4896 = vst [vmem:[%s467 + $0x120] sm:$0xff] %v4832
        %4897 = vst [vmem:[%s467 + $0x128] sm:$0xff] %v4833
        %4898 = vst [vmem:[%s467 + $0x130] sm:$0xff] %v4834
        %4899 = vst [vmem:[%s467 + $0x138] sm:$0xff] %v4835
        %4900 = vst [vmem:[%s467 + $0x140] sm:$0xff] %v4836
        %4901 = vst [vmem:[%s467 + $0x148] sm:$0xff] %v4837
        %4902 = vst [vmem:[%s467 + $0x150] sm:$0xff] %v4838
        %4903 = vst [vmem:[%s467 + $0x158] sm:$0xff] %v4839
        %4904 = vst [vmem:[%s467 + $0x160] sm:$0xff] %v4840
        %4905 = vst [vmem:[%s467 + $0x168] sm:$0xff] %v4841
        %4906 = vst [vmem:[%s467 + $0x170] sm:$0xff] %v4842
        %4907 = vst [vmem:[%s467 + $0x178] sm:$0xff] %v4843
        %4908 = vst [vmem:[%s467 + $0x180] sm:$0xff] %v4844
        %4909 = vst [vmem:[%s467 + $0x188] sm:$0xff] %v4845
        %4910 = vst [vmem:[%s467 + $0x190] sm:$0xff] %v4846
        %4911 = vst [vmem:[%s467 + $0x198] sm:$0xff] %v4847
        %4912 = vst [vmem:[%s467 + $0x1a0] sm:$0xff] %v4848
        %4913 = vst [vmem:[%s467 + $0x1a8] sm:$0xff] %v4849
        %4914 = vst [vmem:[%s467 + $0x1b0] sm:$0xff] %v4850
        %4915 = vst [vmem:[%s467 + $0x1b8] sm:$0xff] %v4851
        %4916 = vst [vmem:[%s467 + $0x1c0] sm:$0xff] %v4852
        %4917 = vst [vmem:[%s467 + $0x1c8] sm:$0xff] %v4853
        %4918 = vst [vmem:[%s467 + $0x1d0] sm:$0xff] %v4854
        %4919 = vst [vmem:[%s467 + $0x1d8] sm:$0xff] %v4855
        %4920 = vst [vmem:[%s467 + $0x1e0] sm:$0xff] %v4856
        %4921 = vst [vmem:[%s467 + $0x1e8] sm:$0xff] %v4857
        %4922 = vst [vmem:[%s467 + $0x1f0] sm:$0xff] %v4858
        %4923 = vst [vmem:[%s467 + $0x1f8] sm:$0xff] %v4859
        %s4924 = sand.u32 %s232, 1
        %s4925 = scalar_lea.sflag [#allocation4], %s4924
        %s4926 = sand.u32 %s232, 1
        %s4927 = smul.addr %s4926, 512
        %s4928 = scalar_lea.vmem [#allocation17], %s4927
        // Predicated region
        $region93: #{tpu_custom_call.1} parent=55 // pred_check
          %p4929 = pneg %p242
        $region94: #{tpu_custom_call.1} parent=55 // pred_check_branch
          %4931 = sbr.rel (%p4929) target = $region96
        $region95: #{tpu_custom_call.1} parent=55 // pred_region
          %s4932 = smul.u32 4, %s30
          %s4934 = ssub.s32 8192, 8192
          %4935 = vsyncadd %s4925, %s4934
          %s4936 = smul.addr %s4932, 16
          %s4937 = smul.addr %s4936, 128
          %s4938 = scalar_lea.hbm %s9, %s4937
          %s4939 = sshll.u32 %s4928, 4
          %s4940 = int_to_ptr.vmem [resolvable:$true] %s4939
          %4945 = dma.vmem_to_hbm [thread:$0]  %s4940, 8192, %s4938, %s4925, 128, 128, 8
        $region96: #{tpu_custom_call.1} parent=55 // pred_fallthru
          _
      $region56: #{tpu_custom_call.1} parent=5 // pred_fallthru
        _
      %p4946 = scmp.le.s32.totalorder 2, %s25
      // Predicated region
      $region97: #{tpu_custom_call.1} parent=5 // pred_check
        %p4947 = pneg %p4946
      $region98: #{tpu_custom_call.1} parent=5 // pred_check_branch
        %4949 = sbr.rel (%p4947) target = $region100
      $region99: #{tpu_custom_call.1} parent=5 // pred_region
        %s4950 = ssub.s32 %s25, 2
        // Predicated region
        $region101: #{tpu_custom_call.1} parent=99 // pred_check
          %p4951 = pneg %p248
        $region102: #{tpu_custom_call.1} parent=99 // pred_check_branch
          %4953 = sbr.rel (%p4951) target = $region104
        $region103: #{tpu_custom_call.1} parent=99 // pred_region
          %s4954 = sand.u32 %s233, 1
          %s4955 = scalar_lea.sflag [#allocation4], %s4954
          %s4956 = sand.u32 %s233, 1
          %s4957 = smul.addr %s4956, 512
          %s4958 = scalar_lea.vmem [#allocation17], %s4957
          %4959 = dma.done %s4955, 8192
        $region104: #{tpu_custom_call.1} parent=99 // pred_fallthru
          _
      $region100: #{tpu_custom_call.1} parent=5 // pred_fallthru
        _
    $region6: #{tpu_custom_call.1} parent=1 // loop_footer
      %s29 = sadd.s32 1, %s25
    $region7: #{tpu_custom_call.1} parent=1 // loop_footer_branch
      %24 = sbr.rel target = $region3
    $region8: #{tpu_custom_call.1} parent=1 // loop_exit
      _
    %4960 = vsyncpa [#allocation3], 1
    %s4961 = scalar_lea.sflag [#allocation3], 1
    %4962 = vsyncpa %s4961, 1
    %4963 = vsyncpa [#allocation6], 1
    %4964 = vsyncpa [#allocation9], 1
    %4965 = vsyncpa [#allocation12], 1
    %4966 = vsyncpa [#allocation15], 1
    %4967 = vsyncpa [#allocation4], 1
    %s4968 = scalar_lea.sflag [#allocation4], 1
    %4969 = vsyncpa %s4968, 1

</llo_original>
